<compile_context>
chip_gen: v7x
topology: tpu7x:2x2x1
jax: 0.10.0
libtpu: 0.0.40
codegen_flags: <defaults>
</compile_context>

<pallas_src>
import functools

import numpy as np
import jax
import jax.numpy as jnp
from jax.experimental import pallas as pl
from jax.experimental.pallas import tpu as pltpu

NZ = 16      # latent vector size (nz)   -- small demo sizes
NGF = 8      # generator feature depth (ngf)
NC = 3       # output image channels (nc)
BATCH = 2
BN_EPS = 1e-5

C1, C2, C3, C4 = NGF * 8, NGF * 4, NGF * 2, NGF

# stride-2 ConvTranspose stack: (C_in, C_out, H_in(=W_in), use_bn)
STRIDE2_CFG = [
    (C1, C2, 4, True),    # layer 2:  4 ->  8
    (C2, C3, 8, True),    # layer 3:  8 -> 16
    (C3, C4, 16, True),   # layer 4: 16 -> 32
    (C4, NC, 32, False),  # layer 5: 32 -> 64 (tanh, no BN)
]

# shift order; s = (dy+1)*3 + (dx+1) is the position in this list.
_SHIFTS = [(dy, dx) for dy in (-1, 0, 1) for dx in (-1, 0, 1)]


# ----------------------------------------------------------------------------
# In-kernel building blocks (values live in VMEM/vregs, all ops 2D + safe).
# ----------------------------------------------------------------------------
def _build_rhs(x, masks, h, w, n):
    """9 shifted+masked copies of x (C, M), M = (h, w, n) row-major flat,
    stacked along the contraction axis -> (9*C, M).  Pure pad/slice/mask."""
    c, m = x.shape
    p0 = w * n + n                                    # max |flat shift|
    zpad = jnp.zeros((c, p0), jnp.float32)
    xpad = jnp.concatenate([zpad, x, zpad], axis=1)   # (c, m + 2*p0)
    blocks = []
    for s, (dy, dx) in enumerate(_SHIFTS):
        start = p0 + dy * w * n + dx * n              # static, >= 0
        blocks.append(xpad[:, start:start + m] * masks[s:s + 1, :])
    return jnp.concatenate(blocks, axis=0)


def _bn_relu_phases(y, gamma, beta, c_out):
    """Training-mode BatchNorm2d + ReLU on a phase-stacked (4*C_out, M) tile.
    Single-pass stats over all phases, folded to one scale+offset FMA."""
    m = y.shape[-1]
    cnt = 4.0 * m                                     # = N * H_out * W_out
    s = jnp.sum(y, axis=-1, keepdims=True)
    q = jnp.sum(y * y, axis=-1, keepdims=True)
    s = s[0:c_out] + s[c_out:2 * c_out] + s[2 * c_out:3 * c_out] + s[3 * c_out:4 * c_out]
    q = q[0:c_out] + q[c_out:2 * c_out] + q[2 * c_out:3 * c_out] + q[3 * c_out:4 * c_out]
    mean = s / cnt
    var = q / cnt - mean * mean
    scale = gamma * jax.lax.rsqrt(var + BN_EPS)
    offset = beta - mean * scale
    scale = jnp.concatenate([scale] * 4, axis=0)
    offset = jnp.concatenate([offset] * 4, axis=0)
    return jnp.maximum(y * scale + offset, 0.0)


# ----------------------------------------------------------------------------
# Pallas kernels (one per fused stage).
# ----------------------------------------------------------------------------
def _head_kernel(zblk_ref, w1_ref, g1_ref, b1_ref,
                 w2_ref, g2_ref, b2_ref, m2_ref, o_ref, *, n):
    """Stage 1: ConvT1(1x1->4x4) + BN + ReLU + ConvT2 + BN + ReLU, fused.
    Layer 1's 4x4 result never touches HBM (it is only 32 lanes wide)."""
    # ConvTranspose2d(nz, C1, 4, 1, 0) on a 1x1 input is a plain matmul;
    # zblk = block_diag(z^T x 16) so one MXU op yields the (C1, (h, w, n))
    # tile directly in natural flat layout.
    y1 = jnp.dot(w1_ref[...], zblk_ref[...], preferred_element_type=jnp.float32)
    m1 = 16 * n
    mean = jnp.sum(y1, axis=-1, keepdims=True) / m1
    var = jnp.sum(y1 * y1, axis=-1, keepdims=True) / m1 - mean * mean
    scale = g1_ref[...] * jax.lax.rsqrt(var + BN_EPS)
    x = jnp.maximum(y1 * scale + (b1_ref[...] - mean * scale), 0.0)
    # bf16 layer boundary (same rounding as the XLA reference path).
    x = x.astype(jnp.bfloat16).astype(jnp.float32)
    # Layer 2: phase-decomposed transposed conv, VMEM-resident RHS.
    rhs = _build_rhs(x, m2_ref[...], 4, 4, n).astype(jnp.bfloat16)
    y2 = jnp.dot(w2_ref[...], rhs, preferred_element_type=jnp.float32)
    y2 = _bn_relu_phases(y2, g2_ref[...], b2_ref[...], C2)
    o_ref[...] = y2.astype(o_ref.dtype)


def _mid_kernel(x_ref, w_ref, g_ref, b_ref, m_ref, o_ref, *, h, w, n, c_out):
    """Stages 2/3: one phase-decomposed ConvTranspose + BN + ReLU."""
    x = x_ref[...].astype(jnp.float32)
    rhs = _build_rhs(x, m_ref[...], h, w, n).astype(jnp.bfloat16)
    y = jnp.dot(w_ref[...], rhs, preferred_element_type=jnp.float32)
    y = _bn_relu_phases(y, g_ref[...], b_ref[...], c_out)
    o_ref[...] = y.astype(o_ref.dtype)


def _tail_kernel(x_ref, w_ref, m_ref, o_ref, *, h, w, n, c_out):
    """Stage 4: ConvTranspose5 + tanh + bilinear 64->32 (== 2x2 avg pool ==
    mean of the 4 output phases), emitted as a lane-dense (3, 2048) tile."""
    x = x_ref[...].astype(jnp.float32)
    rhs = _build_rhs(x, m_ref[...], h, w, n).astype(jnp.bfloat16)
    y = jnp.tanh(jnp.dot(w_ref[...], rhs, preferred_element_type=jnp.float32))
    o_ref[...] = 0.25 * (y[0:c_out] + y[c_out:2 * c_out]
                         + y[2 * c_out:3 * c_out] + y[3 * c_out:4 * c_out])


def _run(kernel, out_shape, *args):
    """Single-step pallas_call; every operand (<=150 KiB) fits VMEM whole, so
    there is nothing to tile or pipeline at these shapes."""
    return pl.pallas_call(
        kernel,
        out_shape=out_shape,
        grid=(1,),
        in_specs=[pl.BlockSpec(a.shape, lambda i: (0, 0)) for a in args],
        out_specs=pl.BlockSpec(out_shape.shape, lambda i: (0, 0)),
        compiler_params=pltpu.CompilerParams(
            dimension_semantics=("arbitrary",)),
    )(*args)


# ----------------------------------------------------------------------------
# One-time (hoisted) parameter / constant preparation.
# ----------------------------------------------------------------------------
def init_params(key):
    """Raw DCGAN parameters (PyTorch layouts): ConvTranspose2d weights
    (C_in, C_out, 4, 4) ~ N(0, 0.02); BatchNorm gamma=1, beta=0 (defaults)."""
    cfg = [(NZ, C1), (C1, C2), (C2, C3), (C3, C4), (C4, NC)]
    params = []
    for c_in, c_out in cfg:
        key, sub = jax.random.split(key)
        w = 0.02 * jax.random.normal(sub, (c_in, c_out, 4, 4), jnp.float32)
        params.append((w,
                       jnp.ones((c_out, 1), jnp.float32),
                       jnp.zeros((c_out, 1), jnp.float32)))
    return params


def _stack_phase_weight(w):
    """(C_in, C_out, 4, 4) ConvTranspose weight -> (4*C_out, 9*C_in) LHS.
    Output phase (a, b) at anchor (m, w) uses input (m+dy, w+dx) with kernel
    tap (ky, kx) = (1+a-2*dy, 1+b-2*dx) when that tap exists (else zero)."""
    w = np.asarray(w)
    c_in, c_out = w.shape[0], w.shape[1]
    stk = np.zeros((4 * c_out, 9 * c_in), np.float32)
    for a in range(2):
        for b in range(2):
            for s, (dy, dx) in enumerate(_SHIFTS):
                ky, kx = 1 + a - 2 * dy, 1 + b - 2 * dx
                if 0 <= ky < 4 and 0 <= kx < 4:
                    stk[(2 * a + b) * c_out:(2 * a + b + 1) * c_out,
                        s * c_in:(s + 1) * c_in] = w[:, :, ky, kx].T
    return jnp.asarray(stk, jnp.bfloat16)


def _shift_masks(h, w, n):
    """(9, h*w*n) f32 validity masks for the 9 shifted copies, columns in
    row-major (h, w, n) flat order."""
    hh = np.arange(h).reshape(h, 1, 1)
    ww = np.arange(w).reshape(1, w, 1)
    rows = []
    for dy, dx in _SHIFTS:
        ok = (hh + dy >= 0) & (hh + dy < h) & (ww + dx >= 0) & (ww + dx < w)
        rows.append(np.broadcast_to(ok, (h, w, n)).reshape(-1))
    return jnp.asarray(np.stack(rows).astype(np.float32))


def prepare_params(params, n):
    """Hoisted weight prep: phase-stacked bf16 LHS, shift masks, BN params."""
    w1 = np.asarray(params[0][0])                      # (NZ, C1, 4, 4)
    prep = {
        # layer-1 LHS: (C1, 16*NZ), columns ordered (h, w, ci)
        "w1": jnp.asarray(w1.transpose(1, 2, 3, 0).reshape(C1, 16 * NZ),
                          jnp.bfloat16),
        "g1": params[0][1], "b1": params[0][2],
        "w": [], "gamma": [], "beta": [], "masks": [],
    }
    for (w, g, b), (_, _, hw, _) in zip(params[1:], STRIDE2_CFG):
        prep["w"].append(_stack_phase_weight(w))
        prep["gamma"].append(g)
        prep["beta"].append(b)
        prep["masks"].append(_shift_masks(hw, hw, n))
    return prep


# ----------------------------------------------------------------------------
# Forward pass (4 fused pallas_calls + tiny XLA phase interleaves).
# ----------------------------------------------------------------------------
def _interleave(y, c, h, w, n):
    """XLA glue: (4*C, h*w*n) phase-stacked -> (C, (2h)*(2w)*n) natural flat."""
    y = y.reshape(2, 2, c, h, w, n)
    y = jnp.transpose(y, (2, 3, 0, 4, 1, 5))           # (c, h, a, w, b, n)
    return y.reshape(c, 4 * h * w * n)


def generator_forward(z, prep):
    """z: (N, NZ) float32 -> (N, NC, 32, 32) float32 in (-1, 1)."""
    n = z.shape[0]
    z_t = jnp.transpose(z.reshape(n, NZ), (1, 0)).astype(jnp.bfloat16)
    # block_diag(z^T x 16): lets stage 1 compute layer 1 with one MXU matmul.
    zblk = jnp.kron(jnp.eye(16, dtype=jnp.bfloat16), z_t)     # (16*NZ, 16*N)

    # stage 1: layers 1+2 fused -> phase-stacked (4*C2, 4*4*n) bf16
    y = _run(functools.partial(_head_kernel, n=n),
             jax.ShapeDtypeStruct((4 * C2, 16 * n), jnp.bfloat16),
             zblk, prep["w1"], prep["g1"], prep["b1"],
             prep["w"][0], prep["gamma"][0], prep["beta"][0], prep["masks"][0])
    x = _interleave(y, C2, 4, 4, n)

    # stages 2, 3: layers 3 and 4
    for i, (_, c_out, hw, _) in enumerate(STRIDE2_CFG[1:3], start=1):
        y = _run(functools.partial(_mid_kernel, h=hw, w=hw, n=n, c_out=c_out),
                 jax.ShapeDtypeStruct((4 * c_out, hw * hw * n), jnp.bfloat16),
                 x, prep["w"][i], prep["gamma"][i], prep["beta"][i],
                 prep["masks"][i])
        x = _interleave(y, c_out, hw, hw, n)

    # stage 4: layer 5 + tanh + bilinear(64->32) == phase average
    out = _run(functools.partial(_tail_kernel, h=32, w=32, n=n, c_out=NC),
               jax.ShapeDtypeStruct((NC, 32 * 32 * n), jnp.float32),
               x, prep["w"][3], prep["masks"][3])
    return jnp.transpose(out.reshape(NC, 32, 32, n), (3, 0, 1, 2))


# ----------------------------------------------------------------------------
# Pure-JAX reference (XLA dilated conv) with matching bf16/f32 numerics.
# ----------------------------------------------------------------------------
def reference_forward(z, params):
    n = z.shape[0]
    cfg = [(4, 1, 0, True, "relu"), (4, 2, 1, True, "relu"),
           (4, 2, 1, True, "relu"), (4, 2, 1, True, "relu"),
           (4, 2, 1, False, "tanh")]
    y = z.reshape(n, NZ, 1, 1)
    for (k, s, p, use_bn, act), (w, gamma, beta) in zip(cfg, params):
        w_conv = jnp.transpose(w[:, :, ::-1, ::-1], (1, 0, 2, 3))  # OIHW, flip
        y = jax.lax.conv_general_dilated(
            y.astype(jnp.bfloat16), w_conv.astype(jnp.bfloat16),
            window_strides=(1, 1),
            padding=[(k - 1 - p, k - 1 - p)] * 2,
            lhs_dilation=(s, s),
            dimension_numbers=("NCHW", "OIHW", "NCHW"),
            preferred_element_type=jnp.float32)
        if use_bn:
            mean = jnp.mean(y, axis=(0, 2, 3), keepdims=True)
            var = jnp.mean(jnp.square(y - mean), axis=(0, 2, 3), keepdims=True)
            y = (y - mean) * jax.lax.rsqrt(var + BN_EPS)
            y = y * gamma.reshape(1, -1, 1, 1) + beta.reshape(1, -1, 1, 1)
        y = jnp.maximum(y, 0.0) if act == "relu" else jnp.tanh(y)
    # bilinear 64->32, align_corners=False == exact 2x2 average pool
    return y.reshape(n, NC, 32, 2, 32, 2).mean(axis=(3, 5))


if __name__ == "__main__":
    key = jax.random.PRNGKey(0)
    key, zkey = jax.random.split(key)
    z = jax.random.normal(zkey, (BATCH, NZ), dtype=jnp.float32)
    params = init_params(key)
    prep = prepare_params(params, BATCH)        # hoisted, once per model

    fwd = jax.jit(generator_forward)
    out = jax.block_until_ready(fwd(z, prep))
    assert out.shape == (BATCH, NC, 32, 32), out.shape

    ref = jax.block_until_ready(jax.jit(reference_forward)(z, params))
    max_err = float(jnp.max(jnp.abs(out - ref)))
    assert jnp.allclose(out, ref, atol=2e-2, rtol=2e-2), max_err

    print("KERNEL_OK")
</pallas_src>

<mosaic_0001>
module attributes {stable_mosaic.version = 11 : i64} {
  func.func @_head_kernel(%arg0: i32, %arg1: memref<256x32xbf16, #tpu.memory_space<vmem>>, %arg2: memref<64x256xbf16, #tpu.memory_space<vmem>>, %arg3: memref<64x1xf32, #tpu.memory_space<vmem>>, %arg4: memref<64x1xf32, #tpu.memory_space<vmem>>, %arg5: memref<128x576xbf16, #tpu.memory_space<vmem>>, %arg6: memref<32x1xf32, #tpu.memory_space<vmem>>, %arg7: memref<32x1xf32, #tpu.memory_space<vmem>>, %arg8: memref<9x32xf32, #tpu.memory_space<vmem>>, %arg9: memref<128x32xbf16, #tpu.memory_space<vmem>>) attributes {dimension_semantics = [#tpu.dimension_semantics<arbitrary>], iteration_bounds = array<i64: 1>, scalar_prefetch = 0 : i64, scratch_operands = 0 : i64, tpu.core_type = #tpu.core_type<tc>, window_params = [{pipeline_mode = #tpu.pipeline_mode<synchronous>, transform_indices = @transform_0, window_bounds = array<i64: 256, 32>}, {pipeline_mode = #tpu.pipeline_mode<synchronous>, transform_indices = @transform_1, window_bounds = array<i64: 64, 256>}, {pipeline_mode = #tpu.pipeline_mode<synchronous>, transform_indices = @transform_2, window_bounds = array<i64: 64, 1>}, {pipeline_mode = #tpu.pipeline_mode<synchronous>, transform_indices = @transform_3, window_bounds = array<i64: 64, 1>}, {pipeline_mode = #tpu.pipeline_mode<synchronous>, transform_indices = @transform_4, window_bounds = array<i64: 128, 576>}, {pipeline_mode = #tpu.pipeline_mode<synchronous>, transform_indices = @transform_5, window_bounds = array<i64: 32, 1>}, {pipeline_mode = #tpu.pipeline_mode<synchronous>, transform_indices = @transform_6, window_bounds = array<i64: 32, 1>}, {pipeline_mode = #tpu.pipeline_mode<synchronous>, transform_indices = @transform_7, window_bounds = array<i64: 9, 32>}, {pipeline_mode = #tpu.pipeline_mode<synchronous>, transform_indices = @transform_8, window_bounds = array<i64: 128, 32>}]} {
    %c0 = arith.constant 0 : index
    %c0_0 = arith.constant 0 : index
    %0 = vector.load %arg2[%c0, %c0_0] : memref<64x256xbf16, #tpu.memory_space<vmem>>, vector<64x256xbf16>
    %c0_1 = arith.constant 0 : index
    %c0_2 = arith.constant 0 : index
    %1 = vector.load %arg1[%c0_1, %c0_2] : memref<256x32xbf16, #tpu.memory_space<vmem>>, vector<256x32xbf16>
    %cst = arith.constant dense<0.000000e+00> : vector<64x32xf32>
    %2 = tpu.matmul %0, %1, %cst {dimension_numbers = #tpu.dot_dimension_numbers<[1], [0], [0], [1], [0, 0, 1, 1], [], []>} : vector<64x256xbf16>, vector<256x32xbf16>, vector<64x32xf32> -> vector<64x32xf32>
    %cst_3 = arith.constant dense<0.000000e+00> : vector<64xf32>
    %3 = vector.multi_reduction <add>, %2, %cst_3 [1] : vector<64x32xf32> to vector<64xf32>
    %4 = vector.shape_cast %3 : vector<64xf32> to vector<64x1xf32>
    %cst_4 = arith.constant 3.200000e+01 : f32
    %5 = vector.broadcast %cst_4 : f32 to vector<64x1xf32>
    %6 = arith.divf %4, %5 : vector<64x1xf32>
    %7 = arith.mulf %2, %2 : vector<64x32xf32>
    %cst_5 = arith.constant dense<0.000000e+00> : vector<64xf32>
    %8 = vector.multi_reduction <add>, %7, %cst_5 [1] : vector<64x32xf32> to vector<64xf32>
    %9 = vector.shape_cast %8 : vector<64xf32> to vector<64x1xf32>
    %cst_6 = arith.constant 3.200000e+01 : f32
    %10 = vector.broadcast %cst_6 : f32 to vector<64x1xf32>
    %11 = arith.divf %9, %10 : vector<64x1xf32>
    %12 = arith.mulf %6, %6 : vector<64x1xf32>
    %13 = arith.subf %11, %12 : vector<64x1xf32>
    %c0_7 = arith.constant 0 : index
    %c0_8 = arith.constant 0 : index
    %14 = vector.load %arg3[%c0_7, %c0_8] : memref<64x1xf32, #tpu.memory_space<vmem>>, vector<64x1xf32>
    %cst_9 = arith.constant 9.99999974E-6 : f32
    %15 = vector.broadcast %cst_9 : f32 to vector<64x1xf32>
    %16 = arith.addf %13, %15 : vector<64x1xf32>
    %17 = math.rsqrt %16 : vector<64x1xf32>
    %18 = arith.mulf %14, %17 : vector<64x1xf32>
    %19 = vector.broadcast %18 : vector<64x1xf32> to vector<64x32xf32>
    %20 = arith.mulf %2, %19 : vector<64x32xf32>
    %c0_10 = arith.constant 0 : index
    %c0_11 = arith.constant 0 : index
    %21 = vector.load %arg4[%c0_10, %c0_11] : memref<64x1xf32, #tpu.memory_space<vmem>>, vector<64x1xf32>
    %22 = arith.mulf %6, %18 : vector<64x1xf32>
    %23 = arith.subf %21, %22 : vector<64x1xf32>
    %24 = vector.broadcast %23 : vector<64x1xf32> to vector<64x32xf32>
    %25 = arith.addf %20, %24 : vector<64x32xf32>
    %cst_12 = arith.constant 0.000000e+00 : f32
    %26 = vector.broadcast %cst_12 : f32 to vector<64x32xf32>
    %27 = arith.maximumf %25, %26 : vector<64x32xf32>
    %28 = arith.truncf %27 : vector<64x32xf32> to vector<64x32xbf16>
    %29 = arith.extf %28 : vector<64x32xbf16> to vector<64x32xf32>
    %c0_13 = arith.constant 0 : index
    %c0_14 = arith.constant 0 : index
    %30 = vector.load %arg8[%c0_13, %c0_14] : memref<9x32xf32, #tpu.memory_space<vmem>>, vector<9x32xf32>
    %cst_15 = arith.constant 0.000000e+00 : f32
    %31 = vector.broadcast %cst_15 : f32 to vector<64x10xf32>
    %32 = tpu.concatenate %31, %29, %31 in 1 : vector<64x10xf32>, vector<64x32xf32>, vector<64x10xf32> -> vector<64x52xf32>
    %33 = vector.extract_strided_slice %32 {offsets = [0, 0], sizes = [64, 32], strides = [1, 1]} : vector<64x52xf32> to vector<64x32xf32>
    %34 = vector.extract_strided_slice %30 {offsets = [0, 0], sizes = [1, 32], strides = [1, 1]} : vector<9x32xf32> to vector<1x32xf32>
    %35 = vector.broadcast %34 : vector<1x32xf32> to vector<64x32xf32>
    %36 = arith.mulf %33, %35 : vector<64x32xf32>
    %37 = vector.extract_strided_slice %32 {offsets = [0, 2], sizes = [64, 32], strides = [1, 1]} : vector<64x52xf32> to vector<64x32xf32>
    %38 = vector.extract_strided_slice %30 {offsets = [1, 0], sizes = [1, 32], strides = [1, 1]} : vector<9x32xf32> to vector<1x32xf32>
    %39 = vector.broadcast %38 : vector<1x32xf32> to vector<64x32xf32>
    %40 = arith.mulf %37, %39 : vector<64x32xf32>
    %41 = vector.extract_strided_slice %32 {offsets = [0, 4], sizes = [64, 32], strides = [1, 1]} : vector<64x52xf32> to vector<64x32xf32>
    %42 = vector.extract_strided_slice %30 {offsets = [2, 0], sizes = [1, 32], strides = [1, 1]} : vector<9x32xf32> to vector<1x32xf32>
    %43 = vector.broadcast %42 : vector<1x32xf32> to vector<64x32xf32>
    %44 = arith.mulf %41, %43 : vector<64x32xf32>
    %45 = vector.extract_strided_slice %32 {offsets = [0, 8], sizes = [64, 32], strides = [1, 1]} : vector<64x52xf32> to vector<64x32xf32>
    %46 = vector.extract_strided_slice %30 {offsets = [3, 0], sizes = [1, 32], strides = [1, 1]} : vector<9x32xf32> to vector<1x32xf32>
    %47 = vector.broadcast %46 : vector<1x32xf32> to vector<64x32xf32>
    %48 = arith.mulf %45, %47 : vector<64x32xf32>
    %49 = vector.extract_strided_slice %32 {offsets = [0, 10], sizes = [64, 32], strides = [1, 1]} : vector<64x52xf32> to vector<64x32xf32>
    %50 = vector.extract_strided_slice %30 {offsets = [4, 0], sizes = [1, 32], strides = [1, 1]} : vector<9x32xf32> to vector<1x32xf32>
    %51 = vector.broadcast %50 : vector<1x32xf32> to vector<64x32xf32>
    %52 = arith.mulf %49, %51 : vector<64x32xf32>
    %53 = vector.extract_strided_slice %32 {offsets = [0, 12], sizes = [64, 32], strides = [1, 1]} : vector<64x52xf32> to vector<64x32xf32>
    %54 = vector.extract_strided_slice %30 {offsets = [5, 0], sizes = [1, 32], strides = [1, 1]} : vector<9x32xf32> to vector<1x32xf32>
    %55 = vector.broadcast %54 : vector<1x32xf32> to vector<64x32xf32>
    %56 = arith.mulf %53, %55 : vector<64x32xf32>
    %57 = vector.extract_strided_slice %32 {offsets = [0, 16], sizes = [64, 32], strides = [1, 1]} : vector<64x52xf32> to vector<64x32xf32>
    %58 = vector.extract_strided_slice %30 {offsets = [6, 0], sizes = [1, 32], strides = [1, 1]} : vector<9x32xf32> to vector<1x32xf32>
    %59 = vector.broadcast %58 : vector<1x32xf32> to vector<64x32xf32>
    %60 = arith.mulf %57, %59 : vector<64x32xf32>
    %61 = vector.extract_strided_slice %32 {offsets = [0, 18], sizes = [64, 32], strides = [1, 1]} : vector<64x52xf32> to vector<64x32xf32>
    %62 = vector.extract_strided_slice %30 {offsets = [7, 0], sizes = [1, 32], strides = [1, 1]} : vector<9x32xf32> to vector<1x32xf32>
    %63 = vector.broadcast %62 : vector<1x32xf32> to vector<64x32xf32>
    %64 = arith.mulf %61, %63 : vector<64x32xf32>
    %65 = vector.extract_strided_slice %32 {offsets = [0, 20], sizes = [64, 32], strides = [1, 1]} : vector<64x52xf32> to vector<64x32xf32>
    %66 = vector.extract_strided_slice %30 {offsets = [8, 0], sizes = [1, 32], strides = [1, 1]} : vector<9x32xf32> to vector<1x32xf32>
    %67 = vector.broadcast %66 : vector<1x32xf32> to vector<64x32xf32>
    %68 = arith.mulf %65, %67 : vector<64x32xf32>
    %69 = tpu.concatenate %36, %40, %44, %48, %52, %56, %60, %64, %68 in 0 : vector<64x32xf32>, vector<64x32xf32>, vector<64x32xf32>, vector<64x32xf32>, vector<64x32xf32>, vector<64x32xf32>, vector<64x32xf32>, vector<64x32xf32>, vector<64x32xf32> -> vector<576x32xf32>
    %70 = arith.truncf %69 : vector<576x32xf32> to vector<576x32xbf16>
    %c0_16 = arith.constant 0 : index
    %c0_17 = arith.constant 0 : index
    %71 = vector.load %arg5[%c0_16, %c0_17] : memref<128x576xbf16, #tpu.memory_space<vmem>>, vector<128x576xbf16>
    %cst_18 = arith.constant dense<0.000000e+00> : vector<128x32xf32>
    %72 = tpu.matmul %71, %70, %cst_18 {dimension_numbers = #tpu.dot_dimension_numbers<[1], [0], [0], [1], [0, 0, 1, 1], [], []>} : vector<128x576xbf16>, vector<576x32xbf16>, vector<128x32xf32> -> vector<128x32xf32>
    %c0_19 = arith.constant 0 : index
    %c0_20 = arith.constant 0 : index
    %73 = vector.load %arg6[%c0_19, %c0_20] : memref<32x1xf32, #tpu.memory_space<vmem>>, vector<32x1xf32>
    %c0_21 = arith.constant 0 : index
    %c0_22 = arith.constant 0 : index
    %74 = vector.load %arg7[%c0_21, %c0_22] : memref<32x1xf32, #tpu.memory_space<vmem>>, vector<32x1xf32>
    %cst_23 = arith.constant dense<0.000000e+00> : vector<128xf32>
    %75 = vector.multi_reduction <add>, %72, %cst_23 [1] : vector<128x32xf32> to vector<128xf32>
    %76 = vector.shape_cast %75 : vector<128xf32> to vector<128x1xf32>
    %77 = arith.mulf %72, %72 : vector<128x32xf32>
    %cst_24 = arith.constant dense<0.000000e+00> : vector<128xf32>
    %78 = vector.multi_reduction <add>, %77, %cst_24 [1] : vector<128x32xf32> to vector<128xf32>
    %79 = vector.shape_cast %78 : vector<128xf32> to vector<128x1xf32>
    %80 = vector.extract_strided_slice %76 {offsets = [0, 0], sizes = [32, 1], strides = [1, 1]} : vector<128x1xf32> to vector<32x1xf32>
    %81 = vector.extract_strided_slice %76 {offsets = [32, 0], sizes = [32, 1], strides = [1, 1]} : vector<128x1xf32> to vector<32x1xf32>
    %82 = arith.addf %80, %81 : vector<32x1xf32>
    %83 = vector.extract_strided_slice %76 {offsets = [64, 0], sizes = [32, 1], strides = [1, 1]} : vector<128x1xf32> to vector<32x1xf32>
    %84 = arith.addf %82, %83 : vector<32x1xf32>
    %85 = vector.extract_strided_slice %76 {offsets = [96, 0], sizes = [32, 1], strides = [1, 1]} : vector<128x1xf32> to vector<32x1xf32>
    %86 = arith.addf %84, %85 : vector<32x1xf32>
    %87 = vector.extract_strided_slice %79 {offsets = [0, 0], sizes = [32, 1], strides = [1, 1]} : vector<128x1xf32> to vector<32x1xf32>
    %88 = vector.extract_strided_slice %79 {offsets = [32, 0], sizes = [32, 1], strides = [1, 1]} : vector<128x1xf32> to vector<32x1xf32>
    %89 = arith.addf %87, %88 : vector<32x1xf32>
    %90 = vector.extract_strided_slice %79 {offsets = [64, 0], sizes = [32, 1], strides = [1, 1]} : vector<128x1xf32> to vector<32x1xf32>
    %91 = arith.addf %89, %90 : vector<32x1xf32>
    %92 = vector.extract_strided_slice %79 {offsets = [96, 0], sizes = [32, 1], strides = [1, 1]} : vector<128x1xf32> to vector<32x1xf32>
    %93 = arith.addf %91, %92 : vector<32x1xf32>
    %cst_25 = arith.constant 1.280000e+02 : f32
    %94 = vector.broadcast %cst_25 : f32 to vector<32x1xf32>
    %95 = arith.divf %86, %94 : vector<32x1xf32>
    %cst_26 = arith.constant 1.280000e+02 : f32
    %96 = vector.broadcast %cst_26 : f32 to vector<32x1xf32>
    %97 = arith.divf %93, %96 : vector<32x1xf32>
    %98 = arith.mulf %95, %95 : vector<32x1xf32>
    %99 = arith.subf %97, %98 : vector<32x1xf32>
    %cst_27 = arith.constant 9.99999974E-6 : f32
    %100 = vector.broadcast %cst_27 : f32 to vector<32x1xf32>
    %101 = arith.addf %99, %100 : vector<32x1xf32>
    %102 = math.rsqrt %101 : vector<32x1xf32>
    %103 = arith.mulf %73, %102 : vector<32x1xf32>
    %104 = arith.mulf %95, %103 : vector<32x1xf32>
    %105 = arith.subf %74, %104 : vector<32x1xf32>
    %106 = tpu.concatenate %103, %103, %103, %103 in 0 : vector<32x1xf32>, vector<32x1xf32>, vector<32x1xf32>, vector<32x1xf32> -> vector<128x1xf32>
    %107 = tpu.concatenate %105, %105, %105, %105 in 0 : vector<32x1xf32>, vector<32x1xf32>, vector<32x1xf32>, vector<32x1xf32> -> vector<128x1xf32>
    %108 = vector.broadcast %106 : vector<128x1xf32> to vector<128x32xf32>
    %109 = arith.mulf %72, %108 : vector<128x32xf32>
    %110 = vector.broadcast %107 : vector<128x1xf32> to vector<128x32xf32>
    %111 = arith.addf %109, %110 : vector<128x32xf32>
    %cst_28 = arith.constant 0.000000e+00 : f32
    %112 = vector.broadcast %cst_28 : f32 to vector<128x32xf32>
    %113 = arith.maximumf %111, %112 : vector<128x32xf32>
    %114 = arith.truncf %113 : vector<128x32xf32> to vector<128x32xbf16>
    %c0_29 = arith.constant 0 : index
    %c0_30 = arith.constant 0 : index
    %115 = vector.load %arg9[%c0_29, %c0_30] : memref<128x32xbf16, #tpu.memory_space<vmem>>, vector<128x32xbf16>
    tpu.vector_store %arg9[%c0_29, %c0_30], %114 {strides = array<i32>} : memref<128x32xbf16, #tpu.memory_space<vmem>>, vector<128x32xbf16>,
    return
  }
  func.func @transform_0(%arg0: i32) -> (i32, i32) {
    %c0_i32 = arith.constant 0 : i32
    %c0_i32_0 = arith.constant 0 : i32
    %c0_i32_1 = arith.constant 0 : i32
    return %c0_i32, %c0_i32_0 : i32, i32
  }
  func.func @transform_1(%arg0: i32) -> (i32, i32) {
    %c0_i32 = arith.constant 0 : i32
    %c0_i32_0 = arith.constant 0 : i32
    %c0_i32_1 = arith.constant 0 : i32
    return %c0_i32, %c0_i32_0 : i32, i32
  }
  func.func @transform_2(%arg0: i32) -> (i32, i32) {
    %c0_i32 = arith.constant 0 : i32
    %c0_i32_0 = arith.constant 0 : i32
    %c0_i32_1 = arith.constant 0 : i32
    return %c0_i32, %c0_i32_0 : i32, i32
  }
  func.func @transform_3(%arg0: i32) -> (i32, i32) {
    %c0_i32 = arith.constant 0 : i32
    %c0_i32_0 = arith.constant 0 : i32
    %c0_i32_1 = arith.constant 0 : i32
    return %c0_i32, %c0_i32_0 : i32, i32
  }
  func.func @transform_4(%arg0: i32) -> (i32, i32) {
    %c0_i32 = arith.constant 0 : i32
    %c0_i32_0 = arith.constant 0 : i32
    %c0_i32_1 = arith.constant 0 : i32
    return %c0_i32, %c0_i32_0 : i32, i32
  }
  func.func @transform_5(%arg0: i32) -> (i32, i32) {
    %c0_i32 = arith.constant 0 : i32
    %c0_i32_0 = arith.constant 0 : i32
    %c0_i32_1 = arith.constant 0 : i32
    return %c0_i32, %c0_i32_0 : i32, i32
  }
  func.func @transform_6(%arg0: i32) -> (i32, i32) {
    %c0_i32 = arith.constant 0 : i32
    %c0_i32_0 = arith.constant 0 : i32
    %c0_i32_1 = arith.constant 0 : i32
    return %c0_i32, %c0_i32_0 : i32, i32
  }
  func.func @transform_7(%arg0: i32) -> (i32, i32) {
    %c0_i32 = arith.constant 0 : i32
    %c0_i32_0 = arith.constant 0 : i32
    %c0_i32_1 = arith.constant 0 : i32
    return %c0_i32, %c0_i32_0 : i32, i32
  }
  func.func @transform_8(%arg0: i32) -> (i32, i32) {
    %c0_i32 = arith.constant 0 : i32
    %c0_i32_0 = arith.constant 0 : i32
    %c0_i32_1 = arith.constant 0 : i32
    return %c0_i32, %c0_i32_0 : i32, i32
  }
}

module attributes {stable_mosaic.version = 11 : i64} {
  func.func @_mid_kernel(%arg0: i32, %arg1: memref<32x128xbf16, #tpu.memory_space<vmem>>, %arg2: memref<64x288xbf16, #tpu.memory_space<vmem>>, %arg3: memref<16x1xf32, #tpu.memory_space<vmem>>, %arg4: memref<16x1xf32, #tpu.memory_space<vmem>>, %arg5: memref<9x128xf32, #tpu.memory_space<vmem>>, %arg6: memref<64x128xbf16, #tpu.memory_space<vmem>>) attributes {dimension_semantics = [#tpu.dimension_semantics<arbitrary>], iteration_bounds = array<i64: 1>, scalar_prefetch = 0 : i64, scratch_operands = 0 : i64, tpu.core_type = #tpu.core_type<tc>, window_params = [{pipeline_mode = #tpu.pipeline_mode<synchronous>, transform_indices = @transform_0, window_bounds = array<i64: 32, 128>}, {pipeline_mode = #tpu.pipeline_mode<synchronous>, transform_indices = @transform_1, window_bounds = array<i64: 64, 288>}, {pipeline_mode = #tpu.pipeline_mode<synchronous>, transform_indices = @transform_2, window_bounds = array<i64: 16, 1>}, {pipeline_mode = #tpu.pipeline_mode<synchronous>, transform_indices = @transform_3, window_bounds = array<i64: 16, 1>}, {pipeline_mode = #tpu.pipeline_mode<synchronous>, transform_indices = @transform_4, window_bounds = array<i64: 9, 128>}, {pipeline_mode = #tpu.pipeline_mode<synchronous>, transform_indices = @transform_5, window_bounds = array<i64: 64, 128>}]} {
    %c0 = arith.constant 0 : index
    %c0_0 = arith.constant 0 : index
    %0 = vector.load %arg1[%c0, %c0_0] : memref<32x128xbf16, #tpu.memory_space<vmem>>, vector<32x128xbf16>
    %1 = arith.extf %0 : vector<32x128xbf16> to vector<32x128xf32>
    %c0_1 = arith.constant 0 : index
    %c0_2 = arith.constant 0 : index
    %2 = vector.load %arg5[%c0_1, %c0_2] : memref<9x128xf32, #tpu.memory_space<vmem>>, vector<9x128xf32>
    %cst = arith.constant 0.000000e+00 : f32
    %3 = vector.broadcast %cst : f32 to vector<32x18xf32>
    %4 = tpu.concatenate %3, %1, %3 in 1 : vector<32x18xf32>, vector<32x128xf32>, vector<32x18xf32> -> vector<32x164xf32>
    %5 = vector.extract_strided_slice %4 {offsets = [0, 0], sizes = [32, 128], strides = [1, 1]} : vector<32x164xf32> to vector<32x128xf32>
    %6 = vector.extract_strided_slice %2 {offsets = [0, 0], sizes = [1, 128], strides = [1, 1]} : vector<9x128xf32> to vector<1x128xf32>
    %7 = vector.broadcast %6 : vector<1x128xf32> to vector<32x128xf32>
    %8 = arith.mulf %5, %7 : vector<32x128xf32>
    %9 = vector.extract_strided_slice %4 {offsets = [0, 2], sizes = [32, 128], strides = [1, 1]} : vector<32x164xf32> to vector<32x128xf32>
    %10 = vector.extract_strided_slice %2 {offsets = [1, 0], sizes = [1, 128], strides = [1, 1]} : vector<9x128xf32> to vector<1x128xf32>
    %11 = vector.broadcast %10 : vector<1x128xf32> to vector<32x128xf32>
    %12 = arith.mulf %9, %11 : vector<32x128xf32>
    %13 = vector.extract_strided_slice %4 {offsets = [0, 4], sizes = [32, 128], strides = [1, 1]} : vector<32x164xf32> to vector<32x128xf32>
    %14 = vector.extract_strided_slice %2 {offsets = [2, 0], sizes = [1, 128], strides = [1, 1]} : vector<9x128xf32> to vector<1x128xf32>
    %15 = vector.broadcast %14 : vector<1x128xf32> to vector<32x128xf32>
    %16 = arith.mulf %13, %15 : vector<32x128xf32>
    %17 = vector.extract_strided_slice %4 {offsets = [0, 16], sizes = [32, 128], strides = [1, 1]} : vector<32x164xf32> to vector<32x128xf32>
    %18 = vector.extract_strided_slice %2 {offsets = [3, 0], sizes = [1, 128], strides = [1, 1]} : vector<9x128xf32> to vector<1x128xf32>
    %19 = vector.broadcast %18 : vector<1x128xf32> to vector<32x128xf32>
    %20 = arith.mulf %17, %19 : vector<32x128xf32>
    %21 = vector.extract_strided_slice %4 {offsets = [0, 18], sizes = [32, 128], strides = [1, 1]} : vector<32x164xf32> to vector<32x128xf32>
    %22 = vector.extract_strided_slice %2 {offsets = [4, 0], sizes = [1, 128], strides = [1, 1]} : vector<9x128xf32> to vector<1x128xf32>
    %23 = vector.broadcast %22 : vector<1x128xf32> to vector<32x128xf32>
    %24 = arith.mulf %21, %23 : vector<32x128xf32>
    %25 = vector.extract_strided_slice %4 {offsets = [0, 20], sizes = [32, 128], strides = [1, 1]} : vector<32x164xf32> to vector<32x128xf32>
    %26 = vector.extract_strided_slice %2 {offsets = [5, 0], sizes = [1, 128], strides = [1, 1]} : vector<9x128xf32> to vector<1x128xf32>
    %27 = vector.broadcast %26 : vector<1x128xf32> to vector<32x128xf32>
    %28 = arith.mulf %25, %27 : vector<32x128xf32>
    %29 = vector.extract_strided_slice %4 {offsets = [0, 32], sizes = [32, 128], strides = [1, 1]} : vector<32x164xf32> to vector<32x128xf32>
    %30 = vector.extract_strided_slice %2 {offsets = [6, 0], sizes = [1, 128], strides = [1, 1]} : vector<9x128xf32> to vector<1x128xf32>
    %31 = vector.broadcast %30 : vector<1x128xf32> to vector<32x128xf32>
    %32 = arith.mulf %29, %31 : vector<32x128xf32>
    %33 = vector.extract_strided_slice %4 {offsets = [0, 34], sizes = [32, 128], strides = [1, 1]} : vector<32x164xf32> to vector<32x128xf32>
    %34 = vector.extract_strided_slice %2 {offsets = [7, 0], sizes = [1, 128], strides = [1, 1]} : vector<9x128xf32> to vector<1x128xf32>
    %35 = vector.broadcast %34 : vector<1x128xf32> to vector<32x128xf32>
    %36 = arith.mulf %33, %35 : vector<32x128xf32>
    %37 = vector.extract_strided_slice %4 {offsets = [0, 36], sizes = [32, 128], strides = [1, 1]} : vector<32x164xf32> to vector<32x128xf32>
    %38 = vector.extract_strided_slice %2 {offsets = [8, 0], sizes = [1, 128], strides = [1, 1]} : vector<9x128xf32> to vector<1x128xf32>
    %39 = vector.broadcast %38 : vector<1x128xf32> to vector<32x128xf32>
    %40 = arith.mulf %37, %39 : vector<32x128xf32>
    %41 = tpu.concatenate %8, %12, %16, %20, %24, %28, %32, %36, %40 in 0 : vector<32x128xf32>, vector<32x128xf32>, vector<32x128xf32>, vector<32x128xf32>, vector<32x128xf32>, vector<32x128xf32>, vector<32x128xf32>, vector<32x128xf32>, vector<32x128xf32> -> vector<288x128xf32>
    %42 = arith.truncf %41 : vector<288x128xf32> to vector<288x128xbf16>
    %c0_3 = arith.constant 0 : index
    %c0_4 = arith.constant 0 : index
    %43 = vector.load %arg2[%c0_3, %c0_4] : memref<64x288xbf16, #tpu.memory_space<vmem>>, vector<64x288xbf16>
    %cst_5 = arith.constant dense<0.000000e+00> : vector<64x128xf32>
    %44 = tpu.matmul %43, %42, %cst_5 {dimension_numbers = #tpu.dot_dimension_numbers<[1], [0], [0], [1], [0, 0, 1, 1], [], []>} : vector<64x288xbf16>, vector<288x128xbf16>, vector<64x128xf32> -> vector<64x128xf32>
    %c0_6 = arith.constant 0 : index
    %c0_7 = arith.constant 0 : index
    %45 = vector.load %arg3[%c0_6, %c0_7] : memref<16x1xf32, #tpu.memory_space<vmem>>, vector<16x1xf32>
    %c0_8 = arith.constant 0 : index
    %c0_9 = arith.constant 0 : index
    %46 = vector.load %arg4[%c0_8, %c0_9] : memref<16x1xf32, #tpu.memory_space<vmem>>, vector<16x1xf32>
    %cst_10 = arith.constant dense<0.000000e+00> : vector<64xf32>
    %47 = vector.multi_reduction <add>, %44, %cst_10 [1] : vector<64x128xf32> to vector<64xf32>
    %48 = vector.shape_cast %47 : vector<64xf32> to vector<64x1xf32>
    %49 = arith.mulf %44, %44 : vector<64x128xf32>
    %cst_11 = arith.constant dense<0.000000e+00> : vector<64xf32>
    %50 = vector.multi_reduction <add>, %49, %cst_11 [1] : vector<64x128xf32> to vector<64xf32>
    %51 = vector.shape_cast %50 : vector<64xf32> to vector<64x1xf32>
    %52 = vector.extract_strided_slice %48 {offsets = [0, 0], sizes = [16, 1], strides = [1, 1]} : vector<64x1xf32> to vector<16x1xf32>
    %53 = vector.extract_strided_slice %48 {offsets = [16, 0], sizes = [16, 1], strides = [1, 1]} : vector<64x1xf32> to vector<16x1xf32>
    %54 = arith.addf %52, %53 : vector<16x1xf32>
    %55 = vector.extract_strided_slice %48 {offsets = [32, 0], sizes = [16, 1], strides = [1, 1]} : vector<64x1xf32> to vector<16x1xf32>
    %56 = arith.addf %54, %55 : vector<16x1xf32>
    %57 = vector.extract_strided_slice %48 {offsets = [48, 0], sizes = [16, 1], strides = [1, 1]} : vector<64x1xf32> to vector<16x1xf32>
    %58 = arith.addf %56, %57 : vector<16x1xf32>
    %59 = vector.extract_strided_slice %51 {offsets = [0, 0], sizes = [16, 1], strides = [1, 1]} : vector<64x1xf32> to vector<16x1xf32>
    %60 = vector.extract_strided_slice %51 {offsets = [16, 0], sizes = [16, 1], strides = [1, 1]} : vector<64x1xf32> to vector<16x1xf32>
    %61 = arith.addf %59, %60 : vector<16x1xf32>
    %62 = vector.extract_strided_slice %51 {offsets = [32, 0], sizes = [16, 1], strides = [1, 1]} : vector<64x1xf32> to vector<16x1xf32>
    %63 = arith.addf %61, %62 : vector<16x1xf32>
    %64 = vector.extract_strided_slice %51 {offsets = [48, 0], sizes = [16, 1], strides = [1, 1]} : vector<64x1xf32> to vector<16x1xf32>
    %65 = arith.addf %63, %64 : vector<16x1xf32>
    %cst_12 = arith.constant 5.120000e+02 : f32
    %66 = vector.broadcast %cst_12 : f32 to vector<16x1xf32>
    %67 = arith.divf %58, %66 : vector<16x1xf32>
    %cst_13 = arith.constant 5.120000e+02 : f32
    %68 = vector.broadcast %cst_13 : f32 to vector<16x1xf32>
    %69 = arith.divf %65, %68 : vector<16x1xf32>
    %70 = arith.mulf %67, %67 : vector<16x1xf32>
    %71 = arith.subf %69, %70 : vector<16x1xf32>
    %cst_14 = arith.constant 9.99999974E-6 : f32
    %72 = vector.broadcast %cst_14 : f32 to vector<16x1xf32>
    %73 = arith.addf %71, %72 : vector<16x1xf32>
    %74 = math.rsqrt %73 : vector<16x1xf32>
    %75 = arith.mulf %45, %74 : vector<16x1xf32>
    %76 = arith.mulf %67, %75 : vector<16x1xf32>
    %77 = arith.subf %46, %76 : vector<16x1xf32>
    %78 = tpu.concatenate %75, %75, %75, %75 in 0 : vector<16x1xf32>, vector<16x1xf32>, vector<16x1xf32>, vector<16x1xf32> -> vector<64x1xf32>
    %79 = tpu.concatenate %77, %77, %77, %77 in 0 : vector<16x1xf32>, vector<16x1xf32>, vector<16x1xf32>, vector<16x1xf32> -> vector<64x1xf32>
    %80 = vector.broadcast %78 : vector<64x1xf32> to vector<64x128xf32>
    %81 = arith.mulf %44, %80 : vector<64x128xf32>
    %82 = vector.broadcast %79 : vector<64x1xf32> to vector<64x128xf32>
    %83 = arith.addf %81, %82 : vector<64x128xf32>
    %cst_15 = arith.constant 0.000000e+00 : f32
    %84 = vector.broadcast %cst_15 : f32 to vector<64x128xf32>
    %85 = arith.maximumf %83, %84 : vector<64x128xf32>
    %86 = arith.truncf %85 : vector<64x128xf32> to vector<64x128xbf16>
    %c0_16 = arith.constant 0 : index
    %c0_17 = arith.constant 0 : index
    %87 = vector.load %arg6[%c0_16, %c0_17] : memref<64x128xbf16, #tpu.memory_space<vmem>>, vector<64x128xbf16>
    tpu.vector_store %arg6[%c0_16, %c0_17], %86 {strides = array<i32>} : memref<64x128xbf16, #tpu.memory_space<vmem>>, vector<64x128xbf16>,
    return
  }
  func.func @transform_0(%arg0: i32) -> (i32, i32) {
    %c0_i32 = arith.constant 0 : i32
    %c0_i32_0 = arith.constant 0 : i32
    %c0_i32_1 = arith.constant 0 : i32
    return %c0_i32, %c0_i32_0 : i32, i32
  }
  func.func @transform_1(%arg0: i32) -> (i32, i32) {
    %c0_i32 = arith.constant 0 : i32
    %c0_i32_0 = arith.constant 0 : i32
    %c0_i32_1 = arith.constant 0 : i32
    return %c0_i32, %c0_i32_0 : i32, i32
  }
  func.func @transform_2(%arg0: i32) -> (i32, i32) {
    %c0_i32 = arith.constant 0 : i32
    %c0_i32_0 = arith.constant 0 : i32
    %c0_i32_1 = arith.constant 0 : i32
    return %c0_i32, %c0_i32_0 : i32, i32
  }
  func.func @transform_3(%arg0: i32) -> (i32, i32) {
    %c0_i32 = arith.constant 0 : i32
    %c0_i32_0 = arith.constant 0 : i32
    %c0_i32_1 = arith.constant 0 : i32
    return %c0_i32, %c0_i32_0 : i32, i32
  }
  func.func @transform_4(%arg0: i32) -> (i32, i32) {
    %c0_i32 = arith.constant 0 : i32
    %c0_i32_0 = arith.constant 0 : i32
    %c0_i32_1 = arith.constant 0 : i32
    return %c0_i32, %c0_i32_0 : i32, i32
  }
  func.func @transform_5(%arg0: i32) -> (i32, i32) {
    %c0_i32 = arith.constant 0 : i32
    %c0_i32_0 = arith.constant 0 : i32
    %c0_i32_1 = arith.constant 0 : i32
    return %c0_i32, %c0_i32_0 : i32, i32
  }
}

module attributes {stable_mosaic.version = 11 : i64} {
  func.func @_mid_kernel(%arg0: i32, %arg1: memref<16x512xbf16, #tpu.memory_space<vmem>>, %arg2: memref<32x144xbf16, #tpu.memory_space<vmem>>, %arg3: memref<8x1xf32, #tpu.memory_space<vmem>>, %arg4: memref<8x1xf32, #tpu.memory_space<vmem>>, %arg5: memref<9x512xf32, #tpu.memory_space<vmem>>, %arg6: memref<32x512xbf16, #tpu.memory_space<vmem>>) attributes {dimension_semantics = [#tpu.dimension_semantics<arbitrary>], iteration_bounds = array<i64: 1>, scalar_prefetch = 0 : i64, scratch_operands = 0 : i64, tpu.core_type = #tpu.core_type<tc>, window_params = [{pipeline_mode = #tpu.pipeline_mode<synchronous>, transform_indices = @transform_0, window_bounds = array<i64: 16, 512>}, {pipeline_mode = #tpu.pipeline_mode<synchronous>, transform_indices = @transform_1, window_bounds = array<i64: 32, 144>}, {pipeline_mode = #tpu.pipeline_mode<synchronous>, transform_indices = @transform_2, window_bounds = array<i64: 8, 1>}, {pipeline_mode = #tpu.pipeline_mode<synchronous>, transform_indices = @transform_3, window_bounds = array<i64: 8, 1>}, {pipeline_mode = #tpu.pipeline_mode<synchronous>, transform_indices = @transform_4, window_bounds = array<i64: 9, 512>}, {pipeline_mode = #tpu.pipeline_mode<synchronous>, transform_indices = @transform_5, window_bounds = array<i64: 32, 512>}]} {
    %c0 = arith.constant 0 : index
    %c0_0 = arith.constant 0 : index
    %0 = vector.load %arg1[%c0, %c0_0] : memref<16x512xbf16, #tpu.memory_space<vmem>>, vector<16x512xbf16>
    %1 = arith.extf %0 : vector<16x512xbf16> to vector<16x512xf32>
    %c0_1 = arith.constant 0 : index
    %c0_2 = arith.constant 0 : index
    %2 = vector.load %arg5[%c0_1, %c0_2] : memref<9x512xf32, #tpu.memory_space<vmem>>, vector<9x512xf32>
    %cst = arith.constant 0.000000e+00 : f32
    %3 = vector.broadcast %cst : f32 to vector<16x34xf32>
    %4 = tpu.concatenate %3, %1, %3 in 1 : vector<16x34xf32>, vector<16x512xf32>, vector<16x34xf32> -> vector<16x580xf32>
    %5 = vector.extract_strided_slice %4 {offsets = [0, 0], sizes = [16, 512], strides = [1, 1]} : vector<16x580xf32> to vector<16x512xf32>
    %6 = vector.extract_strided_slice %2 {offsets = [0, 0], sizes = [1, 512], strides = [1, 1]} : vector<9x512xf32> to vector<1x512xf32>
    %7 = vector.broadcast %6 : vector<1x512xf32> to vector<16x512xf32>
    %8 = arith.mulf %5, %7 : vector<16x512xf32>
    %9 = vector.extract_strided_slice %4 {offsets = [0, 2], sizes = [16, 512], strides = [1, 1]} : vector<16x580xf32> to vector<16x512xf32>
    %10 = vector.extract_strided_slice %2 {offsets = [1, 0], sizes = [1, 512], strides = [1, 1]} : vector<9x512xf32> to vector<1x512xf32>
    %11 = vector.broadcast %10 : vector<1x512xf32> to vector<16x512xf32>
    %12 = arith.mulf %9, %11 : vector<16x512xf32>
    %13 = vector.extract_strided_slice %4 {offsets = [0, 4], sizes = [16, 512], strides = [1, 1]} : vector<16x580xf32> to vector<16x512xf32>
    %14 = vector.extract_strided_slice %2 {offsets = [2, 0], sizes = [1, 512], strides = [1, 1]} : vector<9x512xf32> to vector<1x512xf32>
    %15 = vector.broadcast %14 : vector<1x512xf32> to vector<16x512xf32>
    %16 = arith.mulf %13, %15 : vector<16x512xf32>
    %17 = vector.extract_strided_slice %4 {offsets = [0, 32], sizes = [16, 512], strides = [1, 1]} : vector<16x580xf32> to vector<16x512xf32>
    %18 = vector.extract_strided_slice %2 {offsets = [3, 0], sizes = [1, 512], strides = [1, 1]} : vector<9x512xf32> to vector<1x512xf32>
    %19 = vector.broadcast %18 : vector<1x512xf32> to vector<16x512xf32>
    %20 = arith.mulf %17, %19 : vector<16x512xf32>
    %21 = vector.extract_strided_slice %4 {offsets = [0, 34], sizes = [16, 512], strides = [1, 1]} : vector<16x580xf32> to vector<16x512xf32>
    %22 = vector.extract_strided_slice %2 {offsets = [4, 0], sizes = [1, 512], strides = [1, 1]} : vector<9x512xf32> to vector<1x512xf32>
    %23 = vector.broadcast %22 : vector<1x512xf32> to vector<16x512xf32>
    %24 = arith.mulf %21, %23 : vector<16x512xf32>
    %25 = vector.extract_strided_slice %4 {offsets = [0, 36], sizes = [16, 512], strides = [1, 1]} : vector<16x580xf32> to vector<16x512xf32>
    %26 = vector.extract_strided_slice %2 {offsets = [5, 0], sizes = [1, 512], strides = [1, 1]} : vector<9x512xf32> to vector<1x512xf32>
    %27 = vector.broadcast %26 : vector<1x512xf32> to vector<16x512xf32>
    %28 = arith.mulf %25, %27 : vector<16x512xf32>
    %29 = vector.extract_strided_slice %4 {offsets = [0, 64], sizes = [16, 512], strides = [1, 1]} : vector<16x580xf32> to vector<16x512xf32>
    %30 = vector.extract_strided_slice %2 {offsets = [6, 0], sizes = [1, 512], strides = [1, 1]} : vector<9x512xf32> to vector<1x512xf32>
    %31 = vector.broadcast %30 : vector<1x512xf32> to vector<16x512xf32>
    %32 = arith.mulf %29, %31 : vector<16x512xf32>
    %33 = vector.extract_strided_slice %4 {offsets = [0, 66], sizes = [16, 512], strides = [1, 1]} : vector<16x580xf32> to vector<16x512xf32>
    %34 = vector.extract_strided_slice %2 {offsets = [7, 0], sizes = [1, 512], strides = [1, 1]} : vector<9x512xf32> to vector<1x512xf32>
    %35 = vector.broadcast %34 : vector<1x512xf32> to vector<16x512xf32>
    %36 = arith.mulf %33, %35 : vector<16x512xf32>
    %37 = vector.extract_strided_slice %4 {offsets = [0, 68], sizes = [16, 512], strides = [1, 1]} : vector<16x580xf32> to vector<16x512xf32>
    %38 = vector.extract_strided_slice %2 {offsets = [8, 0], sizes = [1, 512], strides = [1, 1]} : vector<9x512xf32> to vector<1x512xf32>
    %39 = vector.broadcast %38 : vector<1x512xf32> to vector<16x512xf32>
    %40 = arith.mulf %37, %39 : vector<16x512xf32>
    %41 = tpu.concatenate %8, %12, %16, %20, %24, %28, %32, %36, %40 in 0 : vector<16x512xf32>, vector<16x512xf32>, vector<16x512xf32>, vector<16x512xf32>, vector<16x512xf32>, vector<16x512xf32>, vector<16x512xf32>, vector<16x512xf32>, vector<16x512xf32> -> vector<144x512xf32>
    %42 = arith.truncf %41 : vector<144x512xf32> to vector<144x512xbf16>
    %c0_3 = arith.constant 0 : index
    %c0_4 = arith.constant 0 : index
    %43 = vector.load %arg2[%c0_3, %c0_4] : memref<32x144xbf16, #tpu.memory_space<vmem>>, vector<32x144xbf16>
    %cst_5 = arith.constant dense<0.000000e+00> : vector<32x512xf32>
    %44 = tpu.matmul %43, %42, %cst_5 {dimension_numbers = #tpu.dot_dimension_numbers<[1], [0], [0], [1], [0, 0, 1, 1], [], []>} : vector<32x144xbf16>, vector<144x512xbf16>, vector<32x512xf32> -> vector<32x512xf32>
    %c0_6 = arith.constant 0 : index
    %c0_7 = arith.constant 0 : index
    %45 = vector.load %arg3[%c0_6, %c0_7] : memref<8x1xf32, #tpu.memory_space<vmem>>, vector<8x1xf32>
    %c0_8 = arith.constant 0 : index
    %c0_9 = arith.constant 0 : index
    %46 = vector.load %arg4[%c0_8, %c0_9] : memref<8x1xf32, #tpu.memory_space<vmem>>, vector<8x1xf32>
    %cst_10 = arith.constant dense<0.000000e+00> : vector<32xf32>
    %47 = vector.multi_reduction <add>, %44, %cst_10 [1] : vector<32x512xf32> to vector<32xf32>
    %48 = vector.shape_cast %47 : vector<32xf32> to vector<32x1xf32>
    %49 = arith.mulf %44, %44 : vector<32x512xf32>
    %cst_11 = arith.constant dense<0.000000e+00> : vector<32xf32>
    %50 = vector.multi_reduction <add>, %49, %cst_11 [1] : vector<32x512xf32> to vector<32xf32>
    %51 = vector.shape_cast %50 : vector<32xf32> to vector<32x1xf32>
    %52 = vector.extract_strided_slice %48 {offsets = [0, 0], sizes = [8, 1], strides = [1, 1]} : vector<32x1xf32> to vector<8x1xf32>
    %53 = vector.extract_strided_slice %48 {offsets = [8, 0], sizes = [8, 1], strides = [1, 1]} : vector<32x1xf32> to vector<8x1xf32>
    %54 = arith.addf %52, %53 : vector<8x1xf32>
    %55 = vector.extract_strided_slice %48 {offsets = [16, 0], sizes = [8, 1], strides = [1, 1]} : vector<32x1xf32> to vector<8x1xf32>
    %56 = arith.addf %54, %55 : vector<8x1xf32>
    %57 = vector.extract_strided_slice %48 {offsets = [24, 0], sizes = [8, 1], strides = [1, 1]} : vector<32x1xf32> to vector<8x1xf32>
    %58 = arith.addf %56, %57 : vector<8x1xf32>
    %59 = vector.extract_strided_slice %51 {offsets = [0, 0], sizes = [8, 1], strides = [1, 1]} : vector<32x1xf32> to vector<8x1xf32>
    %60 = vector.extract_strided_slice %51 {offsets = [8, 0], sizes = [8, 1], strides = [1, 1]} : vector<32x1xf32> to vector<8x1xf32>
    %61 = arith.addf %59, %60 : vector<8x1xf32>
    %62 = vector.extract_strided_slice %51 {offsets = [16, 0], sizes = [8, 1], strides = [1, 1]} : vector<32x1xf32> to vector<8x1xf32>
    %63 = arith.addf %61, %62 : vector<8x1xf32>
    %64 = vector.extract_strided_slice %51 {offsets = [24, 0], sizes = [8, 1], strides = [1, 1]} : vector<32x1xf32> to vector<8x1xf32>
    %65 = arith.addf %63, %64 : vector<8x1xf32>
    %cst_12 = arith.constant 2.048000e+03 : f32
    %66 = vector.broadcast %cst_12 : f32 to vector<8x1xf32>
    %67 = arith.divf %58, %66 : vector<8x1xf32>
    %cst_13 = arith.constant 2.048000e+03 : f32
    %68 = vector.broadcast %cst_13 : f32 to vector<8x1xf32>
    %69 = arith.divf %65, %68 : vector<8x1xf32>
    %70 = arith.mulf %67, %67 : vector<8x1xf32>
    %71 = arith.subf %69, %70 : vector<8x1xf32>
    %cst_14 = arith.constant 9.99999974E-6 : f32
    %72 = vector.broadcast %cst_14 : f32 to vector<8x1xf32>
    %73 = arith.addf %71, %72 : vector<8x1xf32>
    %74 = math.rsqrt %73 : vector<8x1xf32>
    %75 = arith.mulf %45, %74 : vector<8x1xf32>
    %76 = arith.mulf %67, %75 : vector<8x1xf32>
    %77 = arith.subf %46, %76 : vector<8x1xf32>
    %78 = tpu.concatenate %75, %75, %75, %75 in 0 : vector<8x1xf32>, vector<8x1xf32>, vector<8x1xf32>, vector<8x1xf32> -> vector<32x1xf32>
    %79 = tpu.concatenate %77, %77, %77, %77 in 0 : vector<8x1xf32>, vector<8x1xf32>, vector<8x1xf32>, vector<8x1xf32> -> vector<32x1xf32>
    %80 = vector.broadcast %78 : vector<32x1xf32> to vector<32x512xf32>
    %81 = arith.mulf %44, %80 : vector<32x512xf32>
    %82 = vector.broadcast %79 : vector<32x1xf32> to vector<32x512xf32>
    %83 = arith.addf %81, %82 : vector<32x512xf32>
    %cst_15 = arith.constant 0.000000e+00 : f32
    %84 = vector.broadcast %cst_15 : f32 to vector<32x512xf32>
    %85 = arith.maximumf %83, %84 : vector<32x512xf32>
    %86 = arith.truncf %85 : vector<32x512xf32> to vector<32x512xbf16>
    %c0_16 = arith.constant 0 : index
    %c0_17 = arith.constant 0 : index
    %87 = vector.load %arg6[%c0_16, %c0_17] : memref<32x512xbf16, #tpu.memory_space<vmem>>, vector<32x512xbf16>
    tpu.vector_store %arg6[%c0_16, %c0_17], %86 {strides = array<i32>} : memref<32x512xbf16, #tpu.memory_space<vmem>>, vector<32x512xbf16>,
    return
  }
  func.func @transform_0(%arg0: i32) -> (i32, i32) {
    %c0_i32 = arith.constant 0 : i32
    %c0_i32_0 = arith.constant 0 : i32
    %c0_i32_1 = arith.constant 0 : i32
    return %c0_i32, %c0_i32_0 : i32, i32
  }
  func.func @transform_1(%arg0: i32) -> (i32, i32) {
    %c0_i32 = arith.constant 0 : i32
    %c0_i32_0 = arith.constant 0 : i32
    %c0_i32_1 = arith.constant 0 : i32
    return %c0_i32, %c0_i32_0 : i32, i32
  }
  func.func @transform_2(%arg0: i32) -> (i32, i32) {
    %c0_i32 = arith.constant 0 : i32
    %c0_i32_0 = arith.constant 0 : i32
    %c0_i32_1 = arith.constant 0 : i32
    return %c0_i32, %c0_i32_0 : i32, i32
  }
  func.func @transform_3(%arg0: i32) -> (i32, i32) {
    %c0_i32 = arith.constant 0 : i32
    %c0_i32_0 = arith.constant 0 : i32
    %c0_i32_1 = arith.constant 0 : i32
    return %c0_i32, %c0_i32_0 : i32, i32
  }
  func.func @transform_4(%arg0: i32) -> (i32, i32) {
    %c0_i32 = arith.constant 0 : i32
    %c0_i32_0 = arith.constant 0 : i32
    %c0_i32_1 = arith.constant 0 : i32
    return %c0_i32, %c0_i32_0 : i32, i32
  }
  func.func @transform_5(%arg0: i32) -> (i32, i32) {
    %c0_i32 = arith.constant 0 : i32
    %c0_i32_0 = arith.constant 0 : i32
    %c0_i32_1 = arith.constant 0 : i32
    return %c0_i32, %c0_i32_0 : i32, i32
  }
}

module attributes {stable_mosaic.version = 11 : i64} {
  func.func @_tail_kernel(%arg0: i32, %arg1: memref<8x2048xbf16, #tpu.memory_space<vmem>>, %arg2: memref<12x72xbf16, #tpu.memory_space<vmem>>, %arg3: memref<9x2048xf32, #tpu.memory_space<vmem>>, %arg4: memref<3x2048xf32, #tpu.memory_space<vmem>>) attributes {dimension_semantics = [#tpu.dimension_semantics<arbitrary>], iteration_bounds = array<i64: 1>, scalar_prefetch = 0 : i64, scratch_operands = 0 : i64, tpu.core_type = #tpu.core_type<tc>, window_params = [{pipeline_mode = #tpu.pipeline_mode<synchronous>, transform_indices = @transform_0, window_bounds = array<i64: 8, 2048>}, {pipeline_mode = #tpu.pipeline_mode<synchronous>, transform_indices = @transform_1, window_bounds = array<i64: 12, 72>}, {pipeline_mode = #tpu.pipeline_mode<synchronous>, transform_indices = @transform_2, window_bounds = array<i64: 9, 2048>}, {pipeline_mode = #tpu.pipeline_mode<synchronous>, transform_indices = @transform_3, window_bounds = array<i64: 3, 2048>}]} {
    %c0 = arith.constant 0 : index
    %c0_0 = arith.constant 0 : index
    %0 = vector.load %arg1[%c0, %c0_0] : memref<8x2048xbf16, #tpu.memory_space<vmem>>, vector<8x2048xbf16>
    %1 = arith.extf %0 : vector<8x2048xbf16> to vector<8x2048xf32>
    %c0_1 = arith.constant 0 : index
    %c0_2 = arith.constant 0 : index
    %2 = vector.load %arg3[%c0_1, %c0_2] : memref<9x2048xf32, #tpu.memory_space<vmem>>, vector<9x2048xf32>
    %cst = arith.constant 0.000000e+00 : f32
    %3 = vector.broadcast %cst : f32 to vector<8x66xf32>
    %4 = tpu.concatenate %3, %1, %3 in 1 : vector<8x66xf32>, vector<8x2048xf32>, vector<8x66xf32> -> vector<8x2180xf32>
    %5 = vector.extract_strided_slice %4 {offsets = [0, 0], sizes = [8, 2048], strides = [1, 1]} : vector<8x2180xf32> to vector<8x2048xf32>
    %6 = vector.extract_strided_slice %2 {offsets = [0, 0], sizes = [1, 2048], strides = [1, 1]} : vector<9x2048xf32> to vector<1x2048xf32>
    %7 = vector.broadcast %6 : vector<1x2048xf32> to vector<8x2048xf32>
    %8 = arith.mulf %5, %7 : vector<8x2048xf32>
    %9 = vector.extract_strided_slice %4 {offsets = [0, 2], sizes = [8, 2048], strides = [1, 1]} : vector<8x2180xf32> to vector<8x2048xf32>
    %10 = vector.extract_strided_slice %2 {offsets = [1, 0], sizes = [1, 2048], strides = [1, 1]} : vector<9x2048xf32> to vector<1x2048xf32>
    %11 = vector.broadcast %10 : vector<1x2048xf32> to vector<8x2048xf32>
    %12 = arith.mulf %9, %11 : vector<8x2048xf32>
    %13 = vector.extract_strided_slice %4 {offsets = [0, 4], sizes = [8, 2048], strides = [1, 1]} : vector<8x2180xf32> to vector<8x2048xf32>
    %14 = vector.extract_strided_slice %2 {offsets = [2, 0], sizes = [1, 2048], strides = [1, 1]} : vector<9x2048xf32> to vector<1x2048xf32>
    %15 = vector.broadcast %14 : vector<1x2048xf32> to vector<8x2048xf32>
    %16 = arith.mulf %13, %15 : vector<8x2048xf32>
    %17 = vector.extract_strided_slice %4 {offsets = [0, 64], sizes = [8, 2048], strides = [1, 1]} : vector<8x2180xf32> to vector<8x2048xf32>
    %18 = vector.extract_strided_slice %2 {offsets = [3, 0], sizes = [1, 2048], strides = [1, 1]} : vector<9x2048xf32> to vector<1x2048xf32>
    %19 = vector.broadcast %18 : vector<1x2048xf32> to vector<8x2048xf32>
    %20 = arith.mulf %17, %19 : vector<8x2048xf32>
    %21 = vector.extract_strided_slice %4 {offsets = [0, 66], sizes = [8, 2048], strides = [1, 1]} : vector<8x2180xf32> to vector<8x2048xf32>
    %22 = vector.extract_strided_slice %2 {offsets = [4, 0], sizes = [1, 2048], strides = [1, 1]} : vector<9x2048xf32> to vector<1x2048xf32>
    %23 = vector.broadcast %22 : vector<1x2048xf32> to vector<8x2048xf32>
    %24 = arith.mulf %21, %23 : vector<8x2048xf32>
    %25 = vector.extract_strided_slice %4 {offsets = [0, 68], sizes = [8, 2048], strides = [1, 1]} : vector<8x2180xf32> to vector<8x2048xf32>
    %26 = vector.extract_strided_slice %2 {offsets = [5, 0], sizes = [1, 2048], strides = [1, 1]} : vector<9x2048xf32> to vector<1x2048xf32>
    %27 = vector.broadcast %26 : vector<1x2048xf32> to vector<8x2048xf32>
    %28 = arith.mulf %25, %27 : vector<8x2048xf32>
    %29 = vector.extract_strided_slice %4 {offsets = [0, 128], sizes = [8, 2048], strides = [1, 1]} : vector<8x2180xf32> to vector<8x2048xf32>
    %30 = vector.extract_strided_slice %2 {offsets = [6, 0], sizes = [1, 2048], strides = [1, 1]} : vector<9x2048xf32> to vector<1x2048xf32>
    %31 = vector.broadcast %30 : vector<1x2048xf32> to vector<8x2048xf32>
    %32 = arith.mulf %29, %31 : vector<8x2048xf32>
    %33 = vector.extract_strided_slice %4 {offsets = [0, 130], sizes = [8, 2048], strides = [1, 1]} : vector<8x2180xf32> to vector<8x2048xf32>
    %34 = vector.extract_strided_slice %2 {offsets = [7, 0], sizes = [1, 2048], strides = [1, 1]} : vector<9x2048xf32> to vector<1x2048xf32>
    %35 = vector.broadcast %34 : vector<1x2048xf32> to vector<8x2048xf32>
    %36 = arith.mulf %33, %35 : vector<8x2048xf32>
    %37 = vector.extract_strided_slice %4 {offsets = [0, 132], sizes = [8, 2048], strides = [1, 1]} : vector<8x2180xf32> to vector<8x2048xf32>
    %38 = vector.extract_strided_slice %2 {offsets = [8, 0], sizes = [1, 2048], strides = [1, 1]} : vector<9x2048xf32> to vector<1x2048xf32>
    %39 = vector.broadcast %38 : vector<1x2048xf32> to vector<8x2048xf32>
    %40 = arith.mulf %37, %39 : vector<8x2048xf32>
    %41 = tpu.concatenate %8, %12, %16, %20, %24, %28, %32, %36, %40 in 0 : vector<8x2048xf32>, vector<8x2048xf32>, vector<8x2048xf32>, vector<8x2048xf32>, vector<8x2048xf32>, vector<8x2048xf32>, vector<8x2048xf32>, vector<8x2048xf32>, vector<8x2048xf32> -> vector<72x2048xf32>
    %42 = arith.truncf %41 : vector<72x2048xf32> to vector<72x2048xbf16>
    %c0_3 = arith.constant 0 : index
    %c0_4 = arith.constant 0 : index
    %43 = vector.load %arg2[%c0_3, %c0_4] : memref<12x72xbf16, #tpu.memory_space<vmem>>, vector<12x72xbf16>
    %cst_5 = arith.constant dense<0.000000e+00> : vector<12x2048xf32>
    %44 = tpu.matmul %43, %42, %cst_5 {dimension_numbers = #tpu.dot_dimension_numbers<[1], [0], [0], [1], [0, 0, 1, 1], [], []>} : vector<12x72xbf16>, vector<72x2048xbf16>, vector<12x2048xf32> -> vector<12x2048xf32>
    %45 = math.tanh %44 : vector<12x2048xf32>
    %46 = vector.extract_strided_slice %45 {offsets = [0, 0], sizes = [3, 2048], strides = [1, 1]} : vector<12x2048xf32> to vector<3x2048xf32>
    %47 = vector.extract_strided_slice %45 {offsets = [3, 0], sizes = [3, 2048], strides = [1, 1]} : vector<12x2048xf32> to vector<3x2048xf32>
    %48 = arith.addf %46, %47 : vector<3x2048xf32>
    %49 = vector.extract_strided_slice %45 {offsets = [6, 0], sizes = [3, 2048], strides = [1, 1]} : vector<12x2048xf32> to vector<3x2048xf32>
    %50 = arith.addf %48, %49 : vector<3x2048xf32>
    %51 = vector.extract_strided_slice %45 {offsets = [9, 0], sizes = [3, 2048], strides = [1, 1]} : vector<12x2048xf32> to vector<3x2048xf32>
    %52 = arith.addf %50, %51 : vector<3x2048xf32>
    %cst_6 = arith.constant 2.500000e-01 : f32
    %53 = vector.broadcast %cst_6 : f32 to vector<3x2048xf32>
    %54 = arith.mulf %53, %52 : vector<3x2048xf32>
    %c0_7 = arith.constant 0 : index
    %c0_8 = arith.constant 0 : index
    %55 = vector.load %arg4[%c0_7, %c0_8] : memref<3x2048xf32, #tpu.memory_space<vmem>>, vector<3x2048xf32>
    tpu.vector_store %arg4[%c0_7, %c0_8], %54 {strides = array<i32>} : memref<3x2048xf32, #tpu.memory_space<vmem>>, vector<3x2048xf32>,
    return
  }
  func.func @transform_0(%arg0: i32) -> (i32, i32) {
    %c0_i32 = arith.constant 0 : i32
    %c0_i32_0 = arith.constant 0 : i32
    %c0_i32_1 = arith.constant 0 : i32
    return %c0_i32, %c0_i32_0 : i32, i32
  }
  func.func @transform_1(%arg0: i32) -> (i32, i32) {
    %c0_i32 = arith.constant 0 : i32
    %c0_i32_0 = arith.constant 0 : i32
    %c0_i32_1 = arith.constant 0 : i32
    return %c0_i32, %c0_i32_0 : i32, i32
  }
  func.func @transform_2(%arg0: i32) -> (i32, i32) {
    %c0_i32 = arith.constant 0 : i32
    %c0_i32_0 = arith.constant 0 : i32
    %c0_i32_1 = arith.constant 0 : i32
    return %c0_i32, %c0_i32_0 : i32, i32
  }
  func.func @transform_3(%arg0: i32) -> (i32, i32) {
    %c0_i32 = arith.constant 0 : i32
    %c0_i32_0 = arith.constant 0 : i32
    %c0_i32_1 = arith.constant 0 : i32
    return %c0_i32, %c0_i32_0 : i32, i32
  }
}

</mosaic_0001>

<llo_original>
// kernel: generator_forward.5
$region0: #{generator_forward.5}
  #allocation0 [shape = 'u32[]', space=smem, size = 0x4, offset = 0x4, fixed_abs, tag = 'smem constant byte address 0x4 - core index']
  #allocation1 [shape = 'u32[144,128]{1,0:T(1,128)}', space=vmem, size = 0x12000, scoped, tag = 'internal scratch']
  %s0 = inlined_call_operand.vmem [shape: bf16[32,128], index: 0, kind: input, shape index: {}]
  %s1 = inlined_call_operand.hbm [shape: bf16[64,288], index: 1, kind: input, shape index: {}]
  %s2 = inlined_call_operand.vmem [shape: f32[16,1], index: 2, kind: input, shape index: {}]
  %s3 = inlined_call_operand.vmem [shape: f32[16,1], index: 3, kind: input, shape index: {}]
  %s4 = inlined_call_operand.hbm [shape: f32[9,128], index: 4, kind: input, shape index: {}]
  %s5 = inlined_call_operand.vmem [shape: bf16[64,128], index: 5, kind: output, shape index: {}]
  %s6 = sld [smem:[#allocation0]]
  $region38: #{generator_forward.5} parent=0
    _
  %s8 = ssub.s32 1, %s6
  %s9 = scalar_select 0, %s8, %s6
  $region1: #{generator_forward.5} parent=0
    #allocation2 [shape = 'u8[49152]{0}', space=vmem, size = 0xc000, scoped, tag = 'input window, operand 1, single buffered']
    #allocation3 [shape = 's32[1]{0}', space=sflag, size = 0x4, scoped, tag = 'scoped memory for generator_forward.5']
    #allocation4 [shape = 'u8[8192]{0}', space=vmem, size = 0x2000, scoped, tag = 'input window, operand 4, single buffered']
    #allocation5 [shape = 's32[1]{0}', space=sflag, size = 0x4, scoped, tag = 'scoped memory for generator_forward.5']
    %10 = vsyncpa [#allocation3], 0
    %11 = vsyncpa [#allocation5], 0
    // Predicated region
    $region2: #{generator_forward.5} parent=1 // pred_check
      _
    $region3: #{generator_forward.5} parent=1 // pred_check_branch
      %13 = sbr.rel (0) target = $region5
    $region4: #{generator_forward.5} parent=1 // pred_region
      _
    $region5: #{generator_forward.5} parent=1 // pred_fallthru
      _
    // Predicated region
    $region6: #{generator_forward.5} parent=1 // pred_check
      _
    $region7: #{generator_forward.5} parent=1 // pred_check_branch
      %15 = sbr.rel (0) target = $region9
    $region8: #{generator_forward.5} parent=1 // pred_region
      %s17 = ssub.s32 1536, 1536
      %18 = vsyncadd [#allocation3], %s17
      %s19 = sshll.u32 [#allocation2], 4
      %s20 = int_to_ptr.vmem [resolvable:$true] %s19
      %25 = dma.hbm_to_vmem [thread:$0]  %s1, 1536, %s20, [#allocation3], 192, 192, 12
    $region9: #{generator_forward.5} parent=1 // pred_fallthru
      _
    // Predicated region
    $region10: #{generator_forward.5} parent=1 // pred_check
      _
    $region11: #{generator_forward.5} parent=1 // pred_check_branch
      %27 = sbr.rel (0) target = $region13
    $region12: #{generator_forward.5} parent=1 // pred_region
      _
    $region13: #{generator_forward.5} parent=1 // pred_fallthru
      _
    // Predicated region
    $region14: #{generator_forward.5} parent=1 // pred_check
      _
    $region15: #{generator_forward.5} parent=1 // pred_check_branch
      %29 = sbr.rel (0) target = $region17
    $region16: #{generator_forward.5} parent=1 // pred_region
      _
    $region17: #{generator_forward.5} parent=1 // pred_fallthru
      _
    // Predicated region
    $region18: #{generator_forward.5} parent=1 // pred_check
      _
    $region19: #{generator_forward.5} parent=1 // pred_check_branch
      %31 = sbr.rel (0) target = $region21
    $region20: #{generator_forward.5} parent=1 // pred_region
      %s33 = ssub.s32 256, 256
      %34 = vsyncadd [#allocation5], %s33
      %s35 = sshll.u32 [#allocation4], 4
      %s36 = int_to_ptr.vmem [resolvable:$true] %s35
      %41 = dma.hbm_to_vmem [thread:$0]  %s4, 256, %s36, [#allocation5], 128, 128, 8
    $region21: #{generator_forward.5} parent=1 // pred_fallthru
      _
    // Predicated region
    $region22: #{generator_forward.5} parent=1 // pred_check
      _
    $region23: #{generator_forward.5} parent=1 // pred_check_branch
      %43 = sbr.rel (0) target = $region25
    $region24: #{generator_forward.5} parent=1 // pred_region
      %44 = dma.done [#allocation3], 1536
    $region25: #{generator_forward.5} parent=1 // pred_fallthru
      _
    // Predicated region
    $region26: #{generator_forward.5} parent=1 // pred_check
      _
    $region27: #{generator_forward.5} parent=1 // pred_check_branch
      %46 = sbr.rel (0) target = $region29
    $region28: #{generator_forward.5} parent=1 // pred_region
      %47 = dma.done [#allocation5], 256
    $region29: #{generator_forward.5} parent=1 // pred_fallthru
      _
    %v49 = vld [vmem:[%s0] sm:$0xf]
    %v50 = vld [vmem:[%s0 + $0x4] sm:$0xf]
    %v51 = vld [vmem:[%s0 + $0x8] sm:$0xf]
    %v52 = vld [vmem:[%s0 + $0xc] sm:$0xf]
    %v53 = vunpack.c.l.bf16 %v49
    %v54 = vunpack.c.l.bf16 %v50
    %v55 = vunpack.c.l.bf16 %v51
    %v56 = vunpack.c.l.bf16 %v52
    %v57 = vld [vmem:[#allocation4] sm:$0xff]
    %v58 = vld [vmem:[#allocation4 + $0x8] sm:$0x1]
    %63 = vrot.lane.b32.xlu0 %v53, 18
    %v64 = vpop.permute.xlu0 %63
    %65 = vrot.lane.b32.xlu0 %v54, 18
    %v66 = vpop.permute.xlu0 %65
    %67 = vrot.lane.b32.xlu0 %v55, 18
    %v68 = vpop.permute.xlu0 %67
    %69 = vrot.lane.b32.xlu0 %v56, 18
    %v70 = vpop.permute.xlu0 %69
    %vm75 = vcmask 146432
    %v76 = vsel %vm75, 0.0, %v64
    %v77 = vsel %vm75, 0.0, %v66
    %v78 = vsel %vm75, 0.0, %v68
    %v79 = vsel %vm75, 0.0, %v70
    %v80 = vsel %vm75, %v64, 0.0
    %v81 = vsel %vm75, %v66, 0.0
    %v82 = vsel %vm75, %v68, 0.0
    %v83 = vsel %vm75, %v70, 0.0
    %v84 = vlaneseq
    %v85 = vshrl.u32 %v84, 7
    %v86 = vsub.s32 0, %v85
    %v87 = vrot.slane %v57, %v86
    %v88 = vmul.f32 %v76, %v87
    %v89 = vmul.f32 %v77, %v87
    %v90 = vmul.f32 %v78, %v87
    %v91 = vmul.f32 %v79, %v87
    %v92 = vlaneseq
    %v93 = vshrl.u32 %v92, 7
    %v94 = vsub.s32 1, %v93
    %v95 = vrot.slane %v57, %v94
    %97 = vrot.lane.b32.xlu0 %v95, 2
    %v98 = vpop.permute.xlu0 %97
    %v100 = vmul.f32 %v76, %v98
    %v101 = vmul.f32 %v80, %v98
    %v102 = vmul.f32 %v77, %v98
    %v103 = vmul.f32 %v81, %v98
    %v104 = vmul.f32 %v78, %v98
    %v105 = vmul.f32 %v82, %v98
    %v106 = vmul.f32 %v79, %v98
    %v107 = vmul.f32 %v83, %v98
    %v108 = vlaneseq
    %v109 = vshrl.u32 %v108, 7
    %v110 = vsub.s32 2, %v109
    %v111 = vrot.slane %v57, %v110
    %113 = vrot.lane.b32.xlu0 %v111, 4
    %v114 = vpop.permute.xlu0 %113
    %v116 = vmul.f32 %v76, %v114
    %v117 = vmul.f32 %v80, %v114
    %v118 = vmul.f32 %v77, %v114
    %v119 = vmul.f32 %v81, %v114
    %v120 = vmul.f32 %v78, %v114
    %v121 = vmul.f32 %v82, %v114
    %v122 = vmul.f32 %v79, %v114
    %v123 = vmul.f32 %v83, %v114
    %v124 = vlaneseq
    %v125 = vshrl.u32 %v124, 7
    %v126 = vsub.s32 3, %v125
    %v127 = vrot.slane %v57, %v126
    %129 = vrot.lane.b32.xlu0 %v127, 16
    %v130 = vpop.permute.xlu0 %129
    %v132 = vmul.f32 %v76, %v130
    %v133 = vmul.f32 %v80, %v130
    %v134 = vmul.f32 %v77, %v130
    %v135 = vmul.f32 %v81, %v130
    %v136 = vmul.f32 %v78, %v130
    %v137 = vmul.f32 %v82, %v130
    %v138 = vmul.f32 %v79, %v130
    %v139 = vmul.f32 %v83, %v130
    %v140 = vlaneseq
    %v141 = vshrl.u32 %v140, 7
    %v142 = vsub.s32 4, %v141
    %v143 = vrot.slane %v57, %v142
    %145 = vrot.lane.b32.xlu0 %v143, 18
    %v146 = vpop.permute.xlu0 %145
    %v148 = vmul.f32 %v76, %v146
    %v149 = vmul.f32 %v80, %v146
    %v150 = vmul.f32 %v77, %v146
    %v151 = vmul.f32 %v81, %v146
    %v152 = vmul.f32 %v78, %v146
    %v153 = vmul.f32 %v82, %v146
    %v154 = vmul.f32 %v79, %v146
    %v155 = vmul.f32 %v83, %v146
    %v156 = vlaneseq
    %v157 = vshrl.u32 %v156, 7
    %v158 = vsub.s32 5, %v157
    %v159 = vrot.slane %v57, %v158
    %161 = vrot.lane.b32.xlu0 %v159, 20
    %v162 = vpop.permute.xlu0 %161
    %v164 = vmul.f32 %v76, %v162
    %v165 = vmul.f32 %v80, %v162
    %v166 = vmul.f32 %v77, %v162
    %v167 = vmul.f32 %v81, %v162
    %v168 = vmul.f32 %v78, %v162
    %v169 = vmul.f32 %v82, %v162
    %v170 = vmul.f32 %v79, %v162
    %v171 = vmul.f32 %v83, %v162
    %v172 = vlaneseq
    %v173 = vshrl.u32 %v172, 7
    %v174 = vsub.s32 6, %v173
    %v175 = vrot.slane %v57, %v174
    %177 = vrot.lane.b32.xlu0 %v175, 32
    %v178 = vpop.permute.xlu0 %177
    %v180 = vmul.f32 %v76, %v178
    %v181 = vmul.f32 %v80, %v178
    %v182 = vmul.f32 %v77, %v178
    %v183 = vmul.f32 %v81, %v178
    %v184 = vmul.f32 %v78, %v178
    %v185 = vmul.f32 %v82, %v178
    %v186 = vmul.f32 %v79, %v178
    %v187 = vmul.f32 %v83, %v178
    %v188 = vlaneseq
    %v189 = vshrl.u32 %v188, 7
    %v190 = vsub.s32 7, %v189
    %v191 = vrot.slane %v57, %v190
    %193 = vrot.lane.b32.xlu0 %v191, 34
    %v194 = vpop.permute.xlu0 %193
    %v196 = vmul.f32 %v76, %v194
    %v197 = vmul.f32 %v80, %v194
    %v198 = vmul.f32 %v77, %v194
    %v199 = vmul.f32 %v81, %v194
    %v200 = vmul.f32 %v78, %v194
    %v201 = vmul.f32 %v82, %v194
    %v202 = vmul.f32 %v79, %v194
    %v203 = vmul.f32 %v83, %v194
    %v204 = vlaneseq
    %v205 = vshrl.u32 %v204, 7
    %v206 = vsub.s32 0, %v205
    %v207 = vrot.slane %v58, %v206
    %209 = vrot.lane.b32.xlu0 %v207, 36
    %v210 = vpop.permute.xlu0 %209
    %v212 = vmul.f32 %v76, %v210
    %v213 = vmul.f32 %v80, %v210
    %v214 = vmul.f32 %v77, %v210
    %v215 = vmul.f32 %v81, %v210
    %v216 = vmul.f32 %v78, %v210
    %v217 = vmul.f32 %v82, %v210
    %v218 = vmul.f32 %v79, %v210
    %v219 = vmul.f32 %v83, %v210
    %228 = vrot.lane.b32.xlu0 %v100, 126
    %v229 = vpop.permute.xlu0 %228
    %230 = vrot.lane.b32.xlu0 %v101, 126
    %v231 = vpop.permute.xlu0 %230
    %232 = vrot.lane.b32.xlu0 %v102, 126
    %v233 = vpop.permute.xlu0 %232
    %234 = vrot.lane.b32.xlu0 %v103, 126
    %v235 = vpop.permute.xlu0 %234
    %236 = vrot.lane.b32.xlu0 %v104, 126
    %v237 = vpop.permute.xlu0 %236
    %238 = vrot.lane.b32.xlu0 %v105, 126
    %v239 = vpop.permute.xlu0 %238
    %240 = vrot.lane.b32.xlu0 %v106, 126
    %v241 = vpop.permute.xlu0 %240
    %242 = vrot.lane.b32.xlu0 %v107, 126
    %v243 = vpop.permute.xlu0 %242
    %vm244 = vcmask 1031168
    %v245 = vsel %vm244, %v229, %v231
    %v246 = vsel %vm244, %v233, %v235
    %v247 = vsel %vm244, %v237, %v239
    %v248 = vsel %vm244, %v241, %v243
    %261 = vrot.lane.b32.xlu0 %v116, 124
    %v262 = vpop.permute.xlu0 %261
    %263 = vrot.lane.b32.xlu0 %v117, 124
    %v264 = vpop.permute.xlu0 %263
    %265 = vrot.lane.b32.xlu0 %v118, 124
    %v266 = vpop.permute.xlu0 %265
    %267 = vrot.lane.b32.xlu0 %v119, 124
    %v268 = vpop.permute.xlu0 %267
    %269 = vrot.lane.b32.xlu0 %v120, 124
    %v270 = vpop.permute.xlu0 %269
    %271 = vrot.lane.b32.xlu0 %v121, 124
    %v272 = vpop.permute.xlu0 %271
    %273 = vrot.lane.b32.xlu0 %v122, 124
    %v274 = vpop.permute.xlu0 %273
    %275 = vrot.lane.b32.xlu0 %v123, 124
    %v276 = vpop.permute.xlu0 %275
    %vm277 = vcmask 1014784
    %v278 = vsel %vm277, %v262, %v264
    %v279 = vsel %vm277, %v266, %v268
    %v280 = vsel %vm277, %v270, %v272
    %v281 = vsel %vm277, %v274, %v276
    %294 = vrot.lane.b32.xlu0 %v132, 112
    %v295 = vpop.permute.xlu0 %294
    %296 = vrot.lane.b32.xlu0 %v133, 112
    %v297 = vpop.permute.xlu0 %296
    %298 = vrot.lane.b32.xlu0 %v134, 112
    %v299 = vpop.permute.xlu0 %298
    %300 = vrot.lane.b32.xlu0 %v135, 112
    %v301 = vpop.permute.xlu0 %300
    %302 = vrot.lane.b32.xlu0 %v136, 112
    %v303 = vpop.permute.xlu0 %302
    %304 = vrot.lane.b32.xlu0 %v137, 112
    %v305 = vpop.permute.xlu0 %304
    %306 = vrot.lane.b32.xlu0 %v138, 112
    %v307 = vpop.permute.xlu0 %306
    %308 = vrot.lane.b32.xlu0 %v139, 112
    %v309 = vpop.permute.xlu0 %308
    %vm310 = vcmask 916480
    %v311 = vsel %vm310, %v295, %v297
    %v312 = vsel %vm310, %v299, %v301
    %v313 = vsel %vm310, %v303, %v305
    %v314 = vsel %vm310, %v307, %v309
    %327 = vrot.lane.b32.xlu0 %v148, 110
    %v328 = vpop.permute.xlu0 %327
    %329 = vrot.lane.b32.xlu0 %v149, 110
    %v330 = vpop.permute.xlu0 %329
    %331 = vrot.lane.b32.xlu0 %v150, 110
    %v332 = vpop.permute.xlu0 %331
    %333 = vrot.lane.b32.xlu0 %v151, 110
    %v334 = vpop.permute.xlu0 %333
    %335 = vrot.lane.b32.xlu0 %v152, 110
    %v336 = vpop.permute.xlu0 %335
    %337 = vrot.lane.b32.xlu0 %v153, 110
    %v338 = vpop.permute.xlu0 %337
    %339 = vrot.lane.b32.xlu0 %v154, 110
    %v340 = vpop.permute.xlu0 %339
    %341 = vrot.lane.b32.xlu0 %v155, 110
    %v342 = vpop.permute.xlu0 %341
    %vm343 = vcmask 900096
    %v344 = vsel %vm343, %v328, %v330
    %v345 = vsel %vm343, %v332, %v334
    %v346 = vsel %vm343, %v336, %v338
    %v347 = vsel %vm343, %v340, %v342
    %360 = vrot.lane.b32.xlu0 %v164, 108
    %v361 = vpop.permute.xlu0 %360
    %362 = vrot.lane.b32.xlu0 %v165, 108
    %v363 = vpop.permute.xlu0 %362
    %364 = vrot.lane.b32.xlu0 %v166, 108
    %v365 = vpop.permute.xlu0 %364
    %366 = vrot.lane.b32.xlu0 %v167, 108
    %v367 = vpop.permute.xlu0 %366
    %368 = vrot.lane.b32.xlu0 %v168, 108
    %v369 = vpop.permute.xlu0 %368
    %370 = vrot.lane.b32.xlu0 %v169, 108
    %v371 = vpop.permute.xlu0 %370
    %372 = vrot.lane.b32.xlu0 %v170, 108
    %v373 = vpop.permute.xlu0 %372
    %374 = vrot.lane.b32.xlu0 %v171, 108
    %v375 = vpop.permute.xlu0 %374
    %vm376 = vcmask 883712
    %v377 = vsel %vm376, %v361, %v363
    %v378 = vsel %vm376, %v365, %v367
    %v379 = vsel %vm376, %v369, %v371
    %v380 = vsel %vm376, %v373, %v375
    %393 = vrot.lane.b32.xlu0 %v180, 96
    %v394 = vpop.permute.xlu0 %393
    %395 = vrot.lane.b32.xlu0 %v181, 96
    %v396 = vpop.permute.xlu0 %395
    %397 = vrot.lane.b32.xlu0 %v182, 96
    %v398 = vpop.permute.xlu0 %397
    %399 = vrot.lane.b32.xlu0 %v183, 96
    %v400 = vpop.permute.xlu0 %399
    %401 = vrot.lane.b32.xlu0 %v184, 96
    %v402 = vpop.permute.xlu0 %401
    %403 = vrot.lane.b32.xlu0 %v185, 96
    %v404 = vpop.permute.xlu0 %403
    %405 = vrot.lane.b32.xlu0 %v186, 96
    %v406 = vpop.permute.xlu0 %405
    %407 = vrot.lane.b32.xlu0 %v187, 96
    %v408 = vpop.permute.xlu0 %407
    %vm409 = vcmask 785408
    %v410 = vsel %vm409, %v394, %v396
    %v411 = vsel %vm409, %v398, %v400
    %v412 = vsel %vm409, %v402, %v404
    %v413 = vsel %vm409, %v406, %v408
    %426 = vrot.lane.b32.xlu0 %v196, 94
    %v427 = vpop.permute.xlu0 %426
    %428 = vrot.lane.b32.xlu0 %v197, 94
    %v429 = vpop.permute.xlu0 %428
    %430 = vrot.lane.b32.xlu0 %v198, 94
    %v431 = vpop.permute.xlu0 %430
    %432 = vrot.lane.b32.xlu0 %v199, 94
    %v433 = vpop.permute.xlu0 %432
    %434 = vrot.lane.b32.xlu0 %v200, 94
    %v435 = vpop.permute.xlu0 %434
    %436 = vrot.lane.b32.xlu0 %v201, 94
    %v437 = vpop.permute.xlu0 %436
    %438 = vrot.lane.b32.xlu0 %v202, 94
    %v439 = vpop.permute.xlu0 %438
    %440 = vrot.lane.b32.xlu0 %v203, 94
    %v441 = vpop.permute.xlu0 %440
    %vm442 = vcmask 769024
    %v443 = vsel %vm442, %v427, %v429
    %v444 = vsel %vm442, %v431, %v433
    %v445 = vsel %vm442, %v435, %v437
    %v446 = vsel %vm442, %v439, %v441
    %459 = vrot.lane.b32.xlu0 %v212, 92
    %v460 = vpop.permute.xlu0 %459
    %461 = vrot.lane.b32.xlu0 %v213, 92
    %v462 = vpop.permute.xlu0 %461
    %463 = vrot.lane.b32.xlu0 %v214, 92
    %v464 = vpop.permute.xlu0 %463
    %465 = vrot.lane.b32.xlu0 %v215, 92
    %v466 = vpop.permute.xlu0 %465
    %467 = vrot.lane.b32.xlu0 %v216, 92
    %v468 = vpop.permute.xlu0 %467
    %469 = vrot.lane.b32.xlu0 %v217, 92
    %v470 = vpop.permute.xlu0 %469
    %471 = vrot.lane.b32.xlu0 %v218, 92
    %v472 = vpop.permute.xlu0 %471
    %473 = vrot.lane.b32.xlu0 %v219, 92
    %v474 = vpop.permute.xlu0 %473
    %vm475 = vcmask 752640
    %v476 = vsel %vm475, %v460, %v462
    %v477 = vsel %vm475, %v464, %v466
    %v478 = vsel %vm475, %v468, %v470
    %v479 = vsel %vm475, %v472, %v474
    %v484 = vpack.c.bf16 %v89, %v88
    %v485 = vpack.c.bf16 %v91, %v90
    %v486 = vpack.c.bf16 %v246, %v245
    %v487 = vpack.c.bf16 %v248, %v247
    %v488 = vpack.c.bf16 %v279, %v278
    %v489 = vpack.c.bf16 %v281, %v280
    %v490 = vpack.c.bf16 %v312, %v311
    %v491 = vpack.c.bf16 %v314, %v313
    %v492 = vpack.c.bf16 %v345, %v344
    %v493 = vpack.c.bf16 %v347, %v346
    %v494 = vpack.c.bf16 %v378, %v377
    %v495 = vpack.c.bf16 %v380, %v379
    %v496 = vpack.c.bf16 %v411, %v410
    %v497 = vpack.c.bf16 %v413, %v412
    %v498 = vpack.c.bf16 %v444, %v443
    %v499 = vpack.c.bf16 %v446, %v445
    %v500 = vpack.c.bf16 %v477, %v476
    %v501 = vpack.c.bf16 %v479, %v478
    %v502 = vld [vmem:[#allocation2] sm:$0xff]
    %v503 = vld [vmem:[#allocation2 + $0x8] sm:$0xf]
    %v504 = vld [vmem:[#allocation2 + $0xc] sm:$0xff]
    %v505 = vld [vmem:[#allocation2 + $0x14] sm:$0xf]
    %v506 = vld [vmem:[#allocation2 + $0x18] sm:$0xff]
    %v507 = vld [vmem:[#allocation2 + $0x20] sm:$0xf]
    %v508 = vld [vmem:[#allocation2 + $0x24] sm:$0xff]
    %v509 = vld [vmem:[#allocation2 + $0x2c] sm:$0xf]
    %v510 = vld [vmem:[#allocation2 + $0x30] sm:$0xff]
    %v511 = vld [vmem:[#allocation2 + $0x38] sm:$0xf]
    %v512 = vld [vmem:[#allocation2 + $0x3c] sm:$0xff]
    %v513 = vld [vmem:[#allocation2 + $0x44] sm:$0xf]
    %v514 = vld [vmem:[#allocation2 + $0x48] sm:$0xff]
    %v515 = vld [vmem:[#allocation2 + $0x50] sm:$0xf]
    %v516 = vld [vmem:[#allocation2 + $0x54] sm:$0xff]
    %v517 = vld [vmem:[#allocation2 + $0x5c] sm:$0xf]
    %v534 = vunpack.c.l.b16 %v502
    %v535 = vunpack.c.h.b16 %v502
    %v536 = vunpack.c.l.b16 %v503
    %v537 = vunpack.c.l.b16 %v504
    %v538 = vunpack.c.h.b16 %v504
    %v539 = vunpack.c.l.b16 %v505
    %v540 = vunpack.c.l.b16 %v506
    %v541 = vunpack.c.h.b16 %v506
    %v542 = vunpack.c.l.b16 %v507
    %v543 = vunpack.c.l.b16 %v508
    %v544 = vunpack.c.h.b16 %v508
    %v545 = vunpack.c.l.b16 %v509
    %v546 = vunpack.c.l.b16 %v510
    %v547 = vunpack.c.h.b16 %v510
    %v548 = vunpack.c.l.b16 %v511
    %v549 = vunpack.c.l.b16 %v512
    %v550 = vunpack.c.h.b16 %v512
    %v551 = vunpack.c.l.b16 %v513
    %v552 = vunpack.c.l.b16 %v514
    %v553 = vunpack.c.h.b16 %v514
    %v554 = vunpack.c.l.b16 %v515
    %v555 = vunpack.c.l.b16 %v516
    %v556 = vunpack.c.h.b16 %v516
    %v557 = vunpack.c.l.b16 %v517
    %v558 = vpack.c.b16 %v537, %v534
    %v559 = vpack.c.b16 %v538, %v535
    %v560 = vpack.c.b16 %v539, %v536
    %v561 = vpack.c.b16 %v543, %v540
    %v562 = vpack.c.b16 %v544, %v541
    %v563 = vpack.c.b16 %v545, %v542
    %v564 = vpack.c.b16 %v549, %v546
    %v565 = vpack.c.b16 %v550, %v547
    %v566 = vpack.c.b16 %v551, %v548
    %v567 = vpack.c.b16 %v555, %v552
    %v568 = vpack.c.b16 %v556, %v553
    %v569 = vpack.c.b16 %v557, %v554
    %vm578 = vcmask 261120
    %v580 = vsel %vm578, %v560, 0
    %v583 = vsel %vm578, %v563, 0
    %v586 = vsel %vm578, %v566, 0
    %v589 = vsel %vm578, %v569, 0
    %591 = vmatprep.subr.bf16.mxu0 0
    %592 = vmatpush1.bf16.msra.mxu0 %v484
    %593 = vmatprep.subr.bf16.mxu0 0
    %594 = vmatpush1.bf16.msra.mxu0 %v485
    %595 = vmatprep.subr.bf16.mxu0 0
    %596 = vmatpush1.bf16.msra.mxu0 %v486
    %597 = vmatprep.subr.bf16.mxu0 0
    %598 = vmatpush1.bf16.msra.mxu0 %v487
    %599 = vmatprep.subr.bf16.mxu0 0
    %600 = vmatpush1.bf16.msra.mxu0 %v488
    %601 = vmatprep.subr.bf16.mxu0 0
    %602 = vmatpush1.bf16.msra.mxu0 %v489
    %603 = vmatprep.subr.bf16.mxu0 0
    %604 = vmatpush1.bf16.msra.mxu0 %v490
    %605 = vmatprep.subr.bf16.mxu0 0
    %606 = vmatpush1.bf16.msra.mxu0 %v491
    %607 = vmatprep.subr.bf16.mxu0 0
    %608 = vmatpush1.bf16.msra.mxu0 %v492
    %609 = vmatprep.subr.bf16.mxu0 0
    %610 = vmatpush1.bf16.msra.mxu0 %v493
    %611 = vmatprep.subr.bf16.mxu0 0
    %612 = vmatpush1.bf16.msra.mxu0 %v494
    %613 = vmatprep.subr.bf16.mxu0 0
    %614 = vmatpush1.bf16.msra.mxu0 %v495
    %615 = vmatprep.subr.bf16.mxu0 0
    %616 = vmatpush1.bf16.msra.mxu0 %v496
    %617 = vmatprep.subr.bf16.mxu0 0
    %618 = vmatpush1.bf16.msra.mxu0 %v497
    %619 = vmatprep.subr.bf16.mxu0 0
    %620 = vmatpush1.bf16.msra.mxu0 %v498
    %621 = vmatprep.subr.bf16.mxu0 0
    %622 = vmatpush1.bf16.msra.mxu0 %v499
    %623 = vmatprep.mubr.bf16.mxu0 %v559
    %624 = vmatmul.mubr.bf16.gmra.mrb[0].mxu0 %v558
    %v625 = vpop.f32.mrb[0].mxu0
    %v626 = vadd.f32 0.0, %v625
    %v627 = vpop.f32.mrb[0].mxu0
    %v628 = vpop.f32.mrb[0].mxu0
    %v629 = vadd.f32 0.0, %v628
    %v630 = vpop.f32.mrb[0].mxu0
    %631 = vmatprep.mubr.bf16.mxu0 %v562
    %632 = vmatmul.mubr.bf16.gmra.mrb[0].mxu0 %v561
    %v633 = vpop.f32.mrb[0].mxu0
    %v634 = vadd.f32 0.0, %v633
    %v635 = vpop.f32.mrb[0].mxu0
    %v636 = vpop.f32.mrb[0].mxu0
    %v637 = vadd.f32 0.0, %v636
    %v638 = vpop.f32.mrb[0].mxu0
    %639 = vmatprep.mubr.bf16.mxu0 %v565
    %640 = vmatmul.mubr.bf16.gmra.mrb[0].mxu0 %v564
    %v641 = vpop.f32.mrb[0].mxu0
    %v642 = vadd.f32 0.0, %v641
    %v643 = vpop.f32.mrb[0].mxu0
    %v644 = vpop.f32.mrb[0].mxu0
    %v645 = vadd.f32 0.0, %v644
    %v646 = vpop.f32.mrb[0].mxu0
    %647 = vmatprep.mubr.bf16.mxu0 %v568
    %648 = vmatmul.mubr.bf16.gmra.mrb[0].mxu0 %v567
    %v649 = vpop.f32.mrb[0].mxu0
    %v650 = vadd.f32 0.0, %v649
    %v651 = vpop.f32.mrb[0].mxu0
    %v652 = vpop.f32.mrb[0].mxu0
    %v653 = vadd.f32 0.0, %v652
    %v654 = vpop.f32.mrb[0].mxu0
    %655 = vdwg.mxu0
    %656 = vmatprep.subr.bf16.mxu0 0
    %657 = vmatpush1.bf16.msra.mxu0 %v500
    %658 = vmatprep.subr.bf16.mxu0 0
    %659 = vmatpush1.bf16.msra.mxu0 %v501
    %660 = vmatprep.subr.bf16.mxu0 0
    %661 = vmatpush1.bf16.msra.mxu0 0
    %662 = vmatprep.subr.bf16.mxu0 0
    %663 = vmatpush1.bf16.msra.mxu0 0
    %664 = vmatprep.subr.bf16.mxu0 0
    %665 = vmatpush1.bf16.msra.mxu0 0
    %666 = vmatprep.subr.bf16.mxu0 0
    %667 = vmatpush1.bf16.msra.mxu0 0
    %668 = vmatprep.subr.bf16.mxu0 0
    %669 = vmatpush1.bf16.msra.mxu0 0
    %670 = vmatprep.subr.bf16.mxu0 0
    %671 = vmatpush1.bf16.msra.mxu0 0
    %672 = vmatprep.subr.bf16.mxu0 0
    %673 = vmatpush1.bf16.msra.mxu0 0
    %674 = vmatprep.subr.bf16.mxu0 0
    %675 = vmatpush1.bf16.msra.mxu0 0
    %676 = vmatprep.subr.bf16.mxu0 0
    %677 = vmatpush1.bf16.msra.mxu0 0
    %678 = vmatprep.subr.bf16.mxu0 0
    %679 = vmatpush1.bf16.msra.mxu0 0
    %680 = vmatprep.subr.bf16.mxu0 0
    %681 = vmatpush1.bf16.msra.mxu0 0
    %682 = vmatprep.subr.bf16.mxu0 0
    %683 = vmatpush1.bf16.msra.mxu0 0
    %684 = vmatprep.subr.bf16.mxu0 0
    %685 = vmatpush1.bf16.msra.mxu0 0
    %686 = vmatprep.subr.bf16.mxu0 0
    %687 = vmatpush1.bf16.msra.mxu0 0
    %688 = vmatprep.mubr.bf16.mxu0 0
    %689 = vmatmul.mubr.bf16.gmra.mrb[0].mxu0 %v580
    %v690 = vpop.f32.mrb[0].mxu0
    %v691 = vadd.f32 %v626, %v690
    %v692 = vpop.f32.mrb[0].mxu0
    %v693 = vpop.f32.mrb[0].mxu0
    %v694 = vadd.f32 %v629, %v693
    %v695 = vpop.f32.mrb[0].mxu0
    %696 = vmatprep.mubr.bf16.mxu0 0
    %697 = vmatmul.mubr.bf16.gmra.mrb[0].mxu0 %v583
    %v698 = vpop.f32.mrb[0].mxu0
    %v699 = vadd.f32 %v634, %v698
    %v700 = vpop.f32.mrb[0].mxu0
    %v701 = vpop.f32.mrb[0].mxu0
    %v702 = vadd.f32 %v637, %v701
    %v703 = vpop.f32.mrb[0].mxu0
    %704 = vmatprep.mubr.bf16.mxu0 0
    %705 = vmatmul.mubr.bf16.gmra.mrb[0].mxu0 %v586
    %v706 = vpop.f32.mrb[0].mxu0
    %v707 = vadd.f32 %v642, %v706
    %v708 = vpop.f32.mrb[0].mxu0
    %v709 = vpop.f32.mrb[0].mxu0
    %v710 = vadd.f32 %v645, %v709
    %v711 = vpop.f32.mrb[0].mxu0
    %712 = vmatprep.mubr.bf16.mxu0 0
    %713 = vmatmul.mubr.bf16.gmra.mrb[0].mxu0 %v589
    %v714 = vpop.f32.mrb[0].mxu0
    %v715 = vadd.f32 %v650, %v714
    %v716 = vpop.f32.mrb[0].mxu0
    %v717 = vpop.f32.mrb[0].mxu0
    %v718 = vadd.f32 %v653, %v717
    %v719 = vpop.f32.mrb[0].mxu0
    %720 = vdwg.mxu0
    %v721 = vld [vmem:[%s2] sm:$0xff]
    %v722 = vld [vmem:[%s2 + $0x8] sm:$0xff]
    %v723 = vld [vmem:[%s3] sm:$0xff]
    %v724 = vld [vmem:[%s3 + $0x8] sm:$0xff]
    %725 = vadd.xlane.f32.xlu0 %v691
    %v726 = vpop.xlane.xlu0 %725
    %727 = vadd.xlane.f32.xlu0 %v694
    %v728 = vpop.xlane.xlu0 %727
    %729 = vadd.xlane.f32.xlu0 %v699
    %v730 = vpop.xlane.xlu0 %729
    %731 = vadd.xlane.f32.xlu0 %v702
    %v732 = vpop.xlane.xlu0 %731
    %733 = vadd.xlane.f32.xlu0 %v707
    %v734 = vpop.xlane.xlu0 %733
    %735 = vadd.xlane.f32.xlu0 %v710
    %v736 = vpop.xlane.xlu0 %735
    %737 = vadd.xlane.f32.xlu0 %v715
    %v738 = vpop.xlane.xlu0 %737
    %739 = vadd.xlane.f32.xlu0 %v718
    %v740 = vpop.xlane.xlu0 %739
    %v741 = vmul.f32 %v691, %v691
    %v742 = vmul.f32 %v694, %v694
    %v743 = vmul.f32 %v699, %v699
    %v744 = vmul.f32 %v702, %v702
    %v745 = vmul.f32 %v707, %v707
    %v746 = vmul.f32 %v710, %v710
    %v747 = vmul.f32 %v715, %v715
    %v748 = vmul.f32 %v718, %v718
    %749 = vadd.xlane.f32.xlu0 %v741
    %v750 = vpop.xlane.xlu0 %749
    %751 = vadd.xlane.f32.xlu0 %v742
    %v752 = vpop.xlane.xlu0 %751
    %753 = vadd.xlane.f32.xlu0 %v743
    %v754 = vpop.xlane.xlu0 %753
    %755 = vadd.xlane.f32.xlu0 %v744
    %v756 = vpop.xlane.xlu0 %755
    %757 = vadd.xlane.f32.xlu0 %v745
    %v758 = vpop.xlane.xlu0 %757
    %759 = vadd.xlane.f32.xlu0 %v746
    %v760 = vpop.xlane.xlu0 %759
    %761 = vadd.xlane.f32.xlu0 %v747
    %v762 = vpop.xlane.xlu0 %761
    %763 = vadd.xlane.f32.xlu0 %v748
    %v764 = vpop.xlane.xlu0 %763
    %v765 = vadd.f32 %v726, %v730
    %v766 = vadd.f32 %v728, %v732
    %v767 = vadd.f32 %v765, %v734
    %v768 = vadd.f32 %v766, %v736
    %v769 = vadd.f32 %v767, %v738
    %v770 = vadd.f32 %v768, %v740
    %v771 = vadd.f32 %v750, %v754
    %v772 = vadd.f32 %v752, %v756
    %v773 = vadd.f32 %v771, %v758
    %v774 = vadd.f32 %v772, %v760
    %v775 = vadd.f32 %v773, %v762
    %v776 = vadd.f32 %v774, %v764
    %v777 = vrcp.pop 512.0
    %v778 = vmul.f32 %v769, %v777
    %v779 = vmul.f32 %v770, %v777
    %v780 = vmul.f32 %v775, %v777
    %v781 = vmul.f32 %v776, %v777
    %v782 = vmul.f32 %v778, %v778
    %v783 = vmul.f32 %v779, %v779
    %v784 = vsub.f32 %v780, %v782
    %v785 = vsub.f32 %v781, %v783
    %v786 = vadd.f32 %v784, 1e-05
    %v787 = vadd.f32 %v785, 1e-05
    %v788 = vrsqrt.pop %v786
    %v789 = vrsqrt.pop %v787
    %v790 = vmul.f32 %v721, %v788
    %v791 = vmul.f32 %v722, %v789
    %v792 = vmul.f32 %v778, %v790
    %v793 = vmul.f32 %v779, %v791
    %v794 = vsub.f32 %v723, %v792
    %v795 = vsub.f32 %v724, %v793
    %797 = vset.pattern.permute.xlu0 0
    %798 = vperm.xlu0 %797, %v790
    %v799 = vpop.permute.xlu0 %798
    %802 = vset.pattern.permute.xlu0 0
    %803 = vperm.xlu0 %802, %v791
    %v804 = vpop.permute.xlu0 %803
    %v806 = vmul.f32 %v691, %v799
    %v807 = vmul.f32 %v694, %v804
    %v808 = vmul.f32 %v699, %v799
    %v809 = vmul.f32 %v702, %v804
    %v810 = vmul.f32 %v707, %v799
    %v811 = vmul.f32 %v710, %v804
    %v812 = vmul.f32 %v715, %v799
    %v813 = vmul.f32 %v718, %v804
    %815 = vset.pattern.permute.xlu0 0
    %816 = vperm.xlu0 %815, %v794
    %v817 = vpop.permute.xlu0 %816
    %820 = vset.pattern.permute.xlu0 0
    %821 = vperm.xlu0 %820, %v795
    %v822 = vpop.permute.xlu0 %821
    %v824 = vadd.f32 %v806, %v817
    %v825 = vadd.f32 %v807, %v822
    %v826 = vadd.f32 %v808, %v817
    %v827 = vadd.f32 %v809, %v822
    %v828 = vadd.f32 %v810, %v817
    %v829 = vadd.f32 %v811, %v822
    %v830 = vadd.f32 %v812, %v817
    %v831 = vadd.f32 %v813, %v822
    %v832 = vmax.f32 %v824, 0.0
    %v833 = vmax.f32 %v825, 0.0
    %v834 = vmax.f32 %v826, 0.0
    %v835 = vmax.f32 %v827, 0.0
    %v836 = vmax.f32 %v828, 0.0
    %v837 = vmax.f32 %v829, 0.0
    %v838 = vmax.f32 %v830, 0.0
    %v839 = vmax.f32 %v831, 0.0
    %v840 = vpack.c.bf16 %v833, %v832
    %v841 = vpack.c.bf16 %v835, %v834
    %v842 = vpack.c.bf16 %v837, %v836
    %v843 = vpack.c.bf16 %v839, %v838
    %v848 = vunpack.c.l.b16 %v840
    %v849 = vunpack.c.h.b16 %v840
    %v850 = vunpack.c.l.b16 %v841
    %v851 = vunpack.c.h.b16 %v841
    %v852 = vunpack.c.l.b16 %v842
    %v853 = vunpack.c.h.b16 %v842
    %v854 = vunpack.c.l.b16 %v843
    %v855 = vunpack.c.h.b16 %v843
    %v856 = vpack.c.b16 %v848, %v848
    %v857 = vpack.c.b16 %v849, %v849
    %v858 = vpack.c.b16 %v850, %v850
    %v859 = vpack.c.b16 %v851, %v851
    %v860 = vpack.c.b16 %v852, %v852
    %v861 = vpack.c.b16 %v853, %v853
    %v862 = vpack.c.b16 %v854, %v854
    %v863 = vpack.c.b16 %v855, %v855
    %872 = vst [vmem:[%s5] sm:$0xf] %v856
    %873 = vst [vmem:[%s5 + $0x4] sm:$0xf] %v857
    %874 = vst [vmem:[%s5 + $0x8] sm:$0xf] %v858
    %875 = vst [vmem:[%s5 + $0xc] sm:$0xf] %v859
    %876 = vst [vmem:[%s5 + $0x10] sm:$0xf] %v860
    %877 = vst [vmem:[%s5 + $0x14] sm:$0xf] %v861
    %878 = vst [vmem:[%s5 + $0x18] sm:$0xf] %v862
    %879 = vst [vmem:[%s5 + $0x1c] sm:$0xf] %v863
    // Predicated region
    $region30: #{generator_forward.5} parent=1 // pred_check
      _
    $region31: #{generator_forward.5} parent=1 // pred_check_branch
      %881 = sbr.rel (0) target = $region33
    $region32: #{generator_forward.5} parent=1 // pred_region
      _
    $region33: #{generator_forward.5} parent=1 // pred_fallthru
      _
    // Predicated region
    $region34: #{generator_forward.5} parent=1 // pred_check
      _
    $region35: #{generator_forward.5} parent=1 // pred_check_branch
      %883 = sbr.rel (0) target = $region37
    $region36: #{generator_forward.5} parent=1 // pred_region
      _
    $region37: #{generator_forward.5} parent=1 // pred_fallthru
      _
    %884 = vsyncpa [#allocation3], 1
    %885 = vsyncpa [#allocation5], 1

// kernel: generator_forward.4
$region0: #{generator_forward.4}
  #allocation0 [shape = 'u32[]', space=smem, size = 0x4, offset = 0x4, fixed_abs, tag = 'smem constant byte address 0x4 - core index']
  #allocation1 [shape = 'u32[144,128]{1,0:T(1,128)}', space=vmem, size = 0x12000, scoped, tag = 'internal scratch']
  %s0 = inlined_call_operand.vmem [shape: bf16[256,32], index: 0, kind: input, shape index: {}]
  %s1 = inlined_call_operand.hbm [shape: bf16[64,256], index: 1, kind: input, shape index: {}]
  %s2 = inlined_call_operand.vmem [shape: f32[64,1], index: 2, kind: input, shape index: {}]
  %s3 = inlined_call_operand.vmem [shape: f32[64,1], index: 3, kind: input, shape index: {}]
  %s4 = inlined_call_operand.vmem [shape: bf16[128,576], index: 4, kind: input, shape index: {}]
  %s5 = inlined_call_operand.vmem [shape: f32[32,1], index: 5, kind: input, shape index: {}]
  %s6 = inlined_call_operand.vmem [shape: f32[32,1], index: 6, kind: input, shape index: {}]
  %s7 = inlined_call_operand.hbm [shape: f32[9,32], index: 7, kind: input, shape index: {}]
  %s8 = inlined_call_operand.vmem [shape: bf16[128,32], index: 8, kind: output, shape index: {}]
  %s9 = sld [smem:[#allocation0]]
  $region50: #{generator_forward.4} parent=0
    _
  %s11 = ssub.s32 1, %s9
  %s12 = scalar_select 0, %s11, %s9
  $region1: #{generator_forward.4} parent=0
    #allocation2 [shape = 'u8[32768]{0}', space=vmem, size = 0x8000, scoped, tag = 'input window, operand 1, single buffered']
    #allocation3 [shape = 's32[1]{0}', space=sflag, size = 0x4, scoped, tag = 'scoped memory for generator_forward.4']
    #allocation4 [shape = 'u8[8192]{0}', space=vmem, size = 0x2000, scoped, tag = 'input window, operand 7, single buffered']
    #allocation5 [shape = 's32[1]{0}', space=sflag, size = 0x4, scoped, tag = 'scoped memory for generator_forward.4']
    %13 = vsyncpa [#allocation3], 0
    %14 = vsyncpa [#allocation5], 0
    // Predicated region
    $region2: #{generator_forward.4} parent=1 // pred_check
      _
    $region3: #{generator_forward.4} parent=1 // pred_check_branch
      %16 = sbr.rel (0) target = $region5
    $region4: #{generator_forward.4} parent=1 // pred_region
      _
    $region5: #{generator_forward.4} parent=1 // pred_fallthru
      _
    // Predicated region
    $region6: #{generator_forward.4} parent=1 // pred_check
      _
    $region7: #{generator_forward.4} parent=1 // pred_check_branch
      %18 = sbr.rel (0) target = $region9
    $region8: #{generator_forward.4} parent=1 // pred_region
      %s20 = ssub.s32 1024, 1024
      %21 = vsyncadd [#allocation3], %s20
      %s22 = sshll.u32 [#allocation2], 4
      %s23 = int_to_ptr.vmem [resolvable:$true] %s22
      %28 = dma.hbm_to_vmem [thread:$0]  %s1, 1024, %s23, [#allocation3], 128, 128, 8
    $region9: #{generator_forward.4} parent=1 // pred_fallthru
      _
    // Predicated region
    $region10: #{generator_forward.4} parent=1 // pred_check
      _
    $region11: #{generator_forward.4} parent=1 // pred_check_branch
      %30 = sbr.rel (0) target = $region13
    $region12: #{generator_forward.4} parent=1 // pred_region
      _
    $region13: #{generator_forward.4} parent=1 // pred_fallthru
      _
    // Predicated region
    $region14: #{generator_forward.4} parent=1 // pred_check
      _
    $region15: #{generator_forward.4} parent=1 // pred_check_branch
      %32 = sbr.rel (0) target = $region17
    $region16: #{generator_forward.4} parent=1 // pred_region
      _
    $region17: #{generator_forward.4} parent=1 // pred_fallthru
      _
    // Predicated region
    $region18: #{generator_forward.4} parent=1 // pred_check
      _
    $region19: #{generator_forward.4} parent=1 // pred_check_branch
      %34 = sbr.rel (0) target = $region21
    $region20: #{generator_forward.4} parent=1 // pred_region
      _
    $region21: #{generator_forward.4} parent=1 // pred_fallthru
      _
    // Predicated region
    $region22: #{generator_forward.4} parent=1 // pred_check
      _
    $region23: #{generator_forward.4} parent=1 // pred_check_branch
      %36 = sbr.rel (0) target = $region25
    $region24: #{generator_forward.4} parent=1 // pred_region
      _
    $region25: #{generator_forward.4} parent=1 // pred_fallthru
      _
    // Predicated region
    $region26: #{generator_forward.4} parent=1 // pred_check
      _
    $region27: #{generator_forward.4} parent=1 // pred_check_branch
      %38 = sbr.rel (0) target = $region29
    $region28: #{generator_forward.4} parent=1 // pred_region
      _
    $region29: #{generator_forward.4} parent=1 // pred_fallthru
      _
    // Predicated region
    $region30: #{generator_forward.4} parent=1 // pred_check
      _
    $region31: #{generator_forward.4} parent=1 // pred_check_branch
      %40 = sbr.rel (0) target = $region33
    $region32: #{generator_forward.4} parent=1 // pred_region
      %s42 = ssub.s32 256, 256
      %43 = vsyncadd [#allocation5], %s42
      %s44 = sshll.u32 [#allocation4], 4
      %s45 = int_to_ptr.vmem [resolvable:$true] %s44
      %50 = dma.hbm_to_vmem [thread:$0]  %s7, 256, %s45, [#allocation5], 128, 128, 8
    $region33: #{generator_forward.4} parent=1 // pred_fallthru
      _
    // Predicated region
    $region34: #{generator_forward.4} parent=1 // pred_check
      _
    $region35: #{generator_forward.4} parent=1 // pred_check_branch
      %52 = sbr.rel (0) target = $region37
    $region36: #{generator_forward.4} parent=1 // pred_region
      %53 = dma.done [#allocation3], 1024
    $region37: #{generator_forward.4} parent=1 // pred_fallthru
      _
    // Predicated region
    $region38: #{generator_forward.4} parent=1 // pred_check
      _
    $region39: #{generator_forward.4} parent=1 // pred_check_branch
      %55 = sbr.rel (0) target = $region41
    $region40: #{generator_forward.4} parent=1 // pred_region
      %56 = dma.done [#allocation5], 256
    $region41: #{generator_forward.4} parent=1 // pred_fallthru
      _
    %v58 = vld [vmem:[#allocation2] sm:$0xff]
    %v59 = vld [vmem:[#allocation2 + $0x8] sm:$0xff]
    %v60 = vld [vmem:[#allocation2 + $0x10] sm:$0xff]
    %v61 = vld [vmem:[#allocation2 + $0x18] sm:$0xff]
    %v62 = vld [vmem:[#allocation2 + $0x20] sm:$0xff]
    %v63 = vld [vmem:[#allocation2 + $0x28] sm:$0xff]
    %v64 = vld [vmem:[#allocation2 + $0x30] sm:$0xff]
    %v65 = vld [vmem:[#allocation2 + $0x38] sm:$0xff]
    %v66 = vld [vmem:[%s0] sm:$0xf]
    %v67 = vld [vmem:[%s0 + $0x4] sm:$0xf]
    %v68 = vld [vmem:[%s0 + $0x8] sm:$0xf]
    %v69 = vld [vmem:[%s0 + $0xc] sm:$0xf]
    %v70 = vld [vmem:[%s0 + $0x10] sm:$0xf]
    %v71 = vld [vmem:[%s0 + $0x14] sm:$0xf]
    %v72 = vld [vmem:[%s0 + $0x18] sm:$0xf]
    %v73 = vld [vmem:[%s0 + $0x1c] sm:$0xf]
    %v74 = vld [vmem:[%s0 + $0x20] sm:$0xf]
    %v75 = vld [vmem:[%s0 + $0x24] sm:$0xf]
    %v76 = vld [vmem:[%s0 + $0x28] sm:$0xf]
    %v77 = vld [vmem:[%s0 + $0x2c] sm:$0xf]
    %v78 = vld [vmem:[%s0 + $0x30] sm:$0xf]
    %v79 = vld [vmem:[%s0 + $0x34] sm:$0xf]
    %v80 = vld [vmem:[%s0 + $0x38] sm:$0xf]
    %v81 = vld [vmem:[%s0 + $0x3c] sm:$0xf]
    %v82 = vld [vmem:[%s0 + $0x40] sm:$0xf]
    %v83 = vld [vmem:[%s0 + $0x44] sm:$0xf]
    %v84 = vld [vmem:[%s0 + $0x48] sm:$0xf]
    %v85 = vld [vmem:[%s0 + $0x4c] sm:$0xf]
    %v86 = vld [vmem:[%s0 + $0x50] sm:$0xf]
    %v87 = vld [vmem:[%s0 + $0x54] sm:$0xf]
    %v88 = vld [vmem:[%s0 + $0x58] sm:$0xf]
    %v89 = vld [vmem:[%s0 + $0x5c] sm:$0xf]
    %v90 = vld [vmem:[%s0 + $0x60] sm:$0xf]
    %v91 = vld [vmem:[%s0 + $0x64] sm:$0xf]
    %v92 = vld [vmem:[%s0 + $0x68] sm:$0xf]
    %v93 = vld [vmem:[%s0 + $0x6c] sm:$0xf]
    %v94 = vld [vmem:[%s0 + $0x70] sm:$0xf]
    %v95 = vld [vmem:[%s0 + $0x74] sm:$0xf]
    %v96 = vld [vmem:[%s0 + $0x78] sm:$0xf]
    %v97 = vld [vmem:[%s0 + $0x7c] sm:$0xf]
    %v106 = vunpack.c.l.b16 %v58
    %v107 = vunpack.c.h.b16 %v58
    %v108 = vunpack.c.l.b16 %v59
    %v109 = vunpack.c.h.b16 %v59
    %v110 = vunpack.c.l.b16 %v60
    %v111 = vunpack.c.h.b16 %v60
    %v112 = vunpack.c.l.b16 %v61
    %v113 = vunpack.c.h.b16 %v61
    %v114 = vunpack.c.l.b16 %v62
    %v115 = vunpack.c.h.b16 %v62
    %v116 = vunpack.c.l.b16 %v63
    %v117 = vunpack.c.h.b16 %v63
    %v118 = vunpack.c.l.b16 %v64
    %v119 = vunpack.c.h.b16 %v64
    %v120 = vunpack.c.l.b16 %v65
    %v121 = vunpack.c.h.b16 %v65
    %v122 = vpack.c.b16 %v108, %v106
    %v123 = vpack.c.b16 %v109, %v107
    %v124 = vpack.c.b16 %v112, %v110
    %v125 = vpack.c.b16 %v113, %v111
    %v126 = vpack.c.b16 %v116, %v114
    %v127 = vpack.c.b16 %v117, %v115
    %v128 = vpack.c.b16 %v120, %v118
    %v129 = vpack.c.b16 %v121, %v119
    %v170 = vunpack.c.l.b16 %v66
    %v171 = vunpack.c.l.b16 %v67
    %v172 = vunpack.c.l.b16 %v68
    %v173 = vunpack.c.l.b16 %v69
    %v174 = vunpack.c.l.b16 %v70
    %v175 = vunpack.c.l.b16 %v71
    %v176 = vunpack.c.l.b16 %v72
    %v177 = vunpack.c.l.b16 %v73
    %v178 = vunpack.c.l.b16 %v74
    %v179 = vunpack.c.l.b16 %v75
    %v180 = vunpack.c.l.b16 %v76
    %v181 = vunpack.c.l.b16 %v77
    %v182 = vunpack.c.l.b16 %v78
    %v183 = vunpack.c.l.b16 %v79
    %v184 = vunpack.c.l.b16 %v80
    %v185 = vunpack.c.l.b16 %v81
    %v186 = vunpack.c.l.b16 %v82
    %v187 = vunpack.c.l.b16 %v83
    %v188 = vunpack.c.l.b16 %v84
    %v189 = vunpack.c.l.b16 %v85
    %v190 = vunpack.c.l.b16 %v86
    %v191 = vunpack.c.l.b16 %v87
    %v192 = vunpack.c.l.b16 %v88
    %v193 = vunpack.c.l.b16 %v89
    %v194 = vunpack.c.l.b16 %v90
    %v195 = vunpack.c.l.b16 %v91
    %v196 = vunpack.c.l.b16 %v92
    %v197 = vunpack.c.l.b16 %v93
    %v198 = vunpack.c.l.b16 %v94
    %v199 = vunpack.c.l.b16 %v95
    %v200 = vunpack.c.l.b16 %v96
    %v201 = vunpack.c.l.b16 %v97
    %v202 = vpack.c.b16 %v171, %v170
    %v203 = vpack.c.b16 %v173, %v172
    %v204 = vpack.c.b16 %v175, %v174
    %v205 = vpack.c.b16 %v177, %v176
    %v206 = vpack.c.b16 %v179, %v178
    %v207 = vpack.c.b16 %v181, %v180
    %v208 = vpack.c.b16 %v183, %v182
    %v209 = vpack.c.b16 %v185, %v184
    %v210 = vpack.c.b16 %v187, %v186
    %v211 = vpack.c.b16 %v189, %v188
    %v212 = vpack.c.b16 %v191, %v190
    %v213 = vpack.c.b16 %v193, %v192
    %v214 = vpack.c.b16 %v195, %v194
    %v215 = vpack.c.b16 %v197, %v196
    %v216 = vpack.c.b16 %v199, %v198
    %v217 = vpack.c.b16 %v201, %v200
    %234 = vmatprep.subr.bf16.mxu0 0
    %235 = vmatpush1.bf16.msra.mxu0 %v202
    %236 = vmatprep.subr.bf16.mxu0 0
    %237 = vmatpush1.bf16.msra.mxu0 %v203
    %238 = vmatprep.subr.bf16.mxu0 0
    %239 = vmatpush1.bf16.msra.mxu0 %v204
    %240 = vmatprep.subr.bf16.mxu0 0
    %241 = vmatpush1.bf16.msra.mxu0 %v205
    %242 = vmatprep.subr.bf16.mxu0 0
    %243 = vmatpush1.bf16.msra.mxu0 %v206
    %244 = vmatprep.subr.bf16.mxu0 0
    %245 = vmatpush1.bf16.msra.mxu0 %v207
    %246 = vmatprep.subr.bf16.mxu0 0
    %247 = vmatpush1.bf16.msra.mxu0 %v208
    %248 = vmatprep.subr.bf16.mxu0 0
    %249 = vmatpush1.bf16.msra.mxu0 %v209
    %250 = vmatprep.subr.bf16.mxu0 0
    %251 = vmatpush1.bf16.msra.mxu0 %v210
    %252 = vmatprep.subr.bf16.mxu0 0
    %253 = vmatpush1.bf16.msra.mxu0 %v211
    %254 = vmatprep.subr.bf16.mxu0 0
    %255 = vmatpush1.bf16.msra.mxu0 %v212
    %256 = vmatprep.subr.bf16.mxu0 0
    %257 = vmatpush1.bf16.msra.mxu0 %v213
    %258 = vmatprep.subr.bf16.mxu0 0
    %259 = vmatpush1.bf16.msra.mxu0 %v214
    %260 = vmatprep.subr.bf16.mxu0 0
    %261 = vmatpush1.bf16.msra.mxu0 %v215
    %262 = vmatprep.subr.bf16.mxu0 0
    %263 = vmatpush1.bf16.msra.mxu0 %v216
    %264 = vmatprep.subr.bf16.mxu0 0
    %265 = vmatpush1.bf16.msra.mxu0 %v217
    %266 = vmatprep.mubr.bf16.mxu0 %v123
    %267 = vmatmul.mubr.bf16.gmra.mrb[0].mxu0 %v122
    %v268 = vpop.f32.mrb[0].mxu0
    %v269 = vadd.f32 0.0, %v268
    %v270 = vpop.f32.mrb[0].mxu0
    %v271 = vpop.f32.mrb[0].mxu0
    %v272 = vadd.f32 0.0, %v271
    %v273 = vpop.f32.mrb[0].mxu0
    %274 = vmatprep.mubr.bf16.mxu0 %v125
    %275 = vmatmul.mubr.bf16.gmra.mrb[0].mxu0 %v124
    %v276 = vpop.f32.mrb[0].mxu0
    %v277 = vadd.f32 0.0, %v276
    %v278 = vpop.f32.mrb[0].mxu0
    %v279 = vpop.f32.mrb[0].mxu0
    %v280 = vadd.f32 0.0, %v279
    %v281 = vpop.f32.mrb[0].mxu0
    %282 = vmatprep.mubr.bf16.mxu0 %v127
    %283 = vmatmul.mubr.bf16.gmra.mrb[0].mxu0 %v126
    %v284 = vpop.f32.mrb[0].mxu0
    %v285 = vadd.f32 0.0, %v284
    %v286 = vpop.f32.mrb[0].mxu0
    %v287 = vpop.f32.mrb[0].mxu0
    %v288 = vadd.f32 0.0, %v287
    %v289 = vpop.f32.mrb[0].mxu0
    %290 = vmatprep.mubr.bf16.mxu0 %v129
    %291 = vmatmul.mubr.bf16.gmra.mrb[0].mxu0 %v128
    %v292 = vpop.f32.mrb[0].mxu0
    %v293 = vadd.f32 0.0, %v292
    %v294 = vpop.f32.mrb[0].mxu0
    %v295 = vpop.f32.mrb[0].mxu0
    %v296 = vadd.f32 0.0, %v295
    %v297 = vpop.f32.mrb[0].mxu0
    %298 = vdwg.mxu0
    %vm299 = vcmask 261120
    %v300 = vsel %vm299, %v269, 0.0
    %301 = vadd.xlane.f32.xlu0 %v300
    %v302 = vpop.xlane.xlu0 %301
    %v303 = vsel %vm299, %v272, 0.0
    %304 = vadd.xlane.f32.xlu0 %v303
    %v305 = vpop.xlane.xlu0 %304
    %v306 = vsel %vm299, %v277, 0.0
    %307 = vadd.xlane.f32.xlu0 %v306
    %v308 = vpop.xlane.xlu0 %307
    %v309 = vsel %vm299, %v280, 0.0
    %310 = vadd.xlane.f32.xlu0 %v309
    %v311 = vpop.xlane.xlu0 %310
    %v312 = vsel %vm299, %v285, 0.0
    %313 = vadd.xlane.f32.xlu0 %v312
    %v314 = vpop.xlane.xlu0 %313
    %v315 = vsel %vm299, %v288, 0.0
    %316 = vadd.xlane.f32.xlu0 %v315
    %v317 = vpop.xlane.xlu0 %316
    %v318 = vsel %vm299, %v293, 0.0
    %319 = vadd.xlane.f32.xlu0 %v318
    %v320 = vpop.xlane.xlu0 %319
    %v321 = vsel %vm299, %v296, 0.0
    %322 = vadd.xlane.f32.xlu0 %v321
    %v323 = vpop.xlane.xlu0 %322
    %v324 = vrcp.pop 32.0
    %v325 = vmul.f32 %v302, %v324
    %v326 = vmul.f32 %v305, %v324
    %v327 = vmul.f32 %v308, %v324
    %v328 = vmul.f32 %v311, %v324
    %v329 = vmul.f32 %v314, %v324
    %v330 = vmul.f32 %v317, %v324
    %v331 = vmul.f32 %v320, %v324
    %v332 = vmul.f32 %v323, %v324
    %v333 = vmul.f32 %v269, %v269
    %v334 = vmul.f32 %v272, %v272
    %v335 = vmul.f32 %v277, %v277
    %v336 = vmul.f32 %v280, %v280
    %v337 = vmul.f32 %v285, %v285
    %v338 = vmul.f32 %v288, %v288
    %v339 = vmul.f32 %v293, %v293
    %v340 = vmul.f32 %v296, %v296
    %v341 = vsel %vm299, %v333, 0.0
    %342 = vadd.xlane.f32.xlu0 %v341
    %v343 = vpop.xlane.xlu0 %342
    %v344 = vsel %vm299, %v334, 0.0
    %345 = vadd.xlane.f32.xlu0 %v344
    %v346 = vpop.xlane.xlu0 %345
    %v347 = vsel %vm299, %v335, 0.0
    %348 = vadd.xlane.f32.xlu0 %v347
    %v349 = vpop.xlane.xlu0 %348
    %v350 = vsel %vm299, %v336, 0.0
    %351 = vadd.xlane.f32.xlu0 %v350
    %v352 = vpop.xlane.xlu0 %351
    %v353 = vsel %vm299, %v337, 0.0
    %354 = vadd.xlane.f32.xlu0 %v353
    %v355 = vpop.xlane.xlu0 %354
    %v356 = vsel %vm299, %v338, 0.0
    %357 = vadd.xlane.f32.xlu0 %v356
    %v358 = vpop.xlane.xlu0 %357
    %v359 = vsel %vm299, %v339, 0.0
    %360 = vadd.xlane.f32.xlu0 %v359
    %v361 = vpop.xlane.xlu0 %360
    %v362 = vsel %vm299, %v340, 0.0
    %363 = vadd.xlane.f32.xlu0 %v362
    %v364 = vpop.xlane.xlu0 %363
    %v365 = vmul.f32 %v343, %v324
    %v366 = vmul.f32 %v346, %v324
    %v367 = vmul.f32 %v349, %v324
    %v368 = vmul.f32 %v352, %v324
    %v369 = vmul.f32 %v355, %v324
    %v370 = vmul.f32 %v358, %v324
    %v371 = vmul.f32 %v361, %v324
    %v372 = vmul.f32 %v364, %v324
    %v373 = vmul.f32 %v325, %v325
    %v374 = vmul.f32 %v326, %v326
    %v375 = vmul.f32 %v327, %v327
    %v376 = vmul.f32 %v328, %v328
    %v377 = vmul.f32 %v329, %v329
    %v378 = vmul.f32 %v330, %v330
    %v379 = vmul.f32 %v331, %v331
    %v380 = vmul.f32 %v332, %v332
    %v381 = vsub.f32 %v365, %v373
    %v382 = vsub.f32 %v366, %v374
    %v383 = vsub.f32 %v367, %v375
    %v384 = vsub.f32 %v368, %v376
    %v385 = vsub.f32 %v369, %v377
    %v386 = vsub.f32 %v370, %v378
    %v387 = vsub.f32 %v371, %v379
    %v388 = vsub.f32 %v372, %v380
    %v389 = vld [vmem:[%s2] sm:$0xff]
    %v390 = vld [vmem:[%s2 + $0x8] sm:$0xff]
    %v391 = vld [vmem:[%s2 + $0x10] sm:$0xff]
    %v392 = vld [vmem:[%s2 + $0x18] sm:$0xff]
    %v393 = vld [vmem:[%s2 + $0x20] sm:$0xff]
    %v394 = vld [vmem:[%s2 + $0x28] sm:$0xff]
    %v395 = vld [vmem:[%s2 + $0x30] sm:$0xff]
    %v396 = vld [vmem:[%s2 + $0x38] sm:$0xff]
    %v397 = vadd.f32 %v381, 1e-05
    %v398 = vadd.f32 %v382, 1e-05
    %v399 = vadd.f32 %v383, 1e-05
    %v400 = vadd.f32 %v384, 1e-05
    %v401 = vadd.f32 %v385, 1e-05
    %v402 = vadd.f32 %v386, 1e-05
    %v403 = vadd.f32 %v387, 1e-05
    %v404 = vadd.f32 %v388, 1e-05
    %v405 = vrsqrt.pop %v397
    %v406 = vrsqrt.pop %v398
    %v407 = vrsqrt.pop %v399
    %v408 = vrsqrt.pop %v400
    %v409 = vrsqrt.pop %v401
    %v410 = vrsqrt.pop %v402
    %v411 = vrsqrt.pop %v403
    %v412 = vrsqrt.pop %v404
    %v413 = vmul.f32 %v389, %v405
    %v414 = vmul.f32 %v390, %v406
    %v415 = vmul.f32 %v391, %v407
    %v416 = vmul.f32 %v392, %v408
    %v417 = vmul.f32 %v393, %v409
    %v418 = vmul.f32 %v394, %v410
    %v419 = vmul.f32 %v395, %v411
    %v420 = vmul.f32 %v396, %v412
    %422 = vset.pattern.permute.xlu0 0
    %423 = vperm.xlu0 %422, %v413
    %v424 = vpop.permute.xlu0 %423
    %427 = vset.pattern.permute.xlu0 0
    %428 = vperm.xlu0 %427, %v414
    %v429 = vpop.permute.xlu0 %428
    %432 = vset.pattern.permute.xlu0 0
    %433 = vperm.xlu0 %432, %v415
    %v434 = vpop.permute.xlu0 %433
    %437 = vset.pattern.permute.xlu0 0
    %438 = vperm.xlu0 %437, %v416
    %v439 = vpop.permute.xlu0 %438
    %442 = vset.pattern.permute.xlu0 0
    %443 = vperm.xlu0 %442, %v417
    %v444 = vpop.permute.xlu0 %443
    %447 = vset.pattern.permute.xlu0 0
    %448 = vperm.xlu0 %447, %v418
    %v449 = vpop.permute.xlu0 %448
    %452 = vset.pattern.permute.xlu0 0
    %453 = vperm.xlu0 %452, %v419
    %v454 = vpop.permute.xlu0 %453
    %457 = vset.pattern.permute.xlu0 0
    %458 = vperm.xlu0 %457, %v420
    %v459 = vpop.permute.xlu0 %458
    %v461 = vmul.f32 %v269, %v424
    %v462 = vmul.f32 %v272, %v429
    %v463 = vmul.f32 %v277, %v434
    %v464 = vmul.f32 %v280, %v439
    %v465 = vmul.f32 %v285, %v444
    %v466 = vmul.f32 %v288, %v449
    %v467 = vmul.f32 %v293, %v454
    %v468 = vmul.f32 %v296, %v459
    %v469 = vld [vmem:[%s3] sm:$0xff]
    %v470 = vld [vmem:[%s3 + $0x8] sm:$0xff]
    %v471 = vld [vmem:[%s3 + $0x10] sm:$0xff]
    %v472 = vld [vmem:[%s3 + $0x18] sm:$0xff]
    %v473 = vld [vmem:[%s3 + $0x20] sm:$0xff]
    %v474 = vld [vmem:[%s3 + $0x28] sm:$0xff]
    %v475 = vld [vmem:[%s3 + $0x30] sm:$0xff]
    %v476 = vld [vmem:[%s3 + $0x38] sm:$0xff]
    %v477 = vmul.f32 %v325, %v413
    %v478 = vmul.f32 %v326, %v414
    %v479 = vmul.f32 %v327, %v415
    %v480 = vmul.f32 %v328, %v416
    %v481 = vmul.f32 %v329, %v417
    %v482 = vmul.f32 %v330, %v418
    %v483 = vmul.f32 %v331, %v419
    %v484 = vmul.f32 %v332, %v420
    %v485 = vsub.f32 %v469, %v477
    %v486 = vsub.f32 %v470, %v478
    %v487 = vsub.f32 %v471, %v479
    %v488 = vsub.f32 %v472, %v480
    %v489 = vsub.f32 %v473, %v481
    %v490 = vsub.f32 %v474, %v482
    %v491 = vsub.f32 %v475, %v483
    %v492 = vsub.f32 %v476, %v484
    %494 = vset.pattern.permute.xlu0 0
    %495 = vperm.xlu0 %494, %v485
    %v496 = vpop.permute.xlu0 %495
    %499 = vset.pattern.permute.xlu0 0
    %500 = vperm.xlu0 %499, %v486
    %v501 = vpop.permute.xlu0 %500
    %504 = vset.pattern.permute.xlu0 0
    %505 = vperm.xlu0 %504, %v487
    %v506 = vpop.permute.xlu0 %505
    %509 = vset.pattern.permute.xlu0 0
    %510 = vperm.xlu0 %509, %v488
    %v511 = vpop.permute.xlu0 %510
    %514 = vset.pattern.permute.xlu0 0
    %515 = vperm.xlu0 %514, %v489
    %v516 = vpop.permute.xlu0 %515
    %519 = vset.pattern.permute.xlu0 0
    %520 = vperm.xlu0 %519, %v490
    %v521 = vpop.permute.xlu0 %520
    %524 = vset.pattern.permute.xlu0 0
    %525 = vperm.xlu0 %524, %v491
    %v526 = vpop.permute.xlu0 %525
    %529 = vset.pattern.permute.xlu0 0
    %530 = vperm.xlu0 %529, %v492
    %v531 = vpop.permute.xlu0 %530
    %v533 = vadd.f32 %v461, %v496
    %v534 = vadd.f32 %v462, %v501
    %v535 = vadd.f32 %v463, %v506
    %v536 = vadd.f32 %v464, %v511
    %v537 = vadd.f32 %v465, %v516
    %v538 = vadd.f32 %v466, %v521
    %v539 = vadd.f32 %v467, %v526
    %v540 = vadd.f32 %v468, %v531
    %v541 = vmax.f32 %v533, 0.0
    %v542 = vmax.f32 %v534, 0.0
    %v543 = vmax.f32 %v535, 0.0
    %v544 = vmax.f32 %v536, 0.0
    %v545 = vmax.f32 %v537, 0.0
    %v546 = vmax.f32 %v538, 0.0
    %v547 = vmax.f32 %v539, 0.0
    %v548 = vmax.f32 %v540, 0.0
    %v549 = vpack.c.bf16 %v542, %v541
    %v550 = vpack.c.bf16 %v544, %v543
    %v551 = vpack.c.bf16 %v546, %v545
    %v552 = vpack.c.bf16 %v548, %v547
    %v553 = vunpack.c.l.bf16 %v549
    %v554 = vunpack.c.h.bf16 %v549
    %v555 = vunpack.c.l.bf16 %v550
    %v556 = vunpack.c.h.bf16 %v550
    %v557 = vunpack.c.l.bf16 %v551
    %v558 = vunpack.c.h.bf16 %v551
    %v559 = vunpack.c.l.bf16 %v552
    %v560 = vunpack.c.h.bf16 %v552
    %v561 = vld [vmem:[#allocation4] sm:$0xff]
    %v562 = vld [vmem:[#allocation4 + $0x8] sm:$0x1]
    %571 = vrot.lane.b32.xlu0 %v553, 10
    %v572 = vpop.permute.xlu0 %571
    %573 = vrot.lane.b32.xlu0 %v554, 10
    %v574 = vpop.permute.xlu0 %573
    %575 = vrot.lane.b32.xlu0 %v555, 10
    %v576 = vpop.permute.xlu0 %575
    %577 = vrot.lane.b32.xlu0 %v556, 10
    %v578 = vpop.permute.xlu0 %577
    %579 = vrot.lane.b32.xlu0 %v557, 10
    %v580 = vpop.permute.xlu0 %579
    %581 = vrot.lane.b32.xlu0 %v558, 10
    %v582 = vpop.permute.xlu0 %581
    %583 = vrot.lane.b32.xlu0 %v559, 10
    %v584 = vpop.permute.xlu0 %583
    %585 = vrot.lane.b32.xlu0 %v560, 10
    %v586 = vpop.permute.xlu0 %585
    %vm595 = vcmask 80896
    %v596 = vsel %vm595, 0.0, %v572
    %v597 = vsel %vm595, 0.0, %v574
    %v598 = vsel %vm595, 0.0, %v576
    %v599 = vsel %vm595, 0.0, %v578
    %v600 = vsel %vm595, 0.0, %v580
    %v601 = vsel %vm595, 0.0, %v582
    %v602 = vsel %vm595, 0.0, %v584
    %v603 = vsel %vm595, 0.0, %v586
    %vm604 = vcmask 343040
    %v605 = vsel %vm604, %v596, 0.0
    %v606 = vsel %vm604, %v597, 0.0
    %v607 = vsel %vm604, %v598, 0.0
    %v608 = vsel %vm604, %v599, 0.0
    %v609 = vsel %vm604, %v600, 0.0
    %v610 = vsel %vm604, %v601, 0.0
    %v611 = vsel %vm604, %v602, 0.0
    %v612 = vsel %vm604, %v603, 0.0
    %v613 = vlaneseq
    %v614 = vshrl.u32 %v613, 7
    %v615 = vsub.s32 0, %v614
    %v616 = vrot.slane %v561, %v615
    %v617 = vmul.f32 %v605, %v616
    %v618 = vmul.f32 %v606, %v616
    %v619 = vmul.f32 %v607, %v616
    %v620 = vmul.f32 %v608, %v616
    %v621 = vmul.f32 %v609, %v616
    %v622 = vmul.f32 %v610, %v616
    %v623 = vmul.f32 %v611, %v616
    %v624 = vmul.f32 %v612, %v616
    %v625 = vlaneseq
    %v626 = vshrl.u32 %v625, 7
    %v627 = vsub.s32 1, %v626
    %v628 = vrot.slane %v561, %v627
    %630 = vrot.lane.b32.xlu0 %v628, 2
    %v631 = vpop.permute.xlu0 %630
    %v633 = vmul.f32 %v605, %v631
    %v634 = vmul.f32 %v606, %v631
    %v635 = vmul.f32 %v607, %v631
    %v636 = vmul.f32 %v608, %v631
    %v637 = vmul.f32 %v609, %v631
    %v638 = vmul.f32 %v610, %v631
    %v639 = vmul.f32 %v611, %v631
    %v640 = vmul.f32 %v612, %v631
    %v641 = vlaneseq
    %v642 = vshrl.u32 %v641, 7
    %v643 = vsub.s32 2, %v642
    %v644 = vrot.slane %v561, %v643
    %646 = vrot.lane.b32.xlu0 %v644, 4
    %v647 = vpop.permute.xlu0 %646
    %v649 = vmul.f32 %v605, %v647
    %v650 = vmul.f32 %v606, %v647
    %v651 = vmul.f32 %v607, %v647
    %v652 = vmul.f32 %v608, %v647
    %v653 = vmul.f32 %v609, %v647
    %v654 = vmul.f32 %v610, %v647
    %v655 = vmul.f32 %v611, %v647
    %v656 = vmul.f32 %v612, %v647
    %v657 = vlaneseq
    %v658 = vshrl.u32 %v657, 7
    %v659 = vsub.s32 3, %v658
    %v660 = vrot.slane %v561, %v659
    %662 = vrot.lane.b32.xlu0 %v660, 8
    %v663 = vpop.permute.xlu0 %662
    %v665 = vmul.f32 %v605, %v663
    %v666 = vmul.f32 %v606, %v663
    %v667 = vmul.f32 %v607, %v663
    %v668 = vmul.f32 %v608, %v663
    %v669 = vmul.f32 %v609, %v663
    %v670 = vmul.f32 %v610, %v663
    %v671 = vmul.f32 %v611, %v663
    %v672 = vmul.f32 %v612, %v663
    %v673 = vlaneseq
    %v674 = vshrl.u32 %v673, 7
    %v675 = vsub.s32 4, %v674
    %v676 = vrot.slane %v561, %v675
    %678 = vrot.lane.b32.xlu0 %v676, 10
    %v679 = vpop.permute.xlu0 %678
    %v681 = vmul.f32 %v605, %v679
    %v682 = vmul.f32 %v606, %v679
    %v683 = vmul.f32 %v607, %v679
    %v684 = vmul.f32 %v608, %v679
    %v685 = vmul.f32 %v609, %v679
    %v686 = vmul.f32 %v610, %v679
    %v687 = vmul.f32 %v611, %v679
    %v688 = vmul.f32 %v612, %v679
    %v689 = vlaneseq
    %v690 = vshrl.u32 %v689, 7
    %v691 = vsub.s32 5, %v690
    %v692 = vrot.slane %v561, %v691
    %694 = vrot.lane.b32.xlu0 %v692, 12
    %v695 = vpop.permute.xlu0 %694
    %v697 = vmul.f32 %v605, %v695
    %v698 = vmul.f32 %v606, %v695
    %v699 = vmul.f32 %v607, %v695
    %v700 = vmul.f32 %v608, %v695
    %v701 = vmul.f32 %v609, %v695
    %v702 = vmul.f32 %v610, %v695
    %v703 = vmul.f32 %v611, %v695
    %v704 = vmul.f32 %v612, %v695
    %v705 = vlaneseq
    %v706 = vshrl.u32 %v705, 7
    %v707 = vsub.s32 6, %v706
    %v708 = vrot.slane %v561, %v707
    %710 = vrot.lane.b32.xlu0 %v708, 16
    %v711 = vpop.permute.xlu0 %710
    %v713 = vmul.f32 %v605, %v711
    %v714 = vmul.f32 %v606, %v711
    %v715 = vmul.f32 %v607, %v711
    %v716 = vmul.f32 %v608, %v711
    %v717 = vmul.f32 %v609, %v711
    %v718 = vmul.f32 %v610, %v711
    %v719 = vmul.f32 %v611, %v711
    %v720 = vmul.f32 %v612, %v711
    %v721 = vlaneseq
    %v722 = vshrl.u32 %v721, 7
    %v723 = vsub.s32 7, %v722
    %v724 = vrot.slane %v561, %v723
    %726 = vrot.lane.b32.xlu0 %v724, 18
    %v727 = vpop.permute.xlu0 %726
    %v729 = vmul.f32 %v605, %v727
    %v730 = vmul.f32 %v606, %v727
    %v731 = vmul.f32 %v607, %v727
    %v732 = vmul.f32 %v608, %v727
    %v733 = vmul.f32 %v609, %v727
    %v734 = vmul.f32 %v610, %v727
    %v735 = vmul.f32 %v611, %v727
    %v736 = vmul.f32 %v612, %v727
    %v737 = vlaneseq
    %v738 = vshrl.u32 %v737, 7
    %v739 = vsub.s32 0, %v738
    %v740 = vrot.slane %v562, %v739
    %742 = vrot.lane.b32.xlu0 %v740, 20
    %v743 = vpop.permute.xlu0 %742
    %v745 = vmul.f32 %v605, %v743
    %v746 = vmul.f32 %v606, %v743
    %v747 = vmul.f32 %v607, %v743
    %v748 = vmul.f32 %v608, %v743
    %v749 = vmul.f32 %v609, %v743
    %v750 = vmul.f32 %v610, %v743
    %v751 = vmul.f32 %v611, %v743
    %v752 = vmul.f32 %v612, %v743
    %761 = vrot.lane.b32.xlu0 %v633, 126
    %v762 = vpop.permute.xlu0 %761
    %763 = vrot.lane.b32.xlu0 %v634, 126
    %v764 = vpop.permute.xlu0 %763
    %765 = vrot.lane.b32.xlu0 %v635, 126
    %v766 = vpop.permute.xlu0 %765
    %767 = vrot.lane.b32.xlu0 %v636, 126
    %v768 = vpop.permute.xlu0 %767
    %769 = vrot.lane.b32.xlu0 %v637, 126
    %v770 = vpop.permute.xlu0 %769
    %771 = vrot.lane.b32.xlu0 %v638, 126
    %v772 = vpop.permute.xlu0 %771
    %773 = vrot.lane.b32.xlu0 %v639, 126
    %v774 = vpop.permute.xlu0 %773
    %775 = vrot.lane.b32.xlu0 %v640, 126
    %v776 = vpop.permute.xlu0 %775
    %793 = vrot.lane.b32.xlu0 %v649, 124
    %v794 = vpop.permute.xlu0 %793
    %795 = vrot.lane.b32.xlu0 %v650, 124
    %v796 = vpop.permute.xlu0 %795
    %797 = vrot.lane.b32.xlu0 %v651, 124
    %v798 = vpop.permute.xlu0 %797
    %799 = vrot.lane.b32.xlu0 %v652, 124
    %v800 = vpop.permute.xlu0 %799
    %801 = vrot.lane.b32.xlu0 %v653, 124
    %v802 = vpop.permute.xlu0 %801
    %803 = vrot.lane.b32.xlu0 %v654, 124
    %v804 = vpop.permute.xlu0 %803
    %805 = vrot.lane.b32.xlu0 %v655, 124
    %v806 = vpop.permute.xlu0 %805
    %807 = vrot.lane.b32.xlu0 %v656, 124
    %v808 = vpop.permute.xlu0 %807
    %825 = vrot.lane.b32.xlu0 %v665, 120
    %v826 = vpop.permute.xlu0 %825
    %827 = vrot.lane.b32.xlu0 %v666, 120
    %v828 = vpop.permute.xlu0 %827
    %829 = vrot.lane.b32.xlu0 %v667, 120
    %v830 = vpop.permute.xlu0 %829
    %831 = vrot.lane.b32.xlu0 %v668, 120
    %v832 = vpop.permute.xlu0 %831
    %833 = vrot.lane.b32.xlu0 %v669, 120
    %v834 = vpop.permute.xlu0 %833
    %835 = vrot.lane.b32.xlu0 %v670, 120
    %v836 = vpop.permute.xlu0 %835
    %837 = vrot.lane.b32.xlu0 %v671, 120
    %v838 = vpop.permute.xlu0 %837
    %839 = vrot.lane.b32.xlu0 %v672, 120
    %v840 = vpop.permute.xlu0 %839
    %857 = vrot.lane.b32.xlu0 %v681, 118
    %v858 = vpop.permute.xlu0 %857
    %859 = vrot.lane.b32.xlu0 %v682, 118
    %v860 = vpop.permute.xlu0 %859
    %861 = vrot.lane.b32.xlu0 %v683, 118
    %v862 = vpop.permute.xlu0 %861
    %863 = vrot.lane.b32.xlu0 %v684, 118
    %v864 = vpop.permute.xlu0 %863
    %865 = vrot.lane.b32.xlu0 %v685, 118
    %v866 = vpop.permute.xlu0 %865
    %867 = vrot.lane.b32.xlu0 %v686, 118
    %v868 = vpop.permute.xlu0 %867
    %869 = vrot.lane.b32.xlu0 %v687, 118
    %v870 = vpop.permute.xlu0 %869
    %871 = vrot.lane.b32.xlu0 %v688, 118
    %v872 = vpop.permute.xlu0 %871
    %889 = vrot.lane.b32.xlu0 %v697, 116
    %v890 = vpop.permute.xlu0 %889
    %891 = vrot.lane.b32.xlu0 %v698, 116
    %v892 = vpop.permute.xlu0 %891
    %893 = vrot.lane.b32.xlu0 %v699, 116
    %v894 = vpop.permute.xlu0 %893
    %895 = vrot.lane.b32.xlu0 %v700, 116
    %v896 = vpop.permute.xlu0 %895
    %897 = vrot.lane.b32.xlu0 %v701, 116
    %v898 = vpop.permute.xlu0 %897
    %899 = vrot.lane.b32.xlu0 %v702, 116
    %v900 = vpop.permute.xlu0 %899
    %901 = vrot.lane.b32.xlu0 %v703, 116
    %v902 = vpop.permute.xlu0 %901
    %903 = vrot.lane.b32.xlu0 %v704, 116
    %v904 = vpop.permute.xlu0 %903
    %921 = vrot.lane.b32.xlu0 %v713, 112
    %v922 = vpop.permute.xlu0 %921
    %923 = vrot.lane.b32.xlu0 %v714, 112
    %v924 = vpop.permute.xlu0 %923
    %925 = vrot.lane.b32.xlu0 %v715, 112
    %v926 = vpop.permute.xlu0 %925
    %927 = vrot.lane.b32.xlu0 %v716, 112
    %v928 = vpop.permute.xlu0 %927
    %929 = vrot.lane.b32.xlu0 %v717, 112
    %v930 = vpop.permute.xlu0 %929
    %931 = vrot.lane.b32.xlu0 %v718, 112
    %v932 = vpop.permute.xlu0 %931
    %933 = vrot.lane.b32.xlu0 %v719, 112
    %v934 = vpop.permute.xlu0 %933
    %935 = vrot.lane.b32.xlu0 %v720, 112
    %v936 = vpop.permute.xlu0 %935
    %953 = vrot.lane.b32.xlu0 %v729, 110
    %v954 = vpop.permute.xlu0 %953
    %955 = vrot.lane.b32.xlu0 %v730, 110
    %v956 = vpop.permute.xlu0 %955
    %957 = vrot.lane.b32.xlu0 %v731, 110
    %v958 = vpop.permute.xlu0 %957
    %959 = vrot.lane.b32.xlu0 %v732, 110
    %v960 = vpop.permute.xlu0 %959
    %961 = vrot.lane.b32.xlu0 %v733, 110
    %v962 = vpop.permute.xlu0 %961
    %963 = vrot.lane.b32.xlu0 %v734, 110
    %v964 = vpop.permute.xlu0 %963
    %965 = vrot.lane.b32.xlu0 %v735, 110
    %v966 = vpop.permute.xlu0 %965
    %967 = vrot.lane.b32.xlu0 %v736, 110
    %v968 = vpop.permute.xlu0 %967
    %985 = vrot.lane.b32.xlu0 %v745, 108
    %v986 = vpop.permute.xlu0 %985
    %987 = vrot.lane.b32.xlu0 %v746, 108
    %v988 = vpop.permute.xlu0 %987
    %989 = vrot.lane.b32.xlu0 %v747, 108
    %v990 = vpop.permute.xlu0 %989
    %991 = vrot.lane.b32.xlu0 %v748, 108
    %v992 = vpop.permute.xlu0 %991
    %993 = vrot.lane.b32.xlu0 %v749, 108
    %v994 = vpop.permute.xlu0 %993
    %995 = vrot.lane.b32.xlu0 %v750, 108
    %v996 = vpop.permute.xlu0 %995
    %997 = vrot.lane.b32.xlu0 %v751, 108
    %v998 = vpop.permute.xlu0 %997
    %999 = vrot.lane.b32.xlu0 %v752, 108
    %v1000 = vpop.permute.xlu0 %999
    %v1009 = vpack.c.bf16 %v618, %v617
    %v1010 = vpack.c.bf16 %v620, %v619
    %v1011 = vpack.c.bf16 %v622, %v621
    %v1012 = vpack.c.bf16 %v624, %v623
    %v1013 = vpack.c.bf16 %v764, %v762
    %v1014 = vpack.c.bf16 %v768, %v766
    %v1015 = vpack.c.bf16 %v772, %v770
    %v1016 = vpack.c.bf16 %v776, %v774
    %v1017 = vpack.c.bf16 %v796, %v794
    %v1018 = vpack.c.bf16 %v800, %v798
    %v1019 = vpack.c.bf16 %v804, %v802
    %v1020 = vpack.c.bf16 %v808, %v806
    %v1021 = vpack.c.bf16 %v828, %v826
    %v1022 = vpack.c.bf16 %v832, %v830
    %v1023 = vpack.c.bf16 %v836, %v834
    %v1024 = vpack.c.bf16 %v840, %v838
    %v1025 = vpack.c.bf16 %v860, %v858
    %v1026 = vpack.c.bf16 %v864, %v862
    %v1027 = vpack.c.bf16 %v868, %v866
    %v1028 = vpack.c.bf16 %v872, %v870
    %v1029 = vpack.c.bf16 %v892, %v890
    %v1030 = vpack.c.bf16 %v896, %v894
    %v1031 = vpack.c.bf16 %v900, %v898
    %v1032 = vpack.c.bf16 %v904, %v902
    %v1033 = vpack.c.bf16 %v924, %v922
    %v1034 = vpack.c.bf16 %v928, %v926
    %v1035 = vpack.c.bf16 %v932, %v930
    %v1036 = vpack.c.bf16 %v936, %v934
    %v1037 = vpack.c.bf16 %v956, %v954
    %v1038 = vpack.c.bf16 %v960, %v958
    %v1039 = vpack.c.bf16 %v964, %v962
    %v1040 = vpack.c.bf16 %v968, %v966
    %v1041 = vpack.c.bf16 %v988, %v986
    %v1042 = vpack.c.bf16 %v992, %v990
    %v1043 = vpack.c.bf16 %v996, %v994
    %v1044 = vpack.c.bf16 %v1000, %v998
    %v1045 = vld [vmem:[%s4] sm:$0xff]
    %v1046 = vld [vmem:[%s4 + $0x8] sm:$0xff]
    %v1047 = vld [vmem:[%s4 + $0x10] sm:$0xf]
    %v1048 = vld [vmem:[%s4 + $0x14] sm:$0xff]
    %v1049 = vld [vmem:[%s4 + $0x1c] sm:$0xff]
    %v1050 = vld [vmem:[%s4 + $0x24] sm:$0xf]
    %v1051 = vld [vmem:[%s4 + $0x28] sm:$0xff]
    %v1052 = vld [vmem:[%s4 + $0x30] sm:$0xff]
    %v1053 = vld [vmem:[%s4 + $0x38] sm:$0xf]
    %v1054 = vld [vmem:[%s4 + $0x3c] sm:$0xff]
    %v1055 = vld [vmem:[%s4 + $0x44] sm:$0xff]
    %v1056 = vld [vmem:[%s4 + $0x4c] sm:$0xf]
    %v1057 = vld [vmem:[%s4 + $0x50] sm:$0xff]
    %v1058 = vld [vmem:[%s4 + $0x58] sm:$0xff]
    %v1059 = vld [vmem:[%s4 + $0x60] sm:$0xf]
    %v1060 = vld [vmem:[%s4 + $0x64] sm:$0xff]
    %v1061 = vld [vmem:[%s4 + $0x6c] sm:$0xff]
    %v1062 = vld [vmem:[%s4 + $0x74] sm:$0xf]
    %v1063 = vld [vmem:[%s4 + $0x78] sm:$0xff]
    %v1064 = vld [vmem:[%s4 + $0x80] sm:$0xff]
    %v1065 = vld [vmem:[%s4 + $0x88] sm:$0xf]
    %v1066 = vld [vmem:[%s4 + $0x8c] sm:$0xff]
    %v1067 = vld [vmem:[%s4 + $0x94] sm:$0xff]
    %v1068 = vld [vmem:[%s4 + $0x9c] sm:$0xf]
    %v1069 = vld [vmem:[%s4 + $0xa0] sm:$0xff]
    %v1070 = vld [vmem:[%s4 + $0xa8] sm:$0xff]
    %v1071 = vld [vmem:[%s4 + $0xb0] sm:$0xf]
    %v1072 = vld [vmem:[%s4 + $0xb4] sm:$0xff]
    %v1073 = vld [vmem:[%s4 + $0xbc] sm:$0xff]
    %v1074 = vld [vmem:[%s4 + $0xc4] sm:$0xf]
    %v1075 = vld [vmem:[%s4 + $0xc8] sm:$0xff]
    %v1076 = vld [vmem:[%s4 + $0xd0] sm:$0xff]
    %v1077 = vld [vmem:[%s4 + $0xd8] sm:$0xf]
    %v1078 = vld [vmem:[%s4 + $0xdc] sm:$0xff]
    %v1079 = vld [vmem:[%s4 + $0xe4] sm:$0xff]
    %v1080 = vld [vmem:[%s4 + $0xec] sm:$0xf]
    %v1081 = vld [vmem:[%s4 + $0xf0] sm:$0xff]
    %v1082 = vld [vmem:[%s4 + $0xf8] sm:$0xff]
    %v1083 = vld [vmem:[%s4 + $0x100] sm:$0xf]
    %v1084 = vld [vmem:[%s4 + $0x104] sm:$0xff]
    %v1085 = vld [vmem:[%s4 + $0x10c] sm:$0xff]
    %v1086 = vld [vmem:[%s4 + $0x114] sm:$0xf]
    %v1087 = vld [vmem:[%s4 + $0x118] sm:$0xff]
    %v1088 = vld [vmem:[%s4 + $0x120] sm:$0xff]
    %v1089 = vld [vmem:[%s4 + $0x128] sm:$0xf]
    %v1090 = vld [vmem:[%s4 + $0x12c] sm:$0xff]
    %v1091 = vld [vmem:[%s4 + $0x134] sm:$0xff]
    %v1092 = vld [vmem:[%s4 + $0x13c] sm:$0xf]
    %v1141 = vunpack.c.l.b16 %v1045
    %v1142 = vunpack.c.h.b16 %v1045
    %v1143 = vunpack.c.l.b16 %v1046
    %v1144 = vunpack.c.h.b16 %v1046
    %v1145 = vunpack.c.l.b16 %v1047
    %v1146 = vunpack.c.l.b16 %v1048
    %v1147 = vunpack.c.h.b16 %v1048
    %v1148 = vunpack.c.l.b16 %v1049
    %v1149 = vunpack.c.h.b16 %v1049
    %v1150 = vunpack.c.l.b16 %v1050
    %v1151 = vunpack.c.l.b16 %v1051
    %v1152 = vunpack.c.h.b16 %v1051
    %v1153 = vunpack.c.l.b16 %v1052
    %v1154 = vunpack.c.h.b16 %v1052
    %v1155 = vunpack.c.l.b16 %v1053
    %v1156 = vunpack.c.l.b16 %v1054
    %v1157 = vunpack.c.h.b16 %v1054
    %v1158 = vunpack.c.l.b16 %v1055
    %v1159 = vunpack.c.h.b16 %v1055
    %v1160 = vunpack.c.l.b16 %v1056
    %v1161 = vunpack.c.l.b16 %v1057
    %v1162 = vunpack.c.h.b16 %v1057
    %v1163 = vunpack.c.l.b16 %v1058
    %v1164 = vunpack.c.h.b16 %v1058
    %v1165 = vunpack.c.l.b16 %v1059
    %v1166 = vunpack.c.l.b16 %v1060
    %v1167 = vunpack.c.h.b16 %v1060
    %v1168 = vunpack.c.l.b16 %v1061
    %v1169 = vunpack.c.h.b16 %v1061
    %v1170 = vunpack.c.l.b16 %v1062
    %v1171 = vunpack.c.l.b16 %v1063
    %v1172 = vunpack.c.h.b16 %v1063
    %v1173 = vunpack.c.l.b16 %v1064
    %v1174 = vunpack.c.h.b16 %v1064
    %v1175 = vunpack.c.l.b16 %v1065
    %v1176 = vunpack.c.l.b16 %v1066
    %v1177 = vunpack.c.h.b16 %v1066
    %v1178 = vunpack.c.l.b16 %v1067
    %v1179 = vunpack.c.h.b16 %v1067
    %v1180 = vunpack.c.l.b16 %v1068
    %v1181 = vunpack.c.l.b16 %v1069
    %v1182 = vunpack.c.h.b16 %v1069
    %v1183 = vunpack.c.l.b16 %v1070
    %v1184 = vunpack.c.h.b16 %v1070
    %v1185 = vunpack.c.l.b16 %v1071
    %v1186 = vunpack.c.l.b16 %v1072
    %v1187 = vunpack.c.h.b16 %v1072
    %v1188 = vunpack.c.l.b16 %v1073
    %v1189 = vunpack.c.h.b16 %v1073
    %v1190 = vunpack.c.l.b16 %v1074
    %v1191 = vunpack.c.l.b16 %v1075
    %v1192 = vunpack.c.h.b16 %v1075
    %v1193 = vunpack.c.l.b16 %v1076
    %v1194 = vunpack.c.h.b16 %v1076
    %v1195 = vunpack.c.l.b16 %v1077
    %v1196 = vunpack.c.l.b16 %v1078
    %v1197 = vunpack.c.h.b16 %v1078
    %v1198 = vunpack.c.l.b16 %v1079
    %v1199 = vunpack.c.h.b16 %v1079
    %v1200 = vunpack.c.l.b16 %v1080
    %v1201 = vunpack.c.l.b16 %v1081
    %v1202 = vunpack.c.h.b16 %v1081
    %v1203 = vunpack.c.l.b16 %v1082
    %v1204 = vunpack.c.h.b16 %v1082
    %v1205 = vunpack.c.l.b16 %v1083
    %v1206 = vunpack.c.l.b16 %v1084
    %v1207 = vunpack.c.h.b16 %v1084
    %v1208 = vunpack.c.l.b16 %v1085
    %v1209 = vunpack.c.h.b16 %v1085
    %v1210 = vunpack.c.l.b16 %v1086
    %v1211 = vunpack.c.l.b16 %v1087
    %v1212 = vunpack.c.h.b16 %v1087
    %v1213 = vunpack.c.l.b16 %v1088
    %v1214 = vunpack.c.h.b16 %v1088
    %v1215 = vunpack.c.l.b16 %v1089
    %v1216 = vunpack.c.l.b16 %v1090
    %v1217 = vunpack.c.h.b16 %v1090
    %v1218 = vunpack.c.l.b16 %v1091
    %v1219 = vunpack.c.h.b16 %v1091
    %v1220 = vunpack.c.l.b16 %v1092
    %v1221 = vpack.c.b16 %v1146, %v1141
    %v1222 = vpack.c.b16 %v1147, %v1142
    %v1223 = vpack.c.b16 %v1148, %v1143
    %v1224 = vpack.c.b16 %v1149, %v1144
    %v1225 = vpack.c.b16 %v1150, %v1145
    %v1226 = vpack.c.b16 %v1156, %v1151
    %v1227 = vpack.c.b16 %v1157, %v1152
    %v1228 = vpack.c.b16 %v1158, %v1153
    %v1229 = vpack.c.b16 %v1159, %v1154
    %v1230 = vpack.c.b16 %v1160, %v1155
    %v1231 = vpack.c.b16 %v1166, %v1161
    %v1232 = vpack.c.b16 %v1167, %v1162
    %v1233 = vpack.c.b16 %v1168, %v1163
    %v1234 = vpack.c.b16 %v1169, %v1164
    %v1235 = vpack.c.b16 %v1170, %v1165
    %v1236 = vpack.c.b16 %v1176, %v1171
    %v1237 = vpack.c.b16 %v1177, %v1172
    %v1238 = vpack.c.b16 %v1178, %v1173
    %v1239 = vpack.c.b16 %v1179, %v1174
    %v1240 = vpack.c.b16 %v1180, %v1175
    %v1241 = vpack.c.b16 %v1186, %v1181
    %v1242 = vpack.c.b16 %v1187, %v1182
    %v1243 = vpack.c.b16 %v1188, %v1183
    %v1244 = vpack.c.b16 %v1189, %v1184
    %v1245 = vpack.c.b16 %v1190, %v1185
    %v1246 = vpack.c.b16 %v1196, %v1191
    %v1247 = vpack.c.b16 %v1197, %v1192
    %v1248 = vpack.c.b16 %v1198, %v1193
    %v1249 = vpack.c.b16 %v1199, %v1194
    %v1250 = vpack.c.b16 %v1200, %v1195
    %v1251 = vpack.c.b16 %v1206, %v1201
    %v1252 = vpack.c.b16 %v1207, %v1202
    %v1253 = vpack.c.b16 %v1208, %v1203
    %v1254 = vpack.c.b16 %v1209, %v1204
    %v1255 = vpack.c.b16 %v1210, %v1205
    %v1256 = vpack.c.b16 %v1216, %v1211
    %v1257 = vpack.c.b16 %v1217, %v1212
    %v1258 = vpack.c.b16 %v1218, %v1213
    %v1259 = vpack.c.b16 %v1219, %v1214
    %v1260 = vpack.c.b16 %v1220, %v1215
    %vm1293 = vcmask 523264
    %v1295 = vsel %vm1293, %v1225, 0
    %v1298 = vsel %vm1293, %v1230, 0
    %v1301 = vsel %vm1293, %v1235, 0
    %v1304 = vsel %vm1293, %v1240, 0
    %v1307 = vsel %vm1293, %v1245, 0
    %v1310 = vsel %vm1293, %v1250, 0
    %v1313 = vsel %vm1293, %v1255, 0
    %v1316 = vsel %vm1293, %v1260, 0
    %1318 = vmatprep.subr.bf16.mxu0 0
    %1319 = vmatpush1.bf16.msra.mxu0 %v1009
    %1320 = vmatprep.subr.bf16.mxu0 0
    %1321 = vmatpush1.bf16.msra.mxu0 %v1010
    %1322 = vmatprep.subr.bf16.mxu0 0
    %1323 = vmatpush1.bf16.msra.mxu0 %v1011
    %1324 = vmatprep.subr.bf16.mxu0 0
    %1325 = vmatpush1.bf16.msra.mxu0 %v1012
    %1326 = vmatprep.subr.bf16.mxu0 0
    %1327 = vmatpush1.bf16.msra.mxu0 %v1013
    %1328 = vmatprep.subr.bf16.mxu0 0
    %1329 = vmatpush1.bf16.msra.mxu0 %v1014
    %1330 = vmatprep.subr.bf16.mxu0 0
    %1331 = vmatpush1.bf16.msra.mxu0 %v1015
    %1332 = vmatprep.subr.bf16.mxu0 0
    %1333 = vmatpush1.bf16.msra.mxu0 %v1016
    %1334 = vmatprep.subr.bf16.mxu0 0
    %1335 = vmatpush1.bf16.msra.mxu0 %v1017
    %1336 = vmatprep.subr.bf16.mxu0 0
    %1337 = vmatpush1.bf16.msra.mxu0 %v1018
    %1338 = vmatprep.subr.bf16.mxu0 0
    %1339 = vmatpush1.bf16.msra.mxu0 %v1019
    %1340 = vmatprep.subr.bf16.mxu0 0
    %1341 = vmatpush1.bf16.msra.mxu0 %v1020
    %1342 = vmatprep.subr.bf16.mxu0 0
    %1343 = vmatpush1.bf16.msra.mxu0 %v1021
    %1344 = vmatprep.subr.bf16.mxu0 0
    %1345 = vmatpush1.bf16.msra.mxu0 %v1022
    %1346 = vmatprep.subr.bf16.mxu0 0
    %1347 = vmatpush1.bf16.msra.mxu0 %v1023
    %1348 = vmatprep.subr.bf16.mxu0 0
    %1349 = vmatpush1.bf16.msra.mxu0 %v1024
    %1350 = vmatprep.mubr.bf16.mxu0 %v1222
    %1351 = vmatmul.mubr.bf16.gmra.mrb[0].mxu0 %v1221
    %v1352 = vpop.f32.mrb[0].mxu0
    %v1353 = vadd.f32 0.0, %v1352
    %v1354 = vpop.f32.mrb[0].mxu0
    %v1355 = vpop.f32.mrb[0].mxu0
    %v1356 = vadd.f32 0.0, %v1355
    %v1357 = vpop.f32.mrb[0].mxu0
    %1358 = vmatprep.mubr.bf16.mxu0 %v1227
    %1359 = vmatmul.mubr.bf16.gmra.mrb[0].mxu0 %v1226
    %v1360 = vpop.f32.mrb[0].mxu0
    %v1361 = vadd.f32 0.0, %v1360
    %v1362 = vpop.f32.mrb[0].mxu0
    %v1363 = vpop.f32.mrb[0].mxu0
    %v1364 = vadd.f32 0.0, %v1363
    %v1365 = vpop.f32.mrb[0].mxu0
    %1366 = vmatprep.mubr.bf16.mxu0 %v1232
    %1367 = vmatmul.mubr.bf16.gmra.mrb[0].mxu0 %v1231
    %v1368 = vpop.f32.mrb[0].mxu0
    %v1369 = vadd.f32 0.0, %v1368
    %v1370 = vpop.f32.mrb[0].mxu0
    %v1371 = vpop.f32.mrb[0].mxu0
    %v1372 = vadd.f32 0.0, %v1371
    %v1373 = vpop.f32.mrb[0].mxu0
    %1374 = vmatprep.mubr.bf16.mxu0 %v1237
    %1375 = vmatmul.mubr.bf16.gmra.mrb[0].mxu0 %v1236
    %v1376 = vpop.f32.mrb[0].mxu0
    %v1377 = vadd.f32 0.0, %v1376
    %v1378 = vpop.f32.mrb[0].mxu0
    %v1379 = vpop.f32.mrb[0].mxu0
    %v1380 = vadd.f32 0.0, %v1379
    %v1381 = vpop.f32.mrb[0].mxu0
    %1382 = vmatprep.mubr.bf16.mxu0 %v1242
    %1383 = vmatmul.mubr.bf16.gmra.mrb[0].mxu0 %v1241
    %v1384 = vpop.f32.mrb[0].mxu0
    %v1385 = vadd.f32 0.0, %v1384
    %v1386 = vpop.f32.mrb[0].mxu0
    %v1387 = vpop.f32.mrb[0].mxu0
    %v1388 = vadd.f32 0.0, %v1387
    %v1389 = vpop.f32.mrb[0].mxu0
    %1390 = vmatprep.mubr.bf16.mxu0 %v1247
    %1391 = vmatmul.mubr.bf16.gmra.mrb[0].mxu0 %v1246
    %v1392 = vpop.f32.mrb[0].mxu0
    %v1393 = vadd.f32 0.0, %v1392
    %v1394 = vpop.f32.mrb[0].mxu0
    %v1395 = vpop.f32.mrb[0].mxu0
    %v1396 = vadd.f32 0.0, %v1395
    %v1397 = vpop.f32.mrb[0].mxu0
    %1398 = vmatprep.mubr.bf16.mxu0 %v1252
    %1399 = vmatmul.mubr.bf16.gmra.mrb[0].mxu0 %v1251
    %v1400 = vpop.f32.mrb[0].mxu0
    %v1401 = vadd.f32 0.0, %v1400
    %v1402 = vpop.f32.mrb[0].mxu0
    %v1403 = vpop.f32.mrb[0].mxu0
    %v1404 = vadd.f32 0.0, %v1403
    %v1405 = vpop.f32.mrb[0].mxu0
    %1406 = vmatprep.mubr.bf16.mxu0 %v1257
    %1407 = vmatmul.mubr.bf16.gmra.mrb[0].mxu0 %v1256
    %v1408 = vpop.f32.mrb[0].mxu0
    %v1409 = vadd.f32 0.0, %v1408
    %v1410 = vpop.f32.mrb[0].mxu0
    %v1411 = vpop.f32.mrb[0].mxu0
    %v1412 = vadd.f32 0.0, %v1411
    %v1413 = vpop.f32.mrb[0].mxu0
    %1414 = vdwg.mxu0
    %1415 = vmatprep.subr.bf16.mxu0 0
    %1416 = vmatpush1.bf16.msra.mxu0 %v1025
    %1417 = vmatprep.subr.bf16.mxu0 0
    %1418 = vmatpush1.bf16.msra.mxu0 %v1026
    %1419 = vmatprep.subr.bf16.mxu0 0
    %1420 = vmatpush1.bf16.msra.mxu0 %v1027
    %1421 = vmatprep.subr.bf16.mxu0 0
    %1422 = vmatpush1.bf16.msra.mxu0 %v1028
    %1423 = vmatprep.subr.bf16.mxu0 0
    %1424 = vmatpush1.bf16.msra.mxu0 %v1029
    %1425 = vmatprep.subr.bf16.mxu0 0
    %1426 = vmatpush1.bf16.msra.mxu0 %v1030
    %1427 = vmatprep.subr.bf16.mxu0 0
    %1428 = vmatpush1.bf16.msra.mxu0 %v1031
    %1429 = vmatprep.subr.bf16.mxu0 0
    %1430 = vmatpush1.bf16.msra.mxu0 %v1032
    %1431 = vmatprep.subr.bf16.mxu0 0
    %1432 = vmatpush1.bf16.msra.mxu0 %v1033
    %1433 = vmatprep.subr.bf16.mxu0 0
    %1434 = vmatpush1.bf16.msra.mxu0 %v1034
    %1435 = vmatprep.subr.bf16.mxu0 0
    %1436 = vmatpush1.bf16.msra.mxu0 %v1035
    %1437 = vmatprep.subr.bf16.mxu0 0
    %1438 = vmatpush1.bf16.msra.mxu0 %v1036
    %1439 = vmatprep.subr.bf16.mxu0 0
    %1440 = vmatpush1.bf16.msra.mxu0 %v1037
    %1441 = vmatprep.subr.bf16.mxu0 0
    %1442 = vmatpush1.bf16.msra.mxu0 %v1038
    %1443 = vmatprep.subr.bf16.mxu0 0
    %1444 = vmatpush1.bf16.msra.mxu0 %v1039
    %1445 = vmatprep.subr.bf16.mxu0 0
    %1446 = vmatpush1.bf16.msra.mxu0 %v1040
    %1447 = vmatprep.mubr.bf16.mxu0 %v1224
    %1448 = vmatmul.mubr.bf16.gmra.mrb[0].mxu0 %v1223
    %v1449 = vpop.f32.mrb[0].mxu0
    %v1450 = vadd.f32 %v1353, %v1449
    %v1451 = vpop.f32.mrb[0].mxu0
    %v1452 = vpop.f32.mrb[0].mxu0
    %v1453 = vadd.f32 %v1356, %v1452
    %v1454 = vpop.f32.mrb[0].mxu0
    %1455 = vmatprep.mubr.bf16.mxu0 %v1229
    %1456 = vmatmul.mubr.bf16.gmra.mrb[0].mxu0 %v1228
    %v1457 = vpop.f32.mrb[0].mxu0
    %v1458 = vadd.f32 %v1361, %v1457
    %v1459 = vpop.f32.mrb[0].mxu0
    %v1460 = vpop.f32.mrb[0].mxu0
    %v1461 = vadd.f32 %v1364, %v1460
    %v1462 = vpop.f32.mrb[0].mxu0
    %1463 = vmatprep.mubr.bf16.mxu0 %v1234
    %1464 = vmatmul.mubr.bf16.gmra.mrb[0].mxu0 %v1233
    %v1465 = vpop.f32.mrb[0].mxu0
    %v1466 = vadd.f32 %v1369, %v1465
    %v1467 = vpop.f32.mrb[0].mxu0
    %v1468 = vpop.f32.mrb[0].mxu0
    %v1469 = vadd.f32 %v1372, %v1468
    %v1470 = vpop.f32.mrb[0].mxu0
    %1471 = vmatprep.mubr.bf16.mxu0 %v1239
    %1472 = vmatmul.mubr.bf16.gmra.mrb[0].mxu0 %v1238
    %v1473 = vpop.f32.mrb[0].mxu0
    %v1474 = vadd.f32 %v1377, %v1473
    %v1475 = vpop.f32.mrb[0].mxu0
    %v1476 = vpop.f32.mrb[0].mxu0
    %v1477 = vadd.f32 %v1380, %v1476
    %v1478 = vpop.f32.mrb[0].mxu0
    %1479 = vmatprep.mubr.bf16.mxu0 %v1244
    %1480 = vmatmul.mubr.bf16.gmra.mrb[0].mxu0 %v1243
    %v1481 = vpop.f32.mrb[0].mxu0
    %v1482 = vadd.f32 %v1385, %v1481
    %v1483 = vpop.f32.mrb[0].mxu0
    %v1484 = vpop.f32.mrb[0].mxu0
    %v1485 = vadd.f32 %v1388, %v1484
    %v1486 = vpop.f32.mrb[0].mxu0
    %1487 = vmatprep.mubr.bf16.mxu0 %v1249
    %1488 = vmatmul.mubr.bf16.gmra.mrb[0].mxu0 %v1248
    %v1489 = vpop.f32.mrb[0].mxu0
    %v1490 = vadd.f32 %v1393, %v1489
    %v1491 = vpop.f32.mrb[0].mxu0
    %v1492 = vpop.f32.mrb[0].mxu0
    %v1493 = vadd.f32 %v1396, %v1492
    %v1494 = vpop.f32.mrb[0].mxu0
    %1495 = vmatprep.mubr.bf16.mxu0 %v1254
    %1496 = vmatmul.mubr.bf16.gmra.mrb[0].mxu0 %v1253
    %v1497 = vpop.f32.mrb[0].mxu0
    %v1498 = vadd.f32 %v1401, %v1497
    %v1499 = vpop.f32.mrb[0].mxu0
    %v1500 = vpop.f32.mrb[0].mxu0
    %v1501 = vadd.f32 %v1404, %v1500
    %v1502 = vpop.f32.mrb[0].mxu0
    %1503 = vmatprep.mubr.bf16.mxu0 %v1259
    %1504 = vmatmul.mubr.bf16.gmra.mrb[0].mxu0 %v1258
    %v1505 = vpop.f32.mrb[0].mxu0
    %v1506 = vadd.f32 %v1409, %v1505
    %v1507 = vpop.f32.mrb[0].mxu0
    %v1508 = vpop.f32.mrb[0].mxu0
    %v1509 = vadd.f32 %v1412, %v1508
    %v1510 = vpop.f32.mrb[0].mxu0
    %1511 = vdwg.mxu0
    %1512 = vmatprep.subr.bf16.mxu0 0
    %1513 = vmatpush1.bf16.msra.mxu0 %v1041
    %1514 = vmatprep.subr.bf16.mxu0 0
    %1515 = vmatpush1.bf16.msra.mxu0 %v1042
    %1516 = vmatprep.subr.bf16.mxu0 0
    %1517 = vmatpush1.bf16.msra.mxu0 %v1043
    %1518 = vmatprep.subr.bf16.mxu0 0
    %1519 = vmatpush1.bf16.msra.mxu0 %v1044
    %1520 = vmatprep.subr.bf16.mxu0 0
    %1521 = vmatpush1.bf16.msra.mxu0 0
    %1522 = vmatprep.subr.bf16.mxu0 0
    %1523 = vmatpush1.bf16.msra.mxu0 0
    %1524 = vmatprep.subr.bf16.mxu0 0
    %1525 = vmatpush1.bf16.msra.mxu0 0
    %1526 = vmatprep.subr.bf16.mxu0 0
    %1527 = vmatpush1.bf16.msra.mxu0 0
    %1528 = vmatprep.subr.bf16.mxu0 0
    %1529 = vmatpush1.bf16.msra.mxu0 0
    %1530 = vmatprep.subr.bf16.mxu0 0
    %1531 = vmatpush1.bf16.msra.mxu0 0
    %1532 = vmatprep.subr.bf16.mxu0 0
    %1533 = vmatpush1.bf16.msra.mxu0 0
    %1534 = vmatprep.subr.bf16.mxu0 0
    %1535 = vmatpush1.bf16.msra.mxu0 0
    %1536 = vmatprep.subr.bf16.mxu0 0
    %1537 = vmatpush1.bf16.msra.mxu0 0
    %1538 = vmatprep.subr.bf16.mxu0 0
    %1539 = vmatpush1.bf16.msra.mxu0 0
    %1540 = vmatprep.subr.bf16.mxu0 0
    %1541 = vmatpush1.bf16.msra.mxu0 0
    %1542 = vmatprep.subr.bf16.mxu0 0
    %1543 = vmatpush1.bf16.msra.mxu0 0
    %1544 = vmatprep.mubr.bf16.mxu0 0
    %1545 = vmatmul.mubr.bf16.gmra.mrb[0].mxu0 %v1295
    %v1546 = vpop.f32.mrb[0].mxu0
    %v1547 = vadd.f32 %v1450, %v1546
    %v1548 = vpop.f32.mrb[0].mxu0
    %v1549 = vpop.f32.mrb[0].mxu0
    %v1550 = vadd.f32 %v1453, %v1549
    %v1551 = vpop.f32.mrb[0].mxu0
    %1552 = vmatprep.mubr.bf16.mxu0 0
    %1553 = vmatmul.mubr.bf16.gmra.mrb[0].mxu0 %v1298
    %v1554 = vpop.f32.mrb[0].mxu0
    %v1555 = vadd.f32 %v1458, %v1554
    %v1556 = vpop.f32.mrb[0].mxu0
    %v1557 = vpop.f32.mrb[0].mxu0
    %v1558 = vadd.f32 %v1461, %v1557
    %v1559 = vpop.f32.mrb[0].mxu0
    %1560 = vmatprep.mubr.bf16.mxu0 0
    %1561 = vmatmul.mubr.bf16.gmra.mrb[0].mxu0 %v1301
    %v1562 = vpop.f32.mrb[0].mxu0
    %v1563 = vadd.f32 %v1466, %v1562
    %v1564 = vpop.f32.mrb[0].mxu0
    %v1565 = vpop.f32.mrb[0].mxu0
    %v1566 = vadd.f32 %v1469, %v1565
    %v1567 = vpop.f32.mrb[0].mxu0
    %1568 = vmatprep.mubr.bf16.mxu0 0
    %1569 = vmatmul.mubr.bf16.gmra.mrb[0].mxu0 %v1304
    %v1570 = vpop.f32.mrb[0].mxu0
    %v1571 = vadd.f32 %v1474, %v1570
    %v1572 = vpop.f32.mrb[0].mxu0
    %v1573 = vpop.f32.mrb[0].mxu0
    %v1574 = vadd.f32 %v1477, %v1573
    %v1575 = vpop.f32.mrb[0].mxu0
    %1576 = vmatprep.mubr.bf16.mxu0 0
    %1577 = vmatmul.mubr.bf16.gmra.mrb[0].mxu0 %v1307
    %v1578 = vpop.f32.mrb[0].mxu0
    %v1579 = vadd.f32 %v1482, %v1578
    %v1580 = vpop.f32.mrb[0].mxu0
    %v1581 = vpop.f32.mrb[0].mxu0
    %v1582 = vadd.f32 %v1485, %v1581
    %v1583 = vpop.f32.mrb[0].mxu0
    %1584 = vmatprep.mubr.bf16.mxu0 0
    %1585 = vmatmul.mubr.bf16.gmra.mrb[0].mxu0 %v1310
    %v1586 = vpop.f32.mrb[0].mxu0
    %v1587 = vadd.f32 %v1490, %v1586
    %v1588 = vpop.f32.mrb[0].mxu0
    %v1589 = vpop.f32.mrb[0].mxu0
    %v1590 = vadd.f32 %v1493, %v1589
    %v1591 = vpop.f32.mrb[0].mxu0
    %1592 = vmatprep.mubr.bf16.mxu0 0
    %1593 = vmatmul.mubr.bf16.gmra.mrb[0].mxu0 %v1313
    %v1594 = vpop.f32.mrb[0].mxu0
    %v1595 = vadd.f32 %v1498, %v1594
    %v1596 = vpop.f32.mrb[0].mxu0
    %v1597 = vpop.f32.mrb[0].mxu0
    %v1598 = vadd.f32 %v1501, %v1597
    %v1599 = vpop.f32.mrb[0].mxu0
    %1600 = vmatprep.mubr.bf16.mxu0 0
    %1601 = vmatmul.mubr.bf16.gmra.mrb[0].mxu0 %v1316
    %v1602 = vpop.f32.mrb[0].mxu0
    %v1603 = vadd.f32 %v1506, %v1602
    %v1604 = vpop.f32.mrb[0].mxu0
    %v1605 = vpop.f32.mrb[0].mxu0
    %v1606 = vadd.f32 %v1509, %v1605
    %v1607 = vpop.f32.mrb[0].mxu0
    %1608 = vdwg.mxu0
    %v1609 = vld [vmem:[%s5] sm:$0xff]
    %v1610 = vld [vmem:[%s5 + $0x8] sm:$0xff]
    %v1611 = vld [vmem:[%s5 + $0x10] sm:$0xff]
    %v1612 = vld [vmem:[%s5 + $0x18] sm:$0xff]
    %v1613 = vld [vmem:[%s6] sm:$0xff]
    %v1614 = vld [vmem:[%s6 + $0x8] sm:$0xff]
    %v1615 = vld [vmem:[%s6 + $0x10] sm:$0xff]
    %v1616 = vld [vmem:[%s6 + $0x18] sm:$0xff]
    %v1617 = vsel %vm299, %v1547, 0.0
    %1618 = vadd.xlane.f32.xlu0 %v1617
    %v1619 = vpop.xlane.xlu0 %1618
    %v1620 = vsel %vm299, %v1550, 0.0
    %1621 = vadd.xlane.f32.xlu0 %v1620
    %v1622 = vpop.xlane.xlu0 %1621
    %v1623 = vsel %vm299, %v1555, 0.0
    %1624 = vadd.xlane.f32.xlu0 %v1623
    %v1625 = vpop.xlane.xlu0 %1624
    %v1626 = vsel %vm299, %v1558, 0.0
    %1627 = vadd.xlane.f32.xlu0 %v1626
    %v1628 = vpop.xlane.xlu0 %1627
    %v1629 = vsel %vm299, %v1563, 0.0
    %1630 = vadd.xlane.f32.xlu0 %v1629
    %v1631 = vpop.xlane.xlu0 %1630
    %v1632 = vsel %vm299, %v1566, 0.0
    %1633 = vadd.xlane.f32.xlu0 %v1632
    %v1634 = vpop.xlane.xlu0 %1633
    %v1635 = vsel %vm299, %v1571, 0.0
    %1636 = vadd.xlane.f32.xlu0 %v1635
    %v1637 = vpop.xlane.xlu0 %1636
    %v1638 = vsel %vm299, %v1574, 0.0
    %1639 = vadd.xlane.f32.xlu0 %v1638
    %v1640 = vpop.xlane.xlu0 %1639
    %v1641 = vsel %vm299, %v1579, 0.0
    %1642 = vadd.xlane.f32.xlu0 %v1641
    %v1643 = vpop.xlane.xlu0 %1642
    %v1644 = vsel %vm299, %v1582, 0.0
    %1645 = vadd.xlane.f32.xlu0 %v1644
    %v1646 = vpop.xlane.xlu0 %1645
    %v1647 = vsel %vm299, %v1587, 0.0
    %1648 = vadd.xlane.f32.xlu0 %v1647
    %v1649 = vpop.xlane.xlu0 %1648
    %v1650 = vsel %vm299, %v1590, 0.0
    %1651 = vadd.xlane.f32.xlu0 %v1650
    %v1652 = vpop.xlane.xlu0 %1651
    %v1653 = vsel %vm299, %v1595, 0.0
    %1654 = vadd.xlane.f32.xlu0 %v1653
    %v1655 = vpop.xlane.xlu0 %1654
    %v1656 = vsel %vm299, %v1598, 0.0
    %1657 = vadd.xlane.f32.xlu0 %v1656
    %v1658 = vpop.xlane.xlu0 %1657
    %v1659 = vsel %vm299, %v1603, 0.0
    %1660 = vadd.xlane.f32.xlu0 %v1659
    %v1661 = vpop.xlane.xlu0 %1660
    %v1662 = vsel %vm299, %v1606, 0.0
    %1663 = vadd.xlane.f32.xlu0 %v1662
    %v1664 = vpop.xlane.xlu0 %1663
    %v1665 = vmul.f32 %v1547, %v1547
    %v1666 = vmul.f32 %v1550, %v1550
    %v1667 = vmul.f32 %v1555, %v1555
    %v1668 = vmul.f32 %v1558, %v1558
    %v1669 = vmul.f32 %v1563, %v1563
    %v1670 = vmul.f32 %v1566, %v1566
    %v1671 = vmul.f32 %v1571, %v1571
    %v1672 = vmul.f32 %v1574, %v1574
    %v1673 = vmul.f32 %v1579, %v1579
    %v1674 = vmul.f32 %v1582, %v1582
    %v1675 = vmul.f32 %v1587, %v1587
    %v1676 = vmul.f32 %v1590, %v1590
    %v1677 = vmul.f32 %v1595, %v1595
    %v1678 = vmul.f32 %v1598, %v1598
    %v1679 = vmul.f32 %v1603, %v1603
    %v1680 = vmul.f32 %v1606, %v1606
    %v1681 = vsel %vm299, %v1665, 0.0
    %1682 = vadd.xlane.f32.xlu0 %v1681
    %v1683 = vpop.xlane.xlu0 %1682
    %v1684 = vsel %vm299, %v1666, 0.0
    %1685 = vadd.xlane.f32.xlu0 %v1684
    %v1686 = vpop.xlane.xlu0 %1685
    %v1687 = vsel %vm299, %v1667, 0.0
    %1688 = vadd.xlane.f32.xlu0 %v1687
    %v1689 = vpop.xlane.xlu0 %1688
    %v1690 = vsel %vm299, %v1668, 0.0
    %1691 = vadd.xlane.f32.xlu0 %v1690
    %v1692 = vpop.xlane.xlu0 %1691
    %v1693 = vsel %vm299, %v1669, 0.0
    %1694 = vadd.xlane.f32.xlu0 %v1693
    %v1695 = vpop.xlane.xlu0 %1694
    %v1696 = vsel %vm299, %v1670, 0.0
    %1697 = vadd.xlane.f32.xlu0 %v1696
    %v1698 = vpop.xlane.xlu0 %1697
    %v1699 = vsel %vm299, %v1671, 0.0
    %1700 = vadd.xlane.f32.xlu0 %v1699
    %v1701 = vpop.xlane.xlu0 %1700
    %v1702 = vsel %vm299, %v1672, 0.0
    %1703 = vadd.xlane.f32.xlu0 %v1702
    %v1704 = vpop.xlane.xlu0 %1703
    %v1705 = vsel %vm299, %v1673, 0.0
    %1706 = vadd.xlane.f32.xlu0 %v1705
    %v1707 = vpop.xlane.xlu0 %1706
    %v1708 = vsel %vm299, %v1674, 0.0
    %1709 = vadd.xlane.f32.xlu0 %v1708
    %v1710 = vpop.xlane.xlu0 %1709
    %v1711 = vsel %vm299, %v1675, 0.0
    %1712 = vadd.xlane.f32.xlu0 %v1711
    %v1713 = vpop.xlane.xlu0 %1712
    %v1714 = vsel %vm299, %v1676, 0.0
    %1715 = vadd.xlane.f32.xlu0 %v1714
    %v1716 = vpop.xlane.xlu0 %1715
    %v1717 = vsel %vm299, %v1677, 0.0
    %1718 = vadd.xlane.f32.xlu0 %v1717
    %v1719 = vpop.xlane.xlu0 %1718
    %v1720 = vsel %vm299, %v1678, 0.0
    %1721 = vadd.xlane.f32.xlu0 %v1720
    %v1722 = vpop.xlane.xlu0 %1721
    %v1723 = vsel %vm299, %v1679, 0.0
    %1724 = vadd.xlane.f32.xlu0 %v1723
    %v1725 = vpop.xlane.xlu0 %1724
    %v1726 = vsel %vm299, %v1680, 0.0
    %1727 = vadd.xlane.f32.xlu0 %v1726
    %v1728 = vpop.xlane.xlu0 %1727
    %v1729 = vadd.f32 %v1619, %v1631
    %v1730 = vadd.f32 %v1622, %v1634
    %v1731 = vadd.f32 %v1625, %v1637
    %v1732 = vadd.f32 %v1628, %v1640
    %v1733 = vadd.f32 %v1729, %v1643
    %v1734 = vadd.f32 %v1730, %v1646
    %v1735 = vadd.f32 %v1731, %v1649
    %v1736 = vadd.f32 %v1732, %v1652
    %v1737 = vadd.f32 %v1733, %v1655
    %v1738 = vadd.f32 %v1734, %v1658
    %v1739 = vadd.f32 %v1735, %v1661
    %v1740 = vadd.f32 %v1736, %v1664
    %v1741 = vadd.f32 %v1683, %v1695
    %v1742 = vadd.f32 %v1686, %v1698
    %v1743 = vadd.f32 %v1689, %v1701
    %v1744 = vadd.f32 %v1692, %v1704
    %v1745 = vadd.f32 %v1741, %v1707
    %v1746 = vadd.f32 %v1742, %v1710
    %v1747 = vadd.f32 %v1743, %v1713
    %v1748 = vadd.f32 %v1744, %v1716
    %v1749 = vadd.f32 %v1745, %v1719
    %v1750 = vadd.f32 %v1746, %v1722
    %v1751 = vadd.f32 %v1747, %v1725
    %v1752 = vadd.f32 %v1748, %v1728
    %v1753 = vrcp.pop 128.0
    %v1754 = vmul.f32 %v1737, %v1753
    %v1755 = vmul.f32 %v1738, %v1753
    %v1756 = vmul.f32 %v1739, %v1753
    %v1757 = vmul.f32 %v1740, %v1753
    %v1758 = vmul.f32 %v1749, %v1753
    %v1759 = vmul.f32 %v1750, %v1753
    %v1760 = vmul.f32 %v1751, %v1753
    %v1761 = vmul.f32 %v1752, %v1753
    %v1762 = vmul.f32 %v1754, %v1754
    %v1763 = vmul.f32 %v1755, %v1755
    %v1764 = vmul.f32 %v1756, %v1756
    %v1765 = vmul.f32 %v1757, %v1757
    %v1766 = vsub.f32 %v1758, %v1762
    %v1767 = vsub.f32 %v1759, %v1763
    %v1768 = vsub.f32 %v1760, %v1764
    %v1769 = vsub.f32 %v1761, %v1765
    %v1770 = vadd.f32 %v1766, 1e-05
    %v1771 = vadd.f32 %v1767, 1e-05
    %v1772 = vadd.f32 %v1768, 1e-05
    %v1773 = vadd.f32 %v1769, 1e-05
    %v1774 = vrsqrt.pop %v1770
    %v1775 = vrsqrt.pop %v1771
    %v1776 = vrsqrt.pop %v1772
    %v1777 = vrsqrt.pop %v1773
    %v1778 = vmul.f32 %v1609, %v1774
    %v1779 = vmul.f32 %v1610, %v1775
    %v1780 = vmul.f32 %v1611, %v1776
    %v1781 = vmul.f32 %v1612, %v1777
    %v1782 = vmul.f32 %v1754, %v1778
    %v1783 = vmul.f32 %v1755, %v1779
    %v1784 = vmul.f32 %v1756, %v1780
    %v1785 = vmul.f32 %v1757, %v1781
    %v1786 = vsub.f32 %v1613, %v1782
    %v1787 = vsub.f32 %v1614, %v1783
    %v1788 = vsub.f32 %v1615, %v1784
    %v1789 = vsub.f32 %v1616, %v1785
    %1791 = vset.pattern.permute.xlu0 0
    %1792 = vperm.xlu0 %1791, %v1778
    %v1793 = vpop.permute.xlu0 %1792
    %1796 = vset.pattern.permute.xlu0 0
    %1797 = vperm.xlu0 %1796, %v1779
    %v1798 = vpop.permute.xlu0 %1797
    %1801 = vset.pattern.permute.xlu0 0
    %1802 = vperm.xlu0 %1801, %v1780
    %v1803 = vpop.permute.xlu0 %1802
    %1806 = vset.pattern.permute.xlu0 0
    %1807 = vperm.xlu0 %1806, %v1781
    %v1808 = vpop.permute.xlu0 %1807
    %v1810 = vmul.f32 %v1547, %v1793
    %v1811 = vmul.f32 %v1550, %v1798
    %v1812 = vmul.f32 %v1555, %v1803
    %v1813 = vmul.f32 %v1558, %v1808
    %v1814 = vmul.f32 %v1563, %v1793
    %v1815 = vmul.f32 %v1566, %v1798
    %v1816 = vmul.f32 %v1571, %v1803
    %v1817 = vmul.f32 %v1574, %v1808
    %v1818 = vmul.f32 %v1579, %v1793
    %v1819 = vmul.f32 %v1582, %v1798
    %v1820 = vmul.f32 %v1587, %v1803
    %v1821 = vmul.f32 %v1590, %v1808
    %v1822 = vmul.f32 %v1595, %v1793
    %v1823 = vmul.f32 %v1598, %v1798
    %v1824 = vmul.f32 %v1603, %v1803
    %v1825 = vmul.f32 %v1606, %v1808
    %1827 = vset.pattern.permute.xlu0 0
    %1828 = vperm.xlu0 %1827, %v1786
    %v1829 = vpop.permute.xlu0 %1828
    %1832 = vset.pattern.permute.xlu0 0
    %1833 = vperm.xlu0 %1832, %v1787
    %v1834 = vpop.permute.xlu0 %1833
    %1837 = vset.pattern.permute.xlu0 0
    %1838 = vperm.xlu0 %1837, %v1788
    %v1839 = vpop.permute.xlu0 %1838
    %1842 = vset.pattern.permute.xlu0 0
    %1843 = vperm.xlu0 %1842, %v1789
    %v1844 = vpop.permute.xlu0 %1843
    %v1846 = vadd.f32 %v1810, %v1829
    %v1847 = vadd.f32 %v1811, %v1834
    %v1848 = vadd.f32 %v1812, %v1839
    %v1849 = vadd.f32 %v1813, %v1844
    %v1850 = vadd.f32 %v1814, %v1829
    %v1851 = vadd.f32 %v1815, %v1834
    %v1852 = vadd.f32 %v1816, %v1839
    %v1853 = vadd.f32 %v1817, %v1844
    %v1854 = vadd.f32 %v1818, %v1829
    %v1855 = vadd.f32 %v1819, %v1834
    %v1856 = vadd.f32 %v1820, %v1839
    %v1857 = vadd.f32 %v1821, %v1844
    %v1858 = vadd.f32 %v1822, %v1829
    %v1859 = vadd.f32 %v1823, %v1834
    %v1860 = vadd.f32 %v1824, %v1839
    %v1861 = vadd.f32 %v1825, %v1844
    %v1862 = vmax.f32 %v1846, 0.0
    %v1863 = vmax.f32 %v1847, 0.0
    %v1864 = vmax.f32 %v1848, 0.0
    %v1865 = vmax.f32 %v1849, 0.0
    %v1866 = vmax.f32 %v1850, 0.0
    %v1867 = vmax.f32 %v1851, 0.0
    %v1868 = vmax.f32 %v1852, 0.0
    %v1869 = vmax.f32 %v1853, 0.0
    %v1870 = vmax.f32 %v1854, 0.0
    %v1871 = vmax.f32 %v1855, 0.0
    %v1872 = vmax.f32 %v1856, 0.0
    %v1873 = vmax.f32 %v1857, 0.0
    %v1874 = vmax.f32 %v1858, 0.0
    %v1875 = vmax.f32 %v1859, 0.0
    %v1876 = vmax.f32 %v1860, 0.0
    %v1877 = vmax.f32 %v1861, 0.0
    %v1878 = vpack.c.bf16 %v1863, %v1862
    %v1879 = vpack.c.bf16 %v1865, %v1864
    %v1880 = vpack.c.bf16 %v1867, %v1866
    %v1881 = vpack.c.bf16 %v1869, %v1868
    %v1882 = vpack.c.bf16 %v1871, %v1870
    %v1883 = vpack.c.bf16 %v1873, %v1872
    %v1884 = vpack.c.bf16 %v1875, %v1874
    %v1885 = vpack.c.bf16 %v1877, %v1876
    %v1894 = vunpack.c.l.b16 %v1878
    %v1895 = vunpack.c.h.b16 %v1878
    %v1896 = vunpack.c.l.b16 %v1879
    %v1897 = vunpack.c.h.b16 %v1879
    %v1898 = vunpack.c.l.b16 %v1880
    %v1899 = vunpack.c.h.b16 %v1880
    %v1900 = vunpack.c.l.b16 %v1881
    %v1901 = vunpack.c.h.b16 %v1881
    %v1902 = vunpack.c.l.b16 %v1882
    %v1903 = vunpack.c.h.b16 %v1882
    %v1904 = vunpack.c.l.b16 %v1883
    %v1905 = vunpack.c.h.b16 %v1883
    %v1906 = vunpack.c.l.b16 %v1884
    %v1907 = vunpack.c.h.b16 %v1884
    %v1908 = vunpack.c.l.b16 %v1885
    %v1909 = vunpack.c.h.b16 %v1885
    %v1910 = vpack.c.b16 %v1894, %v1894
    %v1911 = vpack.c.b16 %v1895, %v1895
    %v1912 = vpack.c.b16 %v1896, %v1896
    %v1913 = vpack.c.b16 %v1897, %v1897
    %v1914 = vpack.c.b16 %v1898, %v1898
    %v1915 = vpack.c.b16 %v1899, %v1899
    %v1916 = vpack.c.b16 %v1900, %v1900
    %v1917 = vpack.c.b16 %v1901, %v1901
    %v1918 = vpack.c.b16 %v1902, %v1902
    %v1919 = vpack.c.b16 %v1903, %v1903
    %v1920 = vpack.c.b16 %v1904, %v1904
    %v1921 = vpack.c.b16 %v1905, %v1905
    %v1922 = vpack.c.b16 %v1906, %v1906
    %v1923 = vpack.c.b16 %v1907, %v1907
    %v1924 = vpack.c.b16 %v1908, %v1908
    %v1925 = vpack.c.b16 %v1909, %v1909
    %vm1942 = vcmask 257024
    %1943 = vst.msk [vmem:[%s8] sm:$0xf] %vm1942, %v1910
    %1944 = vst.msk [vmem:[%s8 + $0x4] sm:$0xf] %vm1942, %v1911
    %1945 = vst.msk [vmem:[%s8 + $0x8] sm:$0xf] %vm1942, %v1912
    %1946 = vst.msk [vmem:[%s8 + $0xc] sm:$0xf] %vm1942, %v1913
    %1947 = vst.msk [vmem:[%s8 + $0x10] sm:$0xf] %vm1942, %v1914
    %1948 = vst.msk [vmem:[%s8 + $0x14] sm:$0xf] %vm1942, %v1915
    %1949 = vst.msk [vmem:[%s8 + $0x18] sm:$0xf] %vm1942, %v1916
    %1950 = vst.msk [vmem:[%s8 + $0x1c] sm:$0xf] %vm1942, %v1917
    %1951 = vst.msk [vmem:[%s8 + $0x20] sm:$0xf] %vm1942, %v1918
    %1952 = vst.msk [vmem:[%s8 + $0x24] sm:$0xf] %vm1942, %v1919
    %1953 = vst.msk [vmem:[%s8 + $0x28] sm:$0xf] %vm1942, %v1920
    %1954 = vst.msk [vmem:[%s8 + $0x2c] sm:$0xf] %vm1942, %v1921
    %1955 = vst.msk [vmem:[%s8 + $0x30] sm:$0xf] %vm1942, %v1922
    %1956 = vst.msk [vmem:[%s8 + $0x34] sm:$0xf] %vm1942, %v1923
    %1957 = vst.msk [vmem:[%s8 + $0x38] sm:$0xf] %vm1942, %v1924
    %1958 = vst.msk [vmem:[%s8 + $0x3c] sm:$0xf] %vm1942, %v1925
    // Predicated region
    $region42: #{generator_forward.4} parent=1 // pred_check
      _
    $region43: #{generator_forward.4} parent=1 // pred_check_branch
      %1960 = sbr.rel (0) target = $region45
    $region44: #{generator_forward.4} parent=1 // pred_region
      _
    $region45: #{generator_forward.4} parent=1 // pred_fallthru
      _
    // Predicated region
    $region46: #{generator_forward.4} parent=1 // pred_check
      _
    $region47: #{generator_forward.4} parent=1 // pred_check_branch
      %1962 = sbr.rel (0) target = $region49
    $region48: #{generator_forward.4} parent=1 // pred_region
      _
    $region49: #{generator_forward.4} parent=1 // pred_fallthru
      _
    %1963 = vsyncpa [#allocation3], 1
    %1964 = vsyncpa [#allocation5], 1

// kernel: generator_forward.6
$region0: #{generator_forward.6}
  #allocation0 [shape = 'u32[]', space=smem, size = 0x4, offset = 0x4, fixed_abs, tag = 'smem constant byte address 0x4 - core index']
  #allocation1 [shape = 'u32[144,128]{1,0:T(1,128)}', space=vmem, size = 0x12000, scoped, tag = 'internal scratch']
  %s0 = inlined_call_operand.vmem [shape: bf16[16,512], index: 0, kind: input, shape index: {}]
  %s1 = inlined_call_operand.vmem [shape: bf16[32,144], index: 1, kind: input, shape index: {}]
  %s2 = inlined_call_operand.vmem [shape: f32[8,1], index: 2, kind: input, shape index: {}]
  %s3 = inlined_call_operand.vmem [shape: f32[8,1], index: 3, kind: input, shape index: {}]
  %s4 = inlined_call_operand.vmem [shape: f32[9,512], index: 4, kind: input, shape index: {}]
  %s5 = inlined_call_operand.vmem [shape: bf16[32,512], index: 5, kind: output, shape index: {}]
  %s6 = sld [smem:[#allocation0]]
  $region30: #{generator_forward.6} parent=0
    _
  %s8 = ssub.s32 1, %s6
  %s9 = scalar_select 0, %s8, %s6
  // Predicated region
  $region2: #{generator_forward.6} parent=0 // pred_check
    _
  $region3: #{generator_forward.6} parent=0 // pred_check_branch
    %11 = sbr.rel (0) target = $region5
  $region4: #{generator_forward.6} parent=0 // pred_region
    _
  $region5: #{generator_forward.6} parent=0 // pred_fallthru
    _
  // Predicated region
  $region6: #{generator_forward.6} parent=0 // pred_check
    _
  $region7: #{generator_forward.6} parent=0 // pred_check_branch
    %13 = sbr.rel (0) target = $region9
  $region8: #{generator_forward.6} parent=0 // pred_region
    _
  $region9: #{generator_forward.6} parent=0 // pred_fallthru
    _
  // Predicated region
  $region10: #{generator_forward.6} parent=0 // pred_check
    _
  $region11: #{generator_forward.6} parent=0 // pred_check_branch
    %15 = sbr.rel (0) target = $region13
  $region12: #{generator_forward.6} parent=0 // pred_region
    _
  $region13: #{generator_forward.6} parent=0 // pred_fallthru
    _
  // Predicated region
  $region14: #{generator_forward.6} parent=0 // pred_check
    _
  $region15: #{generator_forward.6} parent=0 // pred_check_branch
    %17 = sbr.rel (0) target = $region17
  $region16: #{generator_forward.6} parent=0 // pred_region
    _
  $region17: #{generator_forward.6} parent=0 // pred_fallthru
    _
  // Predicated region
  $region18: #{generator_forward.6} parent=0 // pred_check
    _
  $region19: #{generator_forward.6} parent=0 // pred_check_branch
    %19 = sbr.rel (0) target = $region21
  $region20: #{generator_forward.6} parent=0 // pred_region
    _
  $region21: #{generator_forward.6} parent=0 // pred_fallthru
    _
  %v21 = vld [vmem:[%s0] sm:$0xff]
  %v22 = vld [vmem:[%s0 + $0x8] sm:$0xff]
  %v23 = vld [vmem:[%s0 + $0x10] sm:$0xff]
  %v24 = vld [vmem:[%s0 + $0x18] sm:$0xff]
  %v25 = vunpack.c.l.bf16 %v21
  %v26 = vunpack.c.h.bf16 %v21
  %v27 = vunpack.c.l.bf16 %v22
  %v28 = vunpack.c.h.bf16 %v22
  %v29 = vunpack.c.l.bf16 %v23
  %v30 = vunpack.c.h.bf16 %v23
  %v31 = vunpack.c.l.bf16 %v24
  %v32 = vunpack.c.h.bf16 %v24
  %v33 = vld [vmem:[%s4] sm:$0xff]
  %v34 = vld [vmem:[%s4 + $0x8] sm:$0xff]
  %v35 = vld [vmem:[%s4 + $0x10] sm:$0xff]
  %v36 = vld [vmem:[%s4 + $0x18] sm:$0xff]
  %v37 = vld [vmem:[%s4 + $0x20] sm:$0x1]
  %v38 = vld [vmem:[%s4 + $0x28] sm:$0x1]
  %v39 = vld [vmem:[%s4 + $0x30] sm:$0x1]
  %v40 = vld [vmem:[%s4 + $0x38] sm:$0x1]
  %49 = vrot.lane.b32.xlu0 %v25, 34
  %v50 = vpop.permute.xlu0 %49
  %51 = vrot.lane.b32.xlu0 %v26, 34
  %v52 = vpop.permute.xlu0 %51
  %53 = vrot.lane.b32.xlu0 %v27, 34
  %v54 = vpop.permute.xlu0 %53
  %55 = vrot.lane.b32.xlu0 %v28, 34
  %v56 = vpop.permute.xlu0 %55
  %57 = vrot.lane.b32.xlu0 %v29, 34
  %v58 = vpop.permute.xlu0 %57
  %59 = vrot.lane.b32.xlu0 %v30, 34
  %v60 = vpop.permute.xlu0 %59
  %61 = vrot.lane.b32.xlu0 %v31, 34
  %v62 = vpop.permute.xlu0 %61
  %63 = vrot.lane.b32.xlu0 %v32, 34
  %v64 = vpop.permute.xlu0 %63
  %vm65 = vcmask 277504
  %v66 = vsel %vm65, %v50, %v52
  %v67 = vsel %vm65, %v52, %v54
  %v68 = vsel %vm65, %v54, %v56
  %v69 = vsel %vm65, %v58, %v60
  %v70 = vsel %vm65, %v60, %v62
  %v71 = vsel %vm65, %v62, %v64
  %v82 = vsel %vm65, 0.0, %v50
  %v83 = vsel %vm65, 0.0, %v58
  %v84 = vsel %vm65, %v56, 0.0
  %v85 = vsel %vm65, %v64, 0.0
  %v86 = vlaneseq
  %v87 = vshrl.u32 %v86, 7
  %v88 = vsub.s32 0, %v87
  %v89 = vrot.slane %v33, %v88
  %v90 = vlaneseq
  %v91 = vshrl.u32 %v90, 7
  %v92 = vsub.s32 0, %v91
  %v93 = vrot.slane %v34, %v92
  %v94 = vlaneseq
  %v95 = vshrl.u32 %v94, 7
  %v96 = vsub.s32 0, %v95
  %v97 = vrot.slane %v35, %v96
  %v98 = vlaneseq
  %v99 = vshrl.u32 %v98, 7
  %v100 = vsub.s32 0, %v99
  %v101 = vrot.slane %v36, %v100
  %v102 = vmul.f32 %v82, %v89
  %v103 = vmul.f32 %v66, %v93
  %v104 = vmul.f32 %v67, %v97
  %v105 = vmul.f32 %v68, %v101
  %v106 = vmul.f32 %v83, %v89
  %v107 = vmul.f32 %v69, %v93
  %v108 = vmul.f32 %v70, %v97
  %v109 = vmul.f32 %v71, %v101
  %v110 = vlaneseq
  %v111 = vshrl.u32 %v110, 7
  %v112 = vsub.s32 1, %v111
  %v113 = vrot.slane %v33, %v112
  %v114 = vlaneseq
  %v115 = vshrl.u32 %v114, 7
  %v116 = vsub.s32 1, %v115
  %v117 = vrot.slane %v34, %v116
  %v118 = vlaneseq
  %v119 = vshrl.u32 %v118, 7
  %v120 = vsub.s32 1, %v119
  %v121 = vrot.slane %v35, %v120
  %v122 = vlaneseq
  %v123 = vshrl.u32 %v122, 7
  %v124 = vsub.s32 1, %v123
  %v125 = vrot.slane %v36, %v124
  %130 = vrot.lane.b32.xlu0 %v113, 2
  %v131 = vpop.permute.xlu0 %130
  %132 = vrot.lane.b32.xlu0 %v117, 2
  %v133 = vpop.permute.xlu0 %132
  %134 = vrot.lane.b32.xlu0 %v121, 2
  %v135 = vpop.permute.xlu0 %134
  %136 = vrot.lane.b32.xlu0 %v125, 2
  %v137 = vpop.permute.xlu0 %136
  %vm138 = vcmask 15360
  %v139 = vsel %vm138, %v131, %v133
  %v140 = vsel %vm138, %v133, %v135
  %v141 = vsel %vm138, %v135, %v137
  %v147 = vmul.f32 %v82, %v131
  %v148 = vmul.f32 %v66, %v139
  %v149 = vmul.f32 %v67, %v140
  %v150 = vmul.f32 %v68, %v141
  %v151 = vmul.f32 %v84, %v137
  %v152 = vmul.f32 %v83, %v131
  %v153 = vmul.f32 %v69, %v139
  %v154 = vmul.f32 %v70, %v140
  %v155 = vmul.f32 %v71, %v141
  %v156 = vmul.f32 %v85, %v137
  %v157 = vlaneseq
  %v158 = vshrl.u32 %v157, 7
  %v159 = vsub.s32 2, %v158
  %v160 = vrot.slane %v33, %v159
  %v161 = vlaneseq
  %v162 = vshrl.u32 %v161, 7
  %v163 = vsub.s32 2, %v162
  %v164 = vrot.slane %v34, %v163
  %v165 = vlaneseq
  %v166 = vshrl.u32 %v165, 7
  %v167 = vsub.s32 2, %v166
  %v168 = vrot.slane %v35, %v167
  %v169 = vlaneseq
  %v170 = vshrl.u32 %v169, 7
  %v171 = vsub.s32 2, %v170
  %v172 = vrot.slane %v36, %v171
  %177 = vrot.lane.b32.xlu0 %v160, 4
  %v178 = vpop.permute.xlu0 %177
  %179 = vrot.lane.b32.xlu0 %v164, 4
  %v180 = vpop.permute.xlu0 %179
  %181 = vrot.lane.b32.xlu0 %v168, 4
  %v182 = vpop.permute.xlu0 %181
  %183 = vrot.lane.b32.xlu0 %v172, 4
  %v184 = vpop.permute.xlu0 %183
  %vm185 = vcmask 31744
  %v186 = vsel %vm185, %v178, %v180
  %v187 = vsel %vm185, %v180, %v182
  %v188 = vsel %vm185, %v182, %v184
  %v194 = vmul.f32 %v82, %v178
  %v195 = vmul.f32 %v66, %v186
  %v196 = vmul.f32 %v67, %v187
  %v197 = vmul.f32 %v68, %v188
  %v198 = vmul.f32 %v84, %v184
  %v199 = vmul.f32 %v83, %v178
  %v200 = vmul.f32 %v69, %v186
  %v201 = vmul.f32 %v70, %v187
  %v202 = vmul.f32 %v71, %v188
  %v203 = vmul.f32 %v85, %v184
  %v204 = vlaneseq
  %v205 = vshrl.u32 %v204, 7
  %v206 = vsub.s32 3, %v205
  %v207 = vrot.slane %v33, %v206
  %v208 = vlaneseq
  %v209 = vshrl.u32 %v208, 7
  %v210 = vsub.s32 3, %v209
  %v211 = vrot.slane %v34, %v210
  %v212 = vlaneseq
  %v213 = vshrl.u32 %v212, 7
  %v214 = vsub.s32 3, %v213
  %v215 = vrot.slane %v35, %v214
  %v216 = vlaneseq
  %v217 = vshrl.u32 %v216, 7
  %v218 = vsub.s32 3, %v217
  %v219 = vrot.slane %v36, %v218
  %224 = vrot.lane.b32.xlu0 %v207, 32
  %v225 = vpop.permute.xlu0 %224
  %226 = vrot.lane.b32.xlu0 %v211, 32
  %v227 = vpop.permute.xlu0 %226
  %228 = vrot.lane.b32.xlu0 %v215, 32
  %v229 = vpop.permute.xlu0 %228
  %230 = vrot.lane.b32.xlu0 %v219, 32
  %v231 = vpop.permute.xlu0 %230
  %vm232 = vcmask 261120
  %v233 = vsel %vm232, %v225, %v227
  %v234 = vsel %vm232, %v227, %v229
  %v235 = vsel %vm232, %v229, %v231
  %v241 = vmul.f32 %v82, %v225
  %v242 = vmul.f32 %v66, %v233
  %v243 = vmul.f32 %v67, %v234
  %v244 = vmul.f32 %v68, %v235
  %v245 = vmul.f32 %v84, %v231
  %v246 = vmul.f32 %v83, %v225
  %v247 = vmul.f32 %v69, %v233
  %v248 = vmul.f32 %v70, %v234
  %v249 = vmul.f32 %v71, %v235
  %v250 = vmul.f32 %v85, %v231
  %v251 = vlaneseq
  %v252 = vshrl.u32 %v251, 7
  %v253 = vsub.s32 4, %v252
  %v254 = vrot.slane %v33, %v253
  %v255 = vlaneseq
  %v256 = vshrl.u32 %v255, 7
  %v257 = vsub.s32 4, %v256
  %v258 = vrot.slane %v34, %v257
  %v259 = vlaneseq
  %v260 = vshrl.u32 %v259, 7
  %v261 = vsub.s32 4, %v260
  %v262 = vrot.slane %v35, %v261
  %v263 = vlaneseq
  %v264 = vshrl.u32 %v263, 7
  %v265 = vsub.s32 4, %v264
  %v266 = vrot.slane %v36, %v265
  %271 = vrot.lane.b32.xlu0 %v254, 34
  %v272 = vpop.permute.xlu0 %271
  %273 = vrot.lane.b32.xlu0 %v258, 34
  %v274 = vpop.permute.xlu0 %273
  %275 = vrot.lane.b32.xlu0 %v262, 34
  %v276 = vpop.permute.xlu0 %275
  %277 = vrot.lane.b32.xlu0 %v266, 34
  %v278 = vpop.permute.xlu0 %277
  %v279 = vsel %vm65, %v272, %v274
  %v280 = vsel %vm65, %v274, %v276
  %v281 = vsel %vm65, %v276, %v278
  %v287 = vmul.f32 %v82, %v272
  %v288 = vmul.f32 %v66, %v279
  %v289 = vmul.f32 %v67, %v280
  %v290 = vmul.f32 %v68, %v281
  %v291 = vmul.f32 %v84, %v278
  %v292 = vmul.f32 %v83, %v272
  %v293 = vmul.f32 %v69, %v279
  %v294 = vmul.f32 %v70, %v280
  %v295 = vmul.f32 %v71, %v281
  %v296 = vmul.f32 %v85, %v278
  %v297 = vlaneseq
  %v298 = vshrl.u32 %v297, 7
  %v299 = vsub.s32 5, %v298
  %v300 = vrot.slane %v33, %v299
  %v301 = vlaneseq
  %v302 = vshrl.u32 %v301, 7
  %v303 = vsub.s32 5, %v302
  %v304 = vrot.slane %v34, %v303
  %v305 = vlaneseq
  %v306 = vshrl.u32 %v305, 7
  %v307 = vsub.s32 5, %v306
  %v308 = vrot.slane %v35, %v307
  %v309 = vlaneseq
  %v310 = vshrl.u32 %v309, 7
  %v311 = vsub.s32 5, %v310
  %v312 = vrot.slane %v36, %v311
  %317 = vrot.lane.b32.xlu0 %v300, 36
  %v318 = vpop.permute.xlu0 %317
  %319 = vrot.lane.b32.xlu0 %v304, 36
  %v320 = vpop.permute.xlu0 %319
  %321 = vrot.lane.b32.xlu0 %v308, 36
  %v322 = vpop.permute.xlu0 %321
  %323 = vrot.lane.b32.xlu0 %v312, 36
  %v324 = vpop.permute.xlu0 %323
  %vm325 = vcmask 293888
  %v326 = vsel %vm325, %v318, %v320
  %v327 = vsel %vm325, %v320, %v322
  %v328 = vsel %vm325, %v322, %v324
  %v334 = vmul.f32 %v82, %v318
  %v335 = vmul.f32 %v66, %v326
  %v336 = vmul.f32 %v67, %v327
  %v337 = vmul.f32 %v68, %v328
  %v338 = vmul.f32 %v84, %v324
  %v339 = vmul.f32 %v83, %v318
  %v340 = vmul.f32 %v69, %v326
  %v341 = vmul.f32 %v70, %v327
  %v342 = vmul.f32 %v71, %v328
  %v343 = vmul.f32 %v85, %v324
  %v344 = vlaneseq
  %v345 = vshrl.u32 %v344, 7
  %v346 = vsub.s32 6, %v345
  %v347 = vrot.slane %v33, %v346
  %v348 = vlaneseq
  %v349 = vshrl.u32 %v348, 7
  %v350 = vsub.s32 6, %v349
  %v351 = vrot.slane %v34, %v350
  %v352 = vlaneseq
  %v353 = vshrl.u32 %v352, 7
  %v354 = vsub.s32 6, %v353
  %v355 = vrot.slane %v35, %v354
  %v356 = vlaneseq
  %v357 = vshrl.u32 %v356, 7
  %v358 = vsub.s32 6, %v357
  %v359 = vrot.slane %v36, %v358
  %364 = vrot.lane.b32.xlu0 %v347, 64
  %v365 = vpop.permute.xlu0 %364
  %366 = vrot.lane.b32.xlu0 %v351, 64
  %v367 = vpop.permute.xlu0 %366
  %368 = vrot.lane.b32.xlu0 %v355, 64
  %v369 = vpop.permute.xlu0 %368
  %370 = vrot.lane.b32.xlu0 %v359, 64
  %v371 = vpop.permute.xlu0 %370
  %vm372 = vcmask 523264
  %v373 = vsel %vm372, %v365, %v367
  %v374 = vsel %vm372, %v367, %v369
  %v375 = vsel %vm372, %v369, %v371
  %v381 = vmul.f32 %v82, %v365
  %v382 = vmul.f32 %v66, %v373
  %v383 = vmul.f32 %v67, %v374
  %v384 = vmul.f32 %v68, %v375
  %v385 = vmul.f32 %v84, %v371
  %v386 = vmul.f32 %v83, %v365
  %v387 = vmul.f32 %v69, %v373
  %v388 = vmul.f32 %v70, %v374
  %v389 = vmul.f32 %v71, %v375
  %v390 = vmul.f32 %v85, %v371
  %v391 = vlaneseq
  %v392 = vshrl.u32 %v391, 7
  %v393 = vsub.s32 7, %v392
  %v394 = vrot.slane %v33, %v393
  %v395 = vlaneseq
  %v396 = vshrl.u32 %v395, 7
  %v397 = vsub.s32 7, %v396
  %v398 = vrot.slane %v34, %v397
  %v399 = vlaneseq
  %v400 = vshrl.u32 %v399, 7
  %v401 = vsub.s32 7, %v400
  %v402 = vrot.slane %v35, %v401
  %v403 = vlaneseq
  %v404 = vshrl.u32 %v403, 7
  %v405 = vsub.s32 7, %v404
  %v406 = vrot.slane %v36, %v405
  %411 = vrot.lane.b32.xlu0 %v394, 66
  %v412 = vpop.permute.xlu0 %411
  %413 = vrot.lane.b32.xlu0 %v398, 66
  %v414 = vpop.permute.xlu0 %413
  %415 = vrot.lane.b32.xlu0 %v402, 66
  %v416 = vpop.permute.xlu0 %415
  %417 = vrot.lane.b32.xlu0 %v406, 66
  %v418 = vpop.permute.xlu0 %417
  %vm419 = vcmask 539648
  %v420 = vsel %vm419, %v412, %v414
  %v421 = vsel %vm419, %v414, %v416
  %v422 = vsel %vm419, %v416, %v418
  %v428 = vmul.f32 %v82, %v412
  %v429 = vmul.f32 %v66, %v420
  %v430 = vmul.f32 %v67, %v421
  %v431 = vmul.f32 %v68, %v422
  %v432 = vmul.f32 %v84, %v418
  %v433 = vmul.f32 %v83, %v412
  %v434 = vmul.f32 %v69, %v420
  %v435 = vmul.f32 %v70, %v421
  %v436 = vmul.f32 %v71, %v422
  %v437 = vmul.f32 %v85, %v418
  %v438 = vlaneseq
  %v439 = vshrl.u32 %v438, 7
  %v440 = vsub.s32 0, %v439
  %v441 = vrot.slane %v37, %v440
  %v442 = vlaneseq
  %v443 = vshrl.u32 %v442, 7
  %v444 = vsub.s32 0, %v443
  %v445 = vrot.slane %v38, %v444
  %v446 = vlaneseq
  %v447 = vshrl.u32 %v446, 7
  %v448 = vsub.s32 0, %v447
  %v449 = vrot.slane %v39, %v448
  %v450 = vlaneseq
  %v451 = vshrl.u32 %v450, 7
  %v452 = vsub.s32 0, %v451
  %v453 = vrot.slane %v40, %v452
  %458 = vrot.lane.b32.xlu0 %v441, 68
  %v459 = vpop.permute.xlu0 %458
  %460 = vrot.lane.b32.xlu0 %v445, 68
  %v461 = vpop.permute.xlu0 %460
  %462 = vrot.lane.b32.xlu0 %v449, 68
  %v463 = vpop.permute.xlu0 %462
  %464 = vrot.lane.b32.xlu0 %v453, 68
  %v465 = vpop.permute.xlu0 %464
  %vm466 = vcmask 556032
  %v467 = vsel %vm466, %v459, %v461
  %v468 = vsel %vm466, %v461, %v463
  %v469 = vsel %vm466, %v463, %v465
  %v475 = vmul.f32 %v82, %v459
  %v476 = vmul.f32 %v66, %v467
  %v477 = vmul.f32 %v67, %v468
  %v478 = vmul.f32 %v68, %v469
  %v479 = vmul.f32 %v84, %v465
  %v480 = vmul.f32 %v83, %v459
  %v481 = vmul.f32 %v69, %v467
  %v482 = vmul.f32 %v70, %v468
  %v483 = vmul.f32 %v71, %v469
  %v484 = vmul.f32 %v85, %v465
  %495 = vrot.lane.b32.xlu0 %v147, 126
  %v496 = vpop.permute.xlu0 %495
  %497 = vrot.lane.b32.xlu0 %v148, 126
  %v498 = vpop.permute.xlu0 %497
  %499 = vrot.lane.b32.xlu0 %v149, 126
  %v500 = vpop.permute.xlu0 %499
  %501 = vrot.lane.b32.xlu0 %v150, 126
  %v502 = vpop.permute.xlu0 %501
  %503 = vrot.lane.b32.xlu0 %v151, 126
  %v504 = vpop.permute.xlu0 %503
  %505 = vrot.lane.b32.xlu0 %v152, 126
  %v506 = vpop.permute.xlu0 %505
  %507 = vrot.lane.b32.xlu0 %v153, 126
  %v508 = vpop.permute.xlu0 %507
  %509 = vrot.lane.b32.xlu0 %v154, 126
  %v510 = vpop.permute.xlu0 %509
  %511 = vrot.lane.b32.xlu0 %v155, 126
  %v512 = vpop.permute.xlu0 %511
  %513 = vrot.lane.b32.xlu0 %v156, 126
  %v514 = vpop.permute.xlu0 %513
  %vm515 = vcmask 1031168
  %v516 = vsel %vm515, %v496, %v498
  %v517 = vsel %vm515, %v498, %v500
  %v518 = vsel %vm515, %v500, %v502
  %v519 = vsel %vm515, %v502, %v504
  %v520 = vsel %vm515, %v506, %v508
  %v521 = vsel %vm515, %v508, %v510
  %v522 = vsel %vm515, %v510, %v512
  %v523 = vsel %vm515, %v512, %v514
  %542 = vrot.lane.b32.xlu0 %v194, 124
  %v543 = vpop.permute.xlu0 %542
  %544 = vrot.lane.b32.xlu0 %v195, 124
  %v545 = vpop.permute.xlu0 %544
  %546 = vrot.lane.b32.xlu0 %v196, 124
  %v547 = vpop.permute.xlu0 %546
  %548 = vrot.lane.b32.xlu0 %v197, 124
  %v549 = vpop.permute.xlu0 %548
  %550 = vrot.lane.b32.xlu0 %v198, 124
  %v551 = vpop.permute.xlu0 %550
  %552 = vrot.lane.b32.xlu0 %v199, 124
  %v553 = vpop.permute.xlu0 %552
  %554 = vrot.lane.b32.xlu0 %v200, 124
  %v555 = vpop.permute.xlu0 %554
  %556 = vrot.lane.b32.xlu0 %v201, 124
  %v557 = vpop.permute.xlu0 %556
  %558 = vrot.lane.b32.xlu0 %v202, 124
  %v559 = vpop.permute.xlu0 %558
  %560 = vrot.lane.b32.xlu0 %v203, 124
  %v561 = vpop.permute.xlu0 %560
  %vm562 = vcmask 1014784
  %v563 = vsel %vm562, %v543, %v545
  %v564 = vsel %vm562, %v545, %v547
  %v565 = vsel %vm562, %v547, %v549
  %v566 = vsel %vm562, %v549, %v551
  %v567 = vsel %vm562, %v553, %v555
  %v568 = vsel %vm562, %v555, %v557
  %v569 = vsel %vm562, %v557, %v559
  %v570 = vsel %vm562, %v559, %v561
  %589 = vrot.lane.b32.xlu0 %v241, 96
  %v590 = vpop.permute.xlu0 %589
  %591 = vrot.lane.b32.xlu0 %v242, 96
  %v592 = vpop.permute.xlu0 %591
  %593 = vrot.lane.b32.xlu0 %v243, 96
  %v594 = vpop.permute.xlu0 %593
  %595 = vrot.lane.b32.xlu0 %v244, 96
  %v596 = vpop.permute.xlu0 %595
  %597 = vrot.lane.b32.xlu0 %v245, 96
  %v598 = vpop.permute.xlu0 %597
  %599 = vrot.lane.b32.xlu0 %v246, 96
  %v600 = vpop.permute.xlu0 %599
  %601 = vrot.lane.b32.xlu0 %v247, 96
  %v602 = vpop.permute.xlu0 %601
  %603 = vrot.lane.b32.xlu0 %v248, 96
  %v604 = vpop.permute.xlu0 %603
  %605 = vrot.lane.b32.xlu0 %v249, 96
  %v606 = vpop.permute.xlu0 %605
  %607 = vrot.lane.b32.xlu0 %v250, 96
  %v608 = vpop.permute.xlu0 %607
  %vm609 = vcmask 785408
  %v610 = vsel %vm609, %v590, %v592
  %v611 = vsel %vm609, %v592, %v594
  %v612 = vsel %vm609, %v594, %v596
  %v613 = vsel %vm609, %v596, %v598
  %v614 = vsel %vm609, %v600, %v602
  %v615 = vsel %vm609, %v602, %v604
  %v616 = vsel %vm609, %v604, %v606
  %v617 = vsel %vm609, %v606, %v608
  %636 = vrot.lane.b32.xlu0 %v287, 94
  %v637 = vpop.permute.xlu0 %636
  %638 = vrot.lane.b32.xlu0 %v288, 94
  %v639 = vpop.permute.xlu0 %638
  %640 = vrot.lane.b32.xlu0 %v289, 94
  %v641 = vpop.permute.xlu0 %640
  %642 = vrot.lane.b32.xlu0 %v290, 94
  %v643 = vpop.permute.xlu0 %642
  %644 = vrot.lane.b32.xlu0 %v291, 94
  %v645 = vpop.permute.xlu0 %644
  %646 = vrot.lane.b32.xlu0 %v292, 94
  %v647 = vpop.permute.xlu0 %646
  %648 = vrot.lane.b32.xlu0 %v293, 94
  %v649 = vpop.permute.xlu0 %648
  %650 = vrot.lane.b32.xlu0 %v294, 94
  %v651 = vpop.permute.xlu0 %650
  %652 = vrot.lane.b32.xlu0 %v295, 94
  %v653 = vpop.permute.xlu0 %652
  %654 = vrot.lane.b32.xlu0 %v296, 94
  %v655 = vpop.permute.xlu0 %654
  %vm656 = vcmask 769024
  %v657 = vsel %vm656, %v637, %v639
  %v658 = vsel %vm656, %v639, %v641
  %v659 = vsel %vm656, %v641, %v643
  %v660 = vsel %vm656, %v643, %v645
  %v661 = vsel %vm656, %v647, %v649
  %v662 = vsel %vm656, %v649, %v651
  %v663 = vsel %vm656, %v651, %v653
  %v664 = vsel %vm656, %v653, %v655
  %683 = vrot.lane.b32.xlu0 %v334, 92
  %v684 = vpop.permute.xlu0 %683
  %685 = vrot.lane.b32.xlu0 %v335, 92
  %v686 = vpop.permute.xlu0 %685
  %687 = vrot.lane.b32.xlu0 %v336, 92
  %v688 = vpop.permute.xlu0 %687
  %689 = vrot.lane.b32.xlu0 %v337, 92
  %v690 = vpop.permute.xlu0 %689
  %691 = vrot.lane.b32.xlu0 %v338, 92
  %v692 = vpop.permute.xlu0 %691
  %693 = vrot.lane.b32.xlu0 %v339, 92
  %v694 = vpop.permute.xlu0 %693
  %695 = vrot.lane.b32.xlu0 %v340, 92
  %v696 = vpop.permute.xlu0 %695
  %697 = vrot.lane.b32.xlu0 %v341, 92
  %v698 = vpop.permute.xlu0 %697
  %699 = vrot.lane.b32.xlu0 %v342, 92
  %v700 = vpop.permute.xlu0 %699
  %701 = vrot.lane.b32.xlu0 %v343, 92
  %v702 = vpop.permute.xlu0 %701
  %vm703 = vcmask 752640
  %v704 = vsel %vm703, %v684, %v686
  %v705 = vsel %vm703, %v686, %v688
  %v706 = vsel %vm703, %v688, %v690
  %v707 = vsel %vm703, %v690, %v692
  %v708 = vsel %vm703, %v694, %v696
  %v709 = vsel %vm703, %v696, %v698
  %v710 = vsel %vm703, %v698, %v700
  %v711 = vsel %vm703, %v700, %v702
  %730 = vrot.lane.b32.xlu0 %v381, 64
  %v731 = vpop.permute.xlu0 %730
  %732 = vrot.lane.b32.xlu0 %v382, 64
  %v733 = vpop.permute.xlu0 %732
  %734 = vrot.lane.b32.xlu0 %v383, 64
  %v735 = vpop.permute.xlu0 %734
  %736 = vrot.lane.b32.xlu0 %v384, 64
  %v737 = vpop.permute.xlu0 %736
  %738 = vrot.lane.b32.xlu0 %v385, 64
  %v739 = vpop.permute.xlu0 %738
  %740 = vrot.lane.b32.xlu0 %v386, 64
  %v741 = vpop.permute.xlu0 %740
  %742 = vrot.lane.b32.xlu0 %v387, 64
  %v743 = vpop.permute.xlu0 %742
  %744 = vrot.lane.b32.xlu0 %v388, 64
  %v745 = vpop.permute.xlu0 %744
  %746 = vrot.lane.b32.xlu0 %v389, 64
  %v747 = vpop.permute.xlu0 %746
  %748 = vrot.lane.b32.xlu0 %v390, 64
  %v749 = vpop.permute.xlu0 %748
  %v750 = vsel %vm372, %v731, %v733
  %v751 = vsel %vm372, %v733, %v735
  %v752 = vsel %vm372, %v735, %v737
  %v753 = vsel %vm372, %v737, %v739
  %v754 = vsel %vm372, %v741, %v743
  %v755 = vsel %vm372, %v743, %v745
  %v756 = vsel %vm372, %v745, %v747
  %v757 = vsel %vm372, %v747, %v749
  %776 = vrot.lane.b32.xlu0 %v428, 62
  %v777 = vpop.permute.xlu0 %776
  %778 = vrot.lane.b32.xlu0 %v429, 62
  %v779 = vpop.permute.xlu0 %778
  %780 = vrot.lane.b32.xlu0 %v430, 62
  %v781 = vpop.permute.xlu0 %780
  %782 = vrot.lane.b32.xlu0 %v431, 62
  %v783 = vpop.permute.xlu0 %782
  %784 = vrot.lane.b32.xlu0 %v432, 62
  %v785 = vpop.permute.xlu0 %784
  %786 = vrot.lane.b32.xlu0 %v433, 62
  %v787 = vpop.permute.xlu0 %786
  %788 = vrot.lane.b32.xlu0 %v434, 62
  %v789 = vpop.permute.xlu0 %788
  %790 = vrot.lane.b32.xlu0 %v435, 62
  %v791 = vpop.permute.xlu0 %790
  %792 = vrot.lane.b32.xlu0 %v436, 62
  %v793 = vpop.permute.xlu0 %792
  %794 = vrot.lane.b32.xlu0 %v437, 62
  %v795 = vpop.permute.xlu0 %794
  %vm796 = vcmask 506880
  %v797 = vsel %vm796, %v777, %v779
  %v798 = vsel %vm796, %v779, %v781
  %v799 = vsel %vm796, %v781, %v783
  %v800 = vsel %vm796, %v783, %v785
  %v801 = vsel %vm796, %v787, %v789
  %v802 = vsel %vm796, %v789, %v791
  %v803 = vsel %vm796, %v791, %v793
  %v804 = vsel %vm796, %v793, %v795
  %823 = vrot.lane.b32.xlu0 %v475, 60
  %v824 = vpop.permute.xlu0 %823
  %825 = vrot.lane.b32.xlu0 %v476, 60
  %v826 = vpop.permute.xlu0 %825
  %827 = vrot.lane.b32.xlu0 %v477, 60
  %v828 = vpop.permute.xlu0 %827
  %829 = vrot.lane.b32.xlu0 %v478, 60
  %v830 = vpop.permute.xlu0 %829
  %831 = vrot.lane.b32.xlu0 %v479, 60
  %v832 = vpop.permute.xlu0 %831
  %833 = vrot.lane.b32.xlu0 %v480, 60
  %v834 = vpop.permute.xlu0 %833
  %835 = vrot.lane.b32.xlu0 %v481, 60
  %v836 = vpop.permute.xlu0 %835
  %837 = vrot.lane.b32.xlu0 %v482, 60
  %v838 = vpop.permute.xlu0 %837
  %839 = vrot.lane.b32.xlu0 %v483, 60
  %v840 = vpop.permute.xlu0 %839
  %841 = vrot.lane.b32.xlu0 %v484, 60
  %v842 = vpop.permute.xlu0 %841
  %vm843 = vcmask 490496
  %v844 = vsel %vm843, %v824, %v826
  %v845 = vsel %vm843, %v826, %v828
  %v846 = vsel %vm843, %v828, %v830
  %v847 = vsel %vm843, %v830, %v832
  %v848 = vsel %vm843, %v834, %v836
  %v849 = vsel %vm843, %v836, %v838
  %v850 = vsel %vm843, %v838, %v840
  %v851 = vsel %vm843, %v840, %v842
  %v860 = vpack.c.bf16 %v106, %v102
  %v861 = vpack.c.bf16 %v107, %v103
  %v862 = vpack.c.bf16 %v108, %v104
  %v863 = vpack.c.bf16 %v109, %v105
  %v864 = vpack.c.bf16 %v520, %v516
  %v865 = vpack.c.bf16 %v521, %v517
  %v866 = vpack.c.bf16 %v522, %v518
  %v867 = vpack.c.bf16 %v523, %v519
  %v868 = vpack.c.bf16 %v567, %v563
  %v869 = vpack.c.bf16 %v568, %v564
  %v870 = vpack.c.bf16 %v569, %v565
  %v871 = vpack.c.bf16 %v570, %v566
  %v872 = vpack.c.bf16 %v614, %v610
  %v873 = vpack.c.bf16 %v615, %v611
  %v874 = vpack.c.bf16 %v616, %v612
  %v875 = vpack.c.bf16 %v617, %v613
  %v876 = vpack.c.bf16 %v661, %v657
  %v877 = vpack.c.bf16 %v662, %v658
  %v878 = vpack.c.bf16 %v663, %v659
  %v879 = vpack.c.bf16 %v664, %v660
  %v880 = vpack.c.bf16 %v708, %v704
  %v881 = vpack.c.bf16 %v709, %v705
  %v882 = vpack.c.bf16 %v710, %v706
  %v883 = vpack.c.bf16 %v711, %v707
  %v884 = vpack.c.bf16 %v754, %v750
  %v885 = vpack.c.bf16 %v755, %v751
  %v886 = vpack.c.bf16 %v756, %v752
  %v887 = vpack.c.bf16 %v757, %v753
  %v888 = vpack.c.bf16 %v801, %v797
  %v889 = vpack.c.bf16 %v802, %v798
  %v890 = vpack.c.bf16 %v803, %v799
  %v891 = vpack.c.bf16 %v804, %v800
  %v892 = vpack.c.bf16 %v848, %v844
  %v893 = vpack.c.bf16 %v849, %v845
  %v894 = vpack.c.bf16 %v850, %v846
  %v895 = vpack.c.bf16 %v851, %v847
  %v896 = vld [vmem:[%s1] sm:$0xff]
  %v897 = vld [vmem:[%s1 + $0x8] sm:$0xff]
  %v898 = vld [vmem:[%s1 + $0x10] sm:$0xff]
  %v899 = vld [vmem:[%s1 + $0x18] sm:$0xff]
  %v904 = vunpack.c.l.b16 %v896
  %v905 = vunpack.c.h.b16 %v896
  %v906 = vunpack.c.l.b16 %v897
  %v907 = vunpack.c.h.b16 %v897
  %v908 = vunpack.c.l.b16 %v898
  %v909 = vunpack.c.h.b16 %v898
  %v910 = vunpack.c.l.b16 %v899
  %v911 = vunpack.c.h.b16 %v899
  %v912 = vpack.c.b16 %v906, %v904
  %v913 = vpack.c.b16 %v907, %v905
  %v914 = vpack.c.b16 %v910, %v908
  %v915 = vpack.c.b16 %v911, %v909
  %vm918 = vcmask 130048
  %v920 = vsel %vm918, %v913, 0
  %v923 = vsel %vm918, %v915, 0
  %925 = vmatprep.subr.bf16.mxu0 %v861
  %926 = vmatpush1.bf16.msra.mxu0 %v860
  %927 = vmatprep.subr.bf16.mxu0 %v865
  %928 = vmatpush1.bf16.msra.mxu0 %v864
  %929 = vmatprep.subr.bf16.mxu0 %v869
  %930 = vmatpush1.bf16.msra.mxu0 %v868
  %931 = vmatprep.subr.bf16.mxu0 %v873
  %932 = vmatpush1.bf16.msra.mxu0 %v872
  %933 = vmatprep.subr.bf16.mxu0 %v877
  %934 = vmatpush1.bf16.msra.mxu0 %v876
  %935 = vmatprep.subr.bf16.mxu0 %v881
  %936 = vmatpush1.bf16.msra.mxu0 %v880
  %937 = vmatprep.subr.bf16.mxu0 %v885
  %938 = vmatpush1.bf16.msra.mxu0 %v884
  %939 = vmatprep.subr.bf16.mxu0 %v889
  %940 = vmatpush1.bf16.msra.mxu0 %v888
  %941 = vmatprep.subr.bf16.mxu0 %v893
  %942 = vmatpush1.bf16.msra.mxu0 %v892
  %943 = vmatprep.subr.bf16.mxu0 0
  %944 = vmatpush1.bf16.msra.mxu0 0
  %945 = vmatprep.subr.bf16.mxu0 0
  %946 = vmatpush1.bf16.msra.mxu0 0
  %947 = vmatprep.subr.bf16.mxu0 0
  %948 = vmatpush1.bf16.msra.mxu0 0
  %949 = vmatprep.subr.bf16.mxu0 0
  %950 = vmatpush1.bf16.msra.mxu0 0
  %951 = vmatprep.subr.bf16.mxu0 0
  %952 = vmatpush1.bf16.msra.mxu0 0
  %953 = vmatprep.subr.bf16.mxu0 0
  %954 = vmatpush1.bf16.msra.mxu0 0
  %955 = vmatprep.subr.bf16.mxu0 0
  %956 = vmatpush1.bf16.msra.mxu0 0
  %957 = vmatprep.mubr.bf16.mxu0 %v920
  %958 = vmatmul.mubr.bf16.gmra.mrb[0].mxu0 %v912
  %v959 = vpop.f32.mrb[0].mxu0
  %v960 = vadd.f32 0.0, %v959
  %v961 = vpop.f32.mrb[0].mxu0
  %v962 = vadd.f32 0.0, %v961
  %v963 = vpop.f32.mrb[0].mxu0
  %v964 = vadd.f32 0.0, %v963
  %v965 = vpop.f32.mrb[0].mxu0
  %v966 = vadd.f32 0.0, %v965
  %967 = vmatprep.mubr.bf16.mxu0 %v923
  %968 = vmatmul.mubr.bf16.gmra.mrb[0].mxu0 %v914
  %v969 = vpop.f32.mrb[0].mxu0
  %v970 = vadd.f32 0.0, %v969
  %v971 = vpop.f32.mrb[0].mxu0
  %v972 = vadd.f32 0.0, %v971
  %v973 = vpop.f32.mrb[0].mxu0
  %v974 = vadd.f32 0.0, %v973
  %v975 = vpop.f32.mrb[0].mxu0
  %v976 = vadd.f32 0.0, %v975
  %977 = vdwg.mxu0
  %978 = vmatprep.subr.bf16.mxu0 %v863
  %979 = vmatpush1.bf16.msra.mxu0 %v862
  %980 = vmatprep.subr.bf16.mxu0 %v867
  %981 = vmatpush1.bf16.msra.mxu0 %v866
  %982 = vmatprep.subr.bf16.mxu0 %v871
  %983 = vmatpush1.bf16.msra.mxu0 %v870
  %984 = vmatprep.subr.bf16.mxu0 %v875
  %985 = vmatpush1.bf16.msra.mxu0 %v874
  %986 = vmatprep.subr.bf16.mxu0 %v879
  %987 = vmatpush1.bf16.msra.mxu0 %v878
  %988 = vmatprep.subr.bf16.mxu0 %v883
  %989 = vmatpush1.bf16.msra.mxu0 %v882
  %990 = vmatprep.subr.bf16.mxu0 %v887
  %991 = vmatpush1.bf16.msra.mxu0 %v886
  %992 = vmatprep.subr.bf16.mxu0 %v891
  %993 = vmatpush1.bf16.msra.mxu0 %v890
  %994 = vmatprep.subr.bf16.mxu0 %v895
  %995 = vmatpush1.bf16.msra.mxu0 %v894
  %996 = vmatprep.subr.bf16.mxu0 0
  %997 = vmatpush1.bf16.msra.mxu0 0
  %998 = vmatprep.subr.bf16.mxu0 0
  %999 = vmatpush1.bf16.msra.mxu0 0
  %1000 = vmatprep.subr.bf16.mxu0 0
  %1001 = vmatpush1.bf16.msra.mxu0 0
  %1002 = vmatprep.subr.bf16.mxu0 0
  %1003 = vmatpush1.bf16.msra.mxu0 0
  %1004 = vmatprep.subr.bf16.mxu0 0
  %1005 = vmatpush1.bf16.msra.mxu0 0
  %1006 = vmatprep.subr.bf16.mxu0 0
  %1007 = vmatpush1.bf16.msra.mxu0 0
  %1008 = vmatprep.subr.bf16.mxu0 0
  %1009 = vmatpush1.bf16.msra.mxu0 0
  %1010 = vmatprep.mubr.bf16.mxu0 %v920
  %1011 = vmatmul.mubr.bf16.gmra.mrb[0].mxu0 %v912
  %v1012 = vpop.f32.mrb[0].mxu0
  %v1013 = vadd.f32 0.0, %v1012
  %v1014 = vpop.f32.mrb[0].mxu0
  %v1015 = vadd.f32 0.0, %v1014
  %v1016 = vpop.f32.mrb[0].mxu0
  %v1017 = vadd.f32 0.0, %v1016
  %v1018 = vpop.f32.mrb[0].mxu0
  %v1019 = vadd.f32 0.0, %v1018
  %1020 = vmatprep.mubr.bf16.mxu0 %v923
  %1021 = vmatmul.mubr.bf16.gmra.mrb[0].mxu0 %v914
  %v1022 = vpop.f32.mrb[0].mxu0
  %v1023 = vadd.f32 0.0, %v1022
  %v1024 = vpop.f32.mrb[0].mxu0
  %v1025 = vadd.f32 0.0, %v1024
  %v1026 = vpop.f32.mrb[0].mxu0
  %v1027 = vadd.f32 0.0, %v1026
  %v1028 = vpop.f32.mrb[0].mxu0
  %v1029 = vadd.f32 0.0, %v1028
  %1030 = vdwg.mxu0
  %v1031 = vld [vmem:[%s2] sm:$0xff]
  %v1032 = vld [vmem:[%s3] sm:$0xff]
  %v1033 = vadd.f32 %v960, %v962
  %v1034 = vadd.f32 %v1033, %v1013
  %v1035 = vadd.f32 %v1034, %v1015
  %1036 = vadd.xlane.f32.xlu0 %v1035
  %v1037 = vpop.xlane.xlu0 %1036
  %v1038 = vadd.f32 %v964, %v966
  %v1039 = vadd.f32 %v1038, %v1017
  %v1040 = vadd.f32 %v1039, %v1019
  %1041 = vadd.xlane.f32.xlu0 %v1040
  %v1042 = vpop.xlane.xlu0 %1041
  %v1043 = vadd.f32 %v970, %v972
  %v1044 = vadd.f32 %v1043, %v1023
  %v1045 = vadd.f32 %v1044, %v1025
  %1046 = vadd.xlane.f32.xlu0 %v1045
  %v1047 = vpop.xlane.xlu0 %1046
  %v1048 = vadd.f32 %v974, %v976
  %v1049 = vadd.f32 %v1048, %v1027
  %v1050 = vadd.f32 %v1049, %v1029
  %1051 = vadd.xlane.f32.xlu0 %v1050
  %v1052 = vpop.xlane.xlu0 %1051
  %v1053 = vmul.f32 %v960, %v960
  %v1054 = vmul.f32 %v962, %v962
  %v1055 = vmul.f32 %v1013, %v1013
  %v1056 = vmul.f32 %v1015, %v1015
  %v1057 = vmul.f32 %v964, %v964
  %v1058 = vmul.f32 %v966, %v966
  %v1059 = vmul.f32 %v1017, %v1017
  %v1060 = vmul.f32 %v1019, %v1019
  %v1061 = vmul.f32 %v970, %v970
  %v1062 = vmul.f32 %v972, %v972
  %v1063 = vmul.f32 %v1023, %v1023
  %v1064 = vmul.f32 %v1025, %v1025
  %v1065 = vmul.f32 %v974, %v974
  %v1066 = vmul.f32 %v976, %v976
  %v1067 = vmul.f32 %v1027, %v1027
  %v1068 = vmul.f32 %v1029, %v1029
  %v1069 = vadd.f32 %v1053, %v1054
  %v1070 = vadd.f32 %v1069, %v1055
  %v1071 = vadd.f32 %v1070, %v1056
  %1072 = vadd.xlane.f32.xlu0 %v1071
  %v1073 = vpop.xlane.xlu0 %1072
  %v1074 = vadd.f32 %v1057, %v1058
  %v1075 = vadd.f32 %v1074, %v1059
  %v1076 = vadd.f32 %v1075, %v1060
  %1077 = vadd.xlane.f32.xlu0 %v1076
  %v1078 = vpop.xlane.xlu0 %1077
  %v1079 = vadd.f32 %v1061, %v1062
  %v1080 = vadd.f32 %v1079, %v1063
  %v1081 = vadd.f32 %v1080, %v1064
  %1082 = vadd.xlane.f32.xlu0 %v1081
  %v1083 = vpop.xlane.xlu0 %1082
  %v1084 = vadd.f32 %v1065, %v1066
  %v1085 = vadd.f32 %v1084, %v1067
  %v1086 = vadd.f32 %v1085, %v1068
  %1087 = vadd.xlane.f32.xlu0 %v1086
  %v1088 = vpop.xlane.xlu0 %1087
  %v1089 = vadd.f32 %v1037, %v1042
  %v1090 = vadd.f32 %v1089, %v1047
  %v1091 = vadd.f32 %v1090, %v1052
  %v1092 = vadd.f32 %v1073, %v1078
  %v1093 = vadd.f32 %v1092, %v1083
  %v1094 = vadd.f32 %v1093, %v1088
  %v1095 = vrcp.pop 2048.0
  %v1096 = vmul.f32 %v1091, %v1095
  %v1097 = vmul.f32 %v1094, %v1095
  %v1098 = vmul.f32 %v1096, %v1096
  %v1099 = vsub.f32 %v1097, %v1098
  %v1100 = vadd.f32 %v1099, 1e-05
  %v1101 = vrsqrt.pop %v1100
  %v1102 = vmul.f32 %v1031, %v1101
  %v1103 = vmul.f32 %v1096, %v1102
  %v1104 = vsub.f32 %v1032, %v1103
  %1106 = vset.pattern.permute.xlu0 0
  %1107 = vperm.xlu0 %1106, %v1102
  %v1108 = vpop.permute.xlu0 %1107
  %v1110 = vmul.f32 %v960, %v1108
  %v1111 = vmul.f32 %v962, %v1108
  %v1112 = vmul.f32 %v1013, %v1108
  %v1113 = vmul.f32 %v1015, %v1108
  %v1114 = vmul.f32 %v964, %v1108
  %v1115 = vmul.f32 %v966, %v1108
  %v1116 = vmul.f32 %v1017, %v1108
  %v1117 = vmul.f32 %v1019, %v1108
  %v1118 = vmul.f32 %v970, %v1108
  %v1119 = vmul.f32 %v972, %v1108
  %v1120 = vmul.f32 %v1023, %v1108
  %v1121 = vmul.f32 %v1025, %v1108
  %v1122 = vmul.f32 %v974, %v1108
  %v1123 = vmul.f32 %v976, %v1108
  %v1124 = vmul.f32 %v1027, %v1108
  %v1125 = vmul.f32 %v1029, %v1108
  %1127 = vset.pattern.permute.xlu0 0
  %1128 = vperm.xlu0 %1127, %v1104
  %v1129 = vpop.permute.xlu0 %1128
  %v1131 = vadd.f32 %v1110, %v1129
  %v1132 = vadd.f32 %v1111, %v1129
  %v1133 = vadd.f32 %v1112, %v1129
  %v1134 = vadd.f32 %v1113, %v1129
  %v1135 = vadd.f32 %v1114, %v1129
  %v1136 = vadd.f32 %v1115, %v1129
  %v1137 = vadd.f32 %v1116, %v1129
  %v1138 = vadd.f32 %v1117, %v1129
  %v1139 = vadd.f32 %v1118, %v1129
  %v1140 = vadd.f32 %v1119, %v1129
  %v1141 = vadd.f32 %v1120, %v1129
  %v1142 = vadd.f32 %v1121, %v1129
  %v1143 = vadd.f32 %v1122, %v1129
  %v1144 = vadd.f32 %v1123, %v1129
  %v1145 = vadd.f32 %v1124, %v1129
  %v1146 = vadd.f32 %v1125, %v1129
  %v1147 = vmax.f32 %v1131, 0.0
  %v1148 = vmax.f32 %v1132, 0.0
  %v1149 = vmax.f32 %v1133, 0.0
  %v1150 = vmax.f32 %v1134, 0.0
  %v1151 = vmax.f32 %v1135, 0.0
  %v1152 = vmax.f32 %v1136, 0.0
  %v1153 = vmax.f32 %v1137, 0.0
  %v1154 = vmax.f32 %v1138, 0.0
  %v1155 = vmax.f32 %v1139, 0.0
  %v1156 = vmax.f32 %v1140, 0.0
  %v1157 = vmax.f32 %v1141, 0.0
  %v1158 = vmax.f32 %v1142, 0.0
  %v1159 = vmax.f32 %v1143, 0.0
  %v1160 = vmax.f32 %v1144, 0.0
  %v1161 = vmax.f32 %v1145, 0.0
  %v1162 = vmax.f32 %v1146, 0.0
  %v1163 = vpack.c.bf16 %v1151, %v1147
  %v1164 = vpack.c.bf16 %v1152, %v1148
  %v1165 = vpack.c.bf16 %v1153, %v1149
  %v1166 = vpack.c.bf16 %v1154, %v1150
  %v1167 = vpack.c.bf16 %v1159, %v1155
  %v1168 = vpack.c.bf16 %v1160, %v1156
  %v1169 = vpack.c.bf16 %v1161, %v1157
  %v1170 = vpack.c.bf16 %v1162, %v1158
  %v1179 = vunpack.c.l.b16 %v1163
  %v1180 = vunpack.c.l.b16 %v1164
  %v1181 = vunpack.c.l.b16 %v1165
  %v1182 = vunpack.c.l.b16 %v1166
  %v1183 = vunpack.c.h.b16 %v1163
  %v1184 = vunpack.c.h.b16 %v1164
  %v1185 = vunpack.c.h.b16 %v1165
  %v1186 = vunpack.c.h.b16 %v1166
  %v1187 = vunpack.c.l.b16 %v1167
  %v1188 = vunpack.c.l.b16 %v1168
  %v1189 = vunpack.c.l.b16 %v1169
  %v1190 = vunpack.c.l.b16 %v1170
  %v1191 = vunpack.c.h.b16 %v1167
  %v1192 = vunpack.c.h.b16 %v1168
  %v1193 = vunpack.c.h.b16 %v1169
  %v1194 = vunpack.c.h.b16 %v1170
  %v1195 = vpack.c.b16 %v1180, %v1179
  %v1196 = vpack.c.b16 %v1182, %v1181
  %v1197 = vpack.c.b16 %v1184, %v1183
  %v1198 = vpack.c.b16 %v1186, %v1185
  %v1199 = vpack.c.b16 %v1188, %v1187
  %v1200 = vpack.c.b16 %v1190, %v1189
  %v1201 = vpack.c.b16 %v1192, %v1191
  %v1202 = vpack.c.b16 %v1194, %v1193
  %1211 = vst [vmem:[%s5] sm:$0xff] %v1195
  %1212 = vst [vmem:[%s5 + $0x8] sm:$0xff] %v1196
  %1213 = vst [vmem:[%s5 + $0x10] sm:$0xff] %v1197
  %1214 = vst [vmem:[%s5 + $0x18] sm:$0xff] %v1198
  %1215 = vst [vmem:[%s5 + $0x20] sm:$0xff] %v1199
  %1216 = vst [vmem:[%s5 + $0x28] sm:$0xff] %v1200
  %1217 = vst [vmem:[%s5 + $0x30] sm:$0xff] %v1201
  %1218 = vst [vmem:[%s5 + $0x38] sm:$0xff] %v1202
  // Predicated region
  $region22: #{generator_forward.6} parent=0 // pred_check
    _
  $region23: #{generator_forward.6} parent=0 // pred_check_branch
    %1220 = sbr.rel (0) target = $region25
  $region24: #{generator_forward.6} parent=0 // pred_region
    _
  $region25: #{generator_forward.6} parent=0 // pred_fallthru
    _
  // Predicated region
  $region26: #{generator_forward.6} parent=0 // pred_check
    _
  $region27: #{generator_forward.6} parent=0 // pred_check_branch
    %1222 = sbr.rel (0) target = $region29
  $region28: #{generator_forward.6} parent=0 // pred_region
    _
  $region29: #{generator_forward.6} parent=0 // pred_fallthru
    _

// kernel: generator_forward.7
$region0: #{generator_forward.7}
  #allocation0 [shape = 'u32[]', space=smem, size = 0x4, offset = 0x4, fixed_abs, tag = 'smem constant byte address 0x4 - core index']
  #allocation1 [shape = 'u32[144,128]{1,0:T(1,128)}', space=vmem, size = 0x12000, scoped, tag = 'internal scratch']
  %s0 = inlined_call_operand.vmem [shape: bf16[8,2048], index: 0, kind: input, shape index: {}]
  %s1 = inlined_call_operand.vmem [shape: bf16[12,72], index: 1, kind: input, shape index: {}]
  %s2 = inlined_call_operand.vmem [shape: f32[9,2048], index: 2, kind: input, shape index: {}]
  %s3 = inlined_call_operand.vmem [shape: f32[3,2048], index: 3, kind: output, shape index: {}]
  %s4 = sld [smem:[#allocation0]]
  $region22: #{generator_forward.7} parent=0
    _
  %s6 = ssub.s32 1, %s4
  %s7 = scalar_select 0, %s6, %s4
  // Predicated region
  $region2: #{generator_forward.7} parent=0 // pred_check
    _
  $region3: #{generator_forward.7} parent=0 // pred_check_branch
    %9 = sbr.rel (0) target = $region5
  $region4: #{generator_forward.7} parent=0 // pred_region
    _
  $region5: #{generator_forward.7} parent=0 // pred_fallthru
    _
  // Predicated region
  $region6: #{generator_forward.7} parent=0 // pred_check
    _
  $region7: #{generator_forward.7} parent=0 // pred_check_branch
    %11 = sbr.rel (0) target = $region9
  $region8: #{generator_forward.7} parent=0 // pred_region
    _
  $region9: #{generator_forward.7} parent=0 // pred_fallthru
    _
  // Predicated region
  $region10: #{generator_forward.7} parent=0 // pred_check
    _
  $region11: #{generator_forward.7} parent=0 // pred_check_branch
    %13 = sbr.rel (0) target = $region13
  $region12: #{generator_forward.7} parent=0 // pred_region
    _
  $region13: #{generator_forward.7} parent=0 // pred_fallthru
    _
  %v15 = vld [vmem:[%s0] sm:$0xff]
  %v16 = vld [vmem:[%s0 + $0x8] sm:$0xff]
  %v17 = vld [vmem:[%s0 + $0x10] sm:$0xff]
  %v18 = vld [vmem:[%s0 + $0x18] sm:$0xff]
  %v19 = vld [vmem:[%s0 + $0x20] sm:$0xff]
  %v20 = vld [vmem:[%s0 + $0x28] sm:$0xff]
  %v21 = vld [vmem:[%s0 + $0x30] sm:$0xff]
  %v22 = vld [vmem:[%s0 + $0x38] sm:$0xff]
  %v23 = vunpack.c.l.bf16 %v15
  %v24 = vunpack.c.h.bf16 %v15
  %v25 = vunpack.c.l.bf16 %v16
  %v26 = vunpack.c.h.bf16 %v16
  %v27 = vunpack.c.l.bf16 %v17
  %v28 = vunpack.c.h.bf16 %v17
  %v29 = vunpack.c.l.bf16 %v18
  %v30 = vunpack.c.h.bf16 %v18
  %v31 = vunpack.c.l.bf16 %v19
  %v32 = vunpack.c.h.bf16 %v19
  %v33 = vunpack.c.l.bf16 %v20
  %v34 = vunpack.c.h.bf16 %v20
  %v35 = vunpack.c.l.bf16 %v21
  %v36 = vunpack.c.h.bf16 %v21
  %v37 = vunpack.c.l.bf16 %v22
  %v38 = vunpack.c.h.bf16 %v22
  %v39 = vld [vmem:[%s2] sm:$0xff]
  %v40 = vld [vmem:[%s2 + $0x8] sm:$0xff]
  %v41 = vld [vmem:[%s2 + $0x10] sm:$0xff]
  %v42 = vld [vmem:[%s2 + $0x18] sm:$0xff]
  %v43 = vld [vmem:[%s2 + $0x20] sm:$0xff]
  %v44 = vld [vmem:[%s2 + $0x28] sm:$0xff]
  %v45 = vld [vmem:[%s2 + $0x30] sm:$0xff]
  %v46 = vld [vmem:[%s2 + $0x38] sm:$0xff]
  %v47 = vld [vmem:[%s2 + $0x40] sm:$0xff]
  %v48 = vld [vmem:[%s2 + $0x48] sm:$0xff]
  %v49 = vld [vmem:[%s2 + $0x50] sm:$0xff]
  %v50 = vld [vmem:[%s2 + $0x58] sm:$0xff]
  %v51 = vld [vmem:[%s2 + $0x60] sm:$0xff]
  %v52 = vld [vmem:[%s2 + $0x68] sm:$0xff]
  %v53 = vld [vmem:[%s2 + $0x70] sm:$0xff]
  %v54 = vld [vmem:[%s2 + $0x78] sm:$0xff]
  %v55 = vld [vmem:[%s2 + $0x80] sm:$0x1]
  %v56 = vld [vmem:[%s2 + $0x88] sm:$0x1]
  %v57 = vld [vmem:[%s2 + $0x90] sm:$0x1]
  %v58 = vld [vmem:[%s2 + $0x98] sm:$0x1]
  %v59 = vld [vmem:[%s2 + $0xa0] sm:$0x1]
  %v60 = vld [vmem:[%s2 + $0xa8] sm:$0x1]
  %v61 = vld [vmem:[%s2 + $0xb0] sm:$0x1]
  %v62 = vld [vmem:[%s2 + $0xb8] sm:$0x1]
  %v63 = vld [vmem:[%s2 + $0xc0] sm:$0x1]
  %v64 = vld [vmem:[%s2 + $0xc8] sm:$0x1]
  %v65 = vld [vmem:[%s2 + $0xd0] sm:$0x1]
  %v66 = vld [vmem:[%s2 + $0xd8] sm:$0x1]
  %v67 = vld [vmem:[%s2 + $0xe0] sm:$0x1]
  %v68 = vld [vmem:[%s2 + $0xe8] sm:$0x1]
  %v69 = vld [vmem:[%s2 + $0xf0] sm:$0x1]
  %v70 = vld [vmem:[%s2 + $0xf8] sm:$0x1]
  %87 = vrot.lane.b32.xlu0 %v23, 66
  %v88 = vpop.permute.xlu0 %87
  %89 = vrot.lane.b32.xlu0 %v24, 66
  %v90 = vpop.permute.xlu0 %89
  %91 = vrot.lane.b32.xlu0 %v25, 66
  %v92 = vpop.permute.xlu0 %91
  %93 = vrot.lane.b32.xlu0 %v26, 66
  %v94 = vpop.permute.xlu0 %93
  %95 = vrot.lane.b32.xlu0 %v27, 66
  %v96 = vpop.permute.xlu0 %95
  %97 = vrot.lane.b32.xlu0 %v28, 66
  %v98 = vpop.permute.xlu0 %97
  %99 = vrot.lane.b32.xlu0 %v29, 66
  %v100 = vpop.permute.xlu0 %99
  %101 = vrot.lane.b32.xlu0 %v30, 66
  %v102 = vpop.permute.xlu0 %101
  %103 = vrot.lane.b32.xlu0 %v31, 66
  %v104 = vpop.permute.xlu0 %103
  %105 = vrot.lane.b32.xlu0 %v32, 66
  %v106 = vpop.permute.xlu0 %105
  %107 = vrot.lane.b32.xlu0 %v33, 66
  %v108 = vpop.permute.xlu0 %107
  %109 = vrot.lane.b32.xlu0 %v34, 66
  %v110 = vpop.permute.xlu0 %109
  %111 = vrot.lane.b32.xlu0 %v35, 66
  %v112 = vpop.permute.xlu0 %111
  %113 = vrot.lane.b32.xlu0 %v36, 66
  %v114 = vpop.permute.xlu0 %113
  %115 = vrot.lane.b32.xlu0 %v37, 66
  %v116 = vpop.permute.xlu0 %115
  %117 = vrot.lane.b32.xlu0 %v38, 66
  %v118 = vpop.permute.xlu0 %117
  %vm119 = vcmask 539648
  %v120 = vsel %vm119, %v88, %v90
  %v121 = vsel %vm119, %v90, %v92
  %v122 = vsel %vm119, %v92, %v94
  %v123 = vsel %vm119, %v94, %v96
  %v124 = vsel %vm119, %v96, %v98
  %v125 = vsel %vm119, %v98, %v100
  %v126 = vsel %vm119, %v100, %v102
  %v127 = vsel %vm119, %v102, %v104
  %v128 = vsel %vm119, %v104, %v106
  %v129 = vsel %vm119, %v106, %v108
  %v130 = vsel %vm119, %v108, %v110
  %v131 = vsel %vm119, %v110, %v112
  %v132 = vsel %vm119, %v112, %v114
  %v133 = vsel %vm119, %v114, %v116
  %v134 = vsel %vm119, %v116, %v118
  %v152 = vsel %vm119, 0.0, %v88
  %v153 = vsel %vm119, %v118, 0.0
  %v154 = vlaneseq
  %v155 = vshrl.u32 %v154, 7
  %v156 = vsub.s32 0, %v155
  %v157 = vrot.slane %v39, %v156
  %v158 = vlaneseq
  %v159 = vshrl.u32 %v158, 7
  %v160 = vsub.s32 0, %v159
  %v161 = vrot.slane %v40, %v160
  %v162 = vlaneseq
  %v163 = vshrl.u32 %v162, 7
  %v164 = vsub.s32 0, %v163
  %v165 = vrot.slane %v41, %v164
  %v166 = vlaneseq
  %v167 = vshrl.u32 %v166, 7
  %v168 = vsub.s32 0, %v167
  %v169 = vrot.slane %v42, %v168
  %v170 = vlaneseq
  %v171 = vshrl.u32 %v170, 7
  %v172 = vsub.s32 0, %v171
  %v173 = vrot.slane %v43, %v172
  %v174 = vlaneseq
  %v175 = vshrl.u32 %v174, 7
  %v176 = vsub.s32 0, %v175
  %v177 = vrot.slane %v44, %v176
  %v178 = vlaneseq
  %v179 = vshrl.u32 %v178, 7
  %v180 = vsub.s32 0, %v179
  %v181 = vrot.slane %v45, %v180
  %v182 = vlaneseq
  %v183 = vshrl.u32 %v182, 7
  %v184 = vsub.s32 0, %v183
  %v185 = vrot.slane %v46, %v184
  %v186 = vlaneseq
  %v187 = vshrl.u32 %v186, 7
  %v188 = vsub.s32 0, %v187
  %v189 = vrot.slane %v47, %v188
  %v190 = vlaneseq
  %v191 = vshrl.u32 %v190, 7
  %v192 = vsub.s32 0, %v191
  %v193 = vrot.slane %v48, %v192
  %v194 = vlaneseq
  %v195 = vshrl.u32 %v194, 7
  %v196 = vsub.s32 0, %v195
  %v197 = vrot.slane %v49, %v196
  %v198 = vlaneseq
  %v199 = vshrl.u32 %v198, 7
  %v200 = vsub.s32 0, %v199
  %v201 = vrot.slane %v50, %v200
  %v202 = vlaneseq
  %v203 = vshrl.u32 %v202, 7
  %v204 = vsub.s32 0, %v203
  %v205 = vrot.slane %v51, %v204
  %v206 = vlaneseq
  %v207 = vshrl.u32 %v206, 7
  %v208 = vsub.s32 0, %v207
  %v209 = vrot.slane %v52, %v208
  %v210 = vlaneseq
  %v211 = vshrl.u32 %v210, 7
  %v212 = vsub.s32 0, %v211
  %v213 = vrot.slane %v53, %v212
  %v214 = vlaneseq
  %v215 = vshrl.u32 %v214, 7
  %v216 = vsub.s32 0, %v215
  %v217 = vrot.slane %v54, %v216
  %v218 = vmul.f32 %v152, %v157
  %v219 = vmul.f32 %v120, %v161
  %v220 = vmul.f32 %v121, %v165
  %v221 = vmul.f32 %v122, %v169
  %v222 = vmul.f32 %v123, %v173
  %v223 = vmul.f32 %v124, %v177
  %v224 = vmul.f32 %v125, %v181
  %v225 = vmul.f32 %v126, %v185
  %v226 = vmul.f32 %v127, %v189
  %v227 = vmul.f32 %v128, %v193
  %v228 = vmul.f32 %v129, %v197
  %v229 = vmul.f32 %v130, %v201
  %v230 = vmul.f32 %v131, %v205
  %v231 = vmul.f32 %v132, %v209
  %v232 = vmul.f32 %v133, %v213
  %v233 = vmul.f32 %v134, %v217
  %v234 = vlaneseq
  %v235 = vshrl.u32 %v234, 7
  %v236 = vsub.s32 1, %v235
  %v237 = vrot.slane %v39, %v236
  %v238 = vlaneseq
  %v239 = vshrl.u32 %v238, 7
  %v240 = vsub.s32 1, %v239
  %v241 = vrot.slane %v40, %v240
  %v242 = vlaneseq
  %v243 = vshrl.u32 %v242, 7
  %v244 = vsub.s32 1, %v243
  %v245 = vrot.slane %v41, %v244
  %v246 = vlaneseq
  %v247 = vshrl.u32 %v246, 7
  %v248 = vsub.s32 1, %v247
  %v249 = vrot.slane %v42, %v248
  %v250 = vlaneseq
  %v251 = vshrl.u32 %v250, 7
  %v252 = vsub.s32 1, %v251
  %v253 = vrot.slane %v43, %v252
  %v254 = vlaneseq
  %v255 = vshrl.u32 %v254, 7
  %v256 = vsub.s32 1, %v255
  %v257 = vrot.slane %v44, %v256
  %v258 = vlaneseq
  %v259 = vshrl.u32 %v258, 7
  %v260 = vsub.s32 1, %v259
  %v261 = vrot.slane %v45, %v260
  %v262 = vlaneseq
  %v263 = vshrl.u32 %v262, 7
  %v264 = vsub.s32 1, %v263
  %v265 = vrot.slane %v46, %v264
  %v266 = vlaneseq
  %v267 = vshrl.u32 %v266, 7
  %v268 = vsub.s32 1, %v267
  %v269 = vrot.slane %v47, %v268
  %v270 = vlaneseq
  %v271 = vshrl.u32 %v270, 7
  %v272 = vsub.s32 1, %v271
  %v273 = vrot.slane %v48, %v272
  %v274 = vlaneseq
  %v275 = vshrl.u32 %v274, 7
  %v276 = vsub.s32 1, %v275
  %v277 = vrot.slane %v49, %v276
  %v278 = vlaneseq
  %v279 = vshrl.u32 %v278, 7
  %v280 = vsub.s32 1, %v279
  %v281 = vrot.slane %v50, %v280
  %v282 = vlaneseq
  %v283 = vshrl.u32 %v282, 7
  %v284 = vsub.s32 1, %v283
  %v285 = vrot.slane %v51, %v284
  %v286 = vlaneseq
  %v287 = vshrl.u32 %v286, 7
  %v288 = vsub.s32 1, %v287
  %v289 = vrot.slane %v52, %v288
  %v290 = vlaneseq
  %v291 = vshrl.u32 %v290, 7
  %v292 = vsub.s32 1, %v291
  %v293 = vrot.slane %v53, %v292
  %v294 = vlaneseq
  %v295 = vshrl.u32 %v294, 7
  %v296 = vsub.s32 1, %v295
  %v297 = vrot.slane %v54, %v296
  %314 = vrot.lane.b32.xlu0 %v237, 2
  %v315 = vpop.permute.xlu0 %314
  %316 = vrot.lane.b32.xlu0 %v241, 2
  %v317 = vpop.permute.xlu0 %316
  %318 = vrot.lane.b32.xlu0 %v245, 2
  %v319 = vpop.permute.xlu0 %318
  %320 = vrot.lane.b32.xlu0 %v249, 2
  %v321 = vpop.permute.xlu0 %320
  %322 = vrot.lane.b32.xlu0 %v253, 2
  %v323 = vpop.permute.xlu0 %322
  %324 = vrot.lane.b32.xlu0 %v257, 2
  %v325 = vpop.permute.xlu0 %324
  %326 = vrot.lane.b32.xlu0 %v261, 2
  %v327 = vpop.permute.xlu0 %326
  %328 = vrot.lane.b32.xlu0 %v265, 2
  %v329 = vpop.permute.xlu0 %328
  %330 = vrot.lane.b32.xlu0 %v269, 2
  %v331 = vpop.permute.xlu0 %330
  %332 = vrot.lane.b32.xlu0 %v273, 2
  %v333 = vpop.permute.xlu0 %332
  %334 = vrot.lane.b32.xlu0 %v277, 2
  %v335 = vpop.permute.xlu0 %334
  %336 = vrot.lane.b32.xlu0 %v281, 2
  %v337 = vpop.permute.xlu0 %336
  %338 = vrot.lane.b32.xlu0 %v285, 2
  %v339 = vpop.permute.xlu0 %338
  %340 = vrot.lane.b32.xlu0 %v289, 2
  %v341 = vpop.permute.xlu0 %340
  %342 = vrot.lane.b32.xlu0 %v293, 2
  %v343 = vpop.permute.xlu0 %342
  %344 = vrot.lane.b32.xlu0 %v297, 2
  %v345 = vpop.permute.xlu0 %344
  %vm346 = vcmask 15360
  %v347 = vsel %vm346, %v315, %v317
  %v348 = vsel %vm346, %v317, %v319
  %v349 = vsel %vm346, %v319, %v321
  %v350 = vsel %vm346, %v321, %v323
  %v351 = vsel %vm346, %v323, %v325
  %v352 = vsel %vm346, %v325, %v327
  %v353 = vsel %vm346, %v327, %v329
  %v354 = vsel %vm346, %v329, %v331
  %v355 = vsel %vm346, %v331, %v333
  %v356 = vsel %vm346, %v333, %v335
  %v357 = vsel %vm346, %v335, %v337
  %v358 = vsel %vm346, %v337, %v339
  %v359 = vsel %vm346, %v339, %v341
  %v360 = vsel %vm346, %v341, %v343
  %v361 = vsel %vm346, %v343, %v345
  %v379 = vmul.f32 %v152, %v315
  %v380 = vmul.f32 %v120, %v347
  %v381 = vmul.f32 %v121, %v348
  %v382 = vmul.f32 %v122, %v349
  %v383 = vmul.f32 %v123, %v350
  %v384 = vmul.f32 %v124, %v351
  %v385 = vmul.f32 %v125, %v352
  %v386 = vmul.f32 %v126, %v353
  %v387 = vmul.f32 %v127, %v354
  %v388 = vmul.f32 %v128, %v355
  %v389 = vmul.f32 %v129, %v356
  %v390 = vmul.f32 %v130, %v357
  %v391 = vmul.f32 %v131, %v358
  %v392 = vmul.f32 %v132, %v359
  %v393 = vmul.f32 %v133, %v360
  %v394 = vmul.f32 %v134, %v361
  %v395 = vmul.f32 %v153, %v345
  %v396 = vlaneseq
  %v397 = vshrl.u32 %v396, 7
  %v398 = vsub.s32 2, %v397
  %v399 = vrot.slane %v39, %v398
  %v400 = vlaneseq
  %v401 = vshrl.u32 %v400, 7
  %v402 = vsub.s32 2, %v401
  %v403 = vrot.slane %v40, %v402
  %v404 = vlaneseq
  %v405 = vshrl.u32 %v404, 7
  %v406 = vsub.s32 2, %v405
  %v407 = vrot.slane %v41, %v406
  %v408 = vlaneseq
  %v409 = vshrl.u32 %v408, 7
  %v410 = vsub.s32 2, %v409
  %v411 = vrot.slane %v42, %v410
  %v412 = vlaneseq
  %v413 = vshrl.u32 %v412, 7
  %v414 = vsub.s32 2, %v413
  %v415 = vrot.slane %v43, %v414
  %v416 = vlaneseq
  %v417 = vshrl.u32 %v416, 7
  %v418 = vsub.s32 2, %v417
  %v419 = vrot.slane %v44, %v418
  %v420 = vlaneseq
  %v421 = vshrl.u32 %v420, 7
  %v422 = vsub.s32 2, %v421
  %v423 = vrot.slane %v45, %v422
  %v424 = vlaneseq
  %v425 = vshrl.u32 %v424, 7
  %v426 = vsub.s32 2, %v425
  %v427 = vrot.slane %v46, %v426
  %v428 = vlaneseq
  %v429 = vshrl.u32 %v428, 7
  %v430 = vsub.s32 2, %v429
  %v431 = vrot.slane %v47, %v430
  %v432 = vlaneseq
  %v433 = vshrl.u32 %v432, 7
  %v434 = vsub.s32 2, %v433
  %v435 = vrot.slane %v48, %v434
  %v436 = vlaneseq
  %v437 = vshrl.u32 %v436, 7
  %v438 = vsub.s32 2, %v437
  %v439 = vrot.slane %v49, %v438
  %v440 = vlaneseq
  %v441 = vshrl.u32 %v440, 7
  %v442 = vsub.s32 2, %v441
  %v443 = vrot.slane %v50, %v442
  %v444 = vlaneseq
  %v445 = vshrl.u32 %v444, 7
  %v446 = vsub.s32 2, %v445
  %v447 = vrot.slane %v51, %v446
  %v448 = vlaneseq
  %v449 = vshrl.u32 %v448, 7
  %v450 = vsub.s32 2, %v449
  %v451 = vrot.slane %v52, %v450
  %v452 = vlaneseq
  %v453 = vshrl.u32 %v452, 7
  %v454 = vsub.s32 2, %v453
  %v455 = vrot.slane %v53, %v454
  %v456 = vlaneseq
  %v457 = vshrl.u32 %v456, 7
  %v458 = vsub.s32 2, %v457
  %v459 = vrot.slane %v54, %v458
  %476 = vrot.lane.b32.xlu0 %v399, 4
  %v477 = vpop.permute.xlu0 %476
  %478 = vrot.lane.b32.xlu0 %v403, 4
  %v479 = vpop.permute.xlu0 %478
  %480 = vrot.lane.b32.xlu0 %v407, 4
  %v481 = vpop.permute.xlu0 %480
  %482 = vrot.lane.b32.xlu0 %v411, 4
  %v483 = vpop.permute.xlu0 %482
  %484 = vrot.lane.b32.xlu0 %v415, 4
  %v485 = vpop.permute.xlu0 %484
  %486 = vrot.lane.b32.xlu0 %v419, 4
  %v487 = vpop.permute.xlu0 %486
  %488 = vrot.lane.b32.xlu0 %v423, 4
  %v489 = vpop.permute.xlu0 %488
  %490 = vrot.lane.b32.xlu0 %v427, 4
  %v491 = vpop.permute.xlu0 %490
  %492 = vrot.lane.b32.xlu0 %v431, 4
  %v493 = vpop.permute.xlu0 %492
  %494 = vrot.lane.b32.xlu0 %v435, 4
  %v495 = vpop.permute.xlu0 %494
  %496 = vrot.lane.b32.xlu0 %v439, 4
  %v497 = vpop.permute.xlu0 %496
  %498 = vrot.lane.b32.xlu0 %v443, 4
  %v499 = vpop.permute.xlu0 %498
  %500 = vrot.lane.b32.xlu0 %v447, 4
  %v501 = vpop.permute.xlu0 %500
  %502 = vrot.lane.b32.xlu0 %v451, 4
  %v503 = vpop.permute.xlu0 %502
  %504 = vrot.lane.b32.xlu0 %v455, 4
  %v505 = vpop.permute.xlu0 %504
  %506 = vrot.lane.b32.xlu0 %v459, 4
  %v507 = vpop.permute.xlu0 %506
  %vm508 = vcmask 31744
  %v509 = vsel %vm508, %v477, %v479
  %v510 = vsel %vm508, %v479, %v481
  %v511 = vsel %vm508, %v481, %v483
  %v512 = vsel %vm508, %v483, %v485
  %v513 = vsel %vm508, %v485, %v487
  %v514 = vsel %vm508, %v487, %v489
  %v515 = vsel %vm508, %v489, %v491
  %v516 = vsel %vm508, %v491, %v493
  %v517 = vsel %vm508, %v493, %v495
  %v518 = vsel %vm508, %v495, %v497
  %v519 = vsel %vm508, %v497, %v499
  %v520 = vsel %vm508, %v499, %v501
  %v521 = vsel %vm508, %v501, %v503
  %v522 = vsel %vm508, %v503, %v505
  %v523 = vsel %vm508, %v505, %v507
  %v541 = vmul.f32 %v152, %v477
  %v542 = vmul.f32 %v120, %v509
  %v543 = vmul.f32 %v121, %v510
  %v544 = vmul.f32 %v122, %v511
  %v545 = vmul.f32 %v123, %v512
  %v546 = vmul.f32 %v124, %v513
  %v547 = vmul.f32 %v125, %v514
  %v548 = vmul.f32 %v126, %v515
  %v549 = vmul.f32 %v127, %v516
  %v550 = vmul.f32 %v128, %v517
  %v551 = vmul.f32 %v129, %v518
  %v552 = vmul.f32 %v130, %v519
  %v553 = vmul.f32 %v131, %v520
  %v554 = vmul.f32 %v132, %v521
  %v555 = vmul.f32 %v133, %v522
  %v556 = vmul.f32 %v134, %v523
  %v557 = vmul.f32 %v153, %v507
  %v558 = vlaneseq
  %v559 = vshrl.u32 %v558, 7
  %v560 = vsub.s32 3, %v559
  %v561 = vrot.slane %v39, %v560
  %v562 = vlaneseq
  %v563 = vshrl.u32 %v562, 7
  %v564 = vsub.s32 3, %v563
  %v565 = vrot.slane %v40, %v564
  %v566 = vlaneseq
  %v567 = vshrl.u32 %v566, 7
  %v568 = vsub.s32 3, %v567
  %v569 = vrot.slane %v41, %v568
  %v570 = vlaneseq
  %v571 = vshrl.u32 %v570, 7
  %v572 = vsub.s32 3, %v571
  %v573 = vrot.slane %v42, %v572
  %v574 = vlaneseq
  %v575 = vshrl.u32 %v574, 7
  %v576 = vsub.s32 3, %v575
  %v577 = vrot.slane %v43, %v576
  %v578 = vlaneseq
  %v579 = vshrl.u32 %v578, 7
  %v580 = vsub.s32 3, %v579
  %v581 = vrot.slane %v44, %v580
  %v582 = vlaneseq
  %v583 = vshrl.u32 %v582, 7
  %v584 = vsub.s32 3, %v583
  %v585 = vrot.slane %v45, %v584
  %v586 = vlaneseq
  %v587 = vshrl.u32 %v586, 7
  %v588 = vsub.s32 3, %v587
  %v589 = vrot.slane %v46, %v588
  %v590 = vlaneseq
  %v591 = vshrl.u32 %v590, 7
  %v592 = vsub.s32 3, %v591
  %v593 = vrot.slane %v47, %v592
  %v594 = vlaneseq
  %v595 = vshrl.u32 %v594, 7
  %v596 = vsub.s32 3, %v595
  %v597 = vrot.slane %v48, %v596
  %v598 = vlaneseq
  %v599 = vshrl.u32 %v598, 7
  %v600 = vsub.s32 3, %v599
  %v601 = vrot.slane %v49, %v600
  %v602 = vlaneseq
  %v603 = vshrl.u32 %v602, 7
  %v604 = vsub.s32 3, %v603
  %v605 = vrot.slane %v50, %v604
  %v606 = vlaneseq
  %v607 = vshrl.u32 %v606, 7
  %v608 = vsub.s32 3, %v607
  %v609 = vrot.slane %v51, %v608
  %v610 = vlaneseq
  %v611 = vshrl.u32 %v610, 7
  %v612 = vsub.s32 3, %v611
  %v613 = vrot.slane %v52, %v612
  %v614 = vlaneseq
  %v615 = vshrl.u32 %v614, 7
  %v616 = vsub.s32 3, %v615
  %v617 = vrot.slane %v53, %v616
  %v618 = vlaneseq
  %v619 = vshrl.u32 %v618, 7
  %v620 = vsub.s32 3, %v619
  %v621 = vrot.slane %v54, %v620
  %638 = vrot.lane.b32.xlu0 %v561, 64
  %v639 = vpop.permute.xlu0 %638
  %640 = vrot.lane.b32.xlu0 %v565, 64
  %v641 = vpop.permute.xlu0 %640
  %642 = vrot.lane.b32.xlu0 %v569, 64
  %v643 = vpop.permute.xlu0 %642
  %644 = vrot.lane.b32.xlu0 %v573, 64
  %v645 = vpop.permute.xlu0 %644
  %646 = vrot.lane.b32.xlu0 %v577, 64
  %v647 = vpop.permute.xlu0 %646
  %648 = vrot.lane.b32.xlu0 %v581, 64
  %v649 = vpop.permute.xlu0 %648
  %650 = vrot.lane.b32.xlu0 %v585, 64
  %v651 = vpop.permute.xlu0 %650
  %652 = vrot.lane.b32.xlu0 %v589, 64
  %v653 = vpop.permute.xlu0 %652
  %654 = vrot.lane.b32.xlu0 %v593, 64
  %v655 = vpop.permute.xlu0 %654
  %656 = vrot.lane.b32.xlu0 %v597, 64
  %v657 = vpop.permute.xlu0 %656
  %658 = vrot.lane.b32.xlu0 %v601, 64
  %v659 = vpop.permute.xlu0 %658
  %660 = vrot.lane.b32.xlu0 %v605, 64
  %v661 = vpop.permute.xlu0 %660
  %662 = vrot.lane.b32.xlu0 %v609, 64
  %v663 = vpop.permute.xlu0 %662
  %664 = vrot.lane.b32.xlu0 %v613, 64
  %v665 = vpop.permute.xlu0 %664
  %666 = vrot.lane.b32.xlu0 %v617, 64
  %v667 = vpop.permute.xlu0 %666
  %668 = vrot.lane.b32.xlu0 %v621, 64
  %v669 = vpop.permute.xlu0 %668
  %vm670 = vcmask 523264
  %v671 = vsel %vm670, %v639, %v641
  %v672 = vsel %vm670, %v641, %v643
  %v673 = vsel %vm670, %v643, %v645
  %v674 = vsel %vm670, %v645, %v647
  %v675 = vsel %vm670, %v647, %v649
  %v676 = vsel %vm670, %v649, %v651
  %v677 = vsel %vm670, %v651, %v653
  %v678 = vsel %vm670, %v653, %v655
  %v679 = vsel %vm670, %v655, %v657
  %v680 = vsel %vm670, %v657, %v659
  %v681 = vsel %vm670, %v659, %v661
  %v682 = vsel %vm670, %v661, %v663
  %v683 = vsel %vm670, %v663, %v665
  %v684 = vsel %vm670, %v665, %v667
  %v685 = vsel %vm670, %v667, %v669
  %v703 = vmul.f32 %v152, %v639
  %v704 = vmul.f32 %v120, %v671
  %v705 = vmul.f32 %v121, %v672
  %v706 = vmul.f32 %v122, %v673
  %v707 = vmul.f32 %v123, %v674
  %v708 = vmul.f32 %v124, %v675
  %v709 = vmul.f32 %v125, %v676
  %v710 = vmul.f32 %v126, %v677
  %v711 = vmul.f32 %v127, %v678
  %v712 = vmul.f32 %v128, %v679
  %v713 = vmul.f32 %v129, %v680
  %v714 = vmul.f32 %v130, %v681
  %v715 = vmul.f32 %v131, %v682
  %v716 = vmul.f32 %v132, %v683
  %v717 = vmul.f32 %v133, %v684
  %v718 = vmul.f32 %v134, %v685
  %v719 = vmul.f32 %v153, %v669
  %v720 = vlaneseq
  %v721 = vshrl.u32 %v720, 7
  %v722 = vsub.s32 4, %v721
  %v723 = vrot.slane %v39, %v722
  %v724 = vlaneseq
  %v725 = vshrl.u32 %v724, 7
  %v726 = vsub.s32 4, %v725
  %v727 = vrot.slane %v40, %v726
  %v728 = vlaneseq
  %v729 = vshrl.u32 %v728, 7
  %v730 = vsub.s32 4, %v729
  %v731 = vrot.slane %v41, %v730
  %v732 = vlaneseq
  %v733 = vshrl.u32 %v732, 7
  %v734 = vsub.s32 4, %v733
  %v735 = vrot.slane %v42, %v734
  %v736 = vlaneseq
  %v737 = vshrl.u32 %v736, 7
  %v738 = vsub.s32 4, %v737
  %v739 = vrot.slane %v43, %v738
  %v740 = vlaneseq
  %v741 = vshrl.u32 %v740, 7
  %v742 = vsub.s32 4, %v741
  %v743 = vrot.slane %v44, %v742
  %v744 = vlaneseq
  %v745 = vshrl.u32 %v744, 7
  %v746 = vsub.s32 4, %v745
  %v747 = vrot.slane %v45, %v746
  %v748 = vlaneseq
  %v749 = vshrl.u32 %v748, 7
  %v750 = vsub.s32 4, %v749
  %v751 = vrot.slane %v46, %v750
  %v752 = vlaneseq
  %v753 = vshrl.u32 %v752, 7
  %v754 = vsub.s32 4, %v753
  %v755 = vrot.slane %v47, %v754
  %v756 = vlaneseq
  %v757 = vshrl.u32 %v756, 7
  %v758 = vsub.s32 4, %v757
  %v759 = vrot.slane %v48, %v758
  %v760 = vlaneseq
  %v761 = vshrl.u32 %v760, 7
  %v762 = vsub.s32 4, %v761
  %v763 = vrot.slane %v49, %v762
  %v764 = vlaneseq
  %v765 = vshrl.u32 %v764, 7
  %v766 = vsub.s32 4, %v765
  %v767 = vrot.slane %v50, %v766
  %v768 = vlaneseq
  %v769 = vshrl.u32 %v768, 7
  %v770 = vsub.s32 4, %v769
  %v771 = vrot.slane %v51, %v770
  %v772 = vlaneseq
  %v773 = vshrl.u32 %v772, 7
  %v774 = vsub.s32 4, %v773
  %v775 = vrot.slane %v52, %v774
  %v776 = vlaneseq
  %v777 = vshrl.u32 %v776, 7
  %v778 = vsub.s32 4, %v777
  %v779 = vrot.slane %v53, %v778
  %v780 = vlaneseq
  %v781 = vshrl.u32 %v780, 7
  %v782 = vsub.s32 4, %v781
  %v783 = vrot.slane %v54, %v782
  %800 = vrot.lane.b32.xlu0 %v723, 66
  %v801 = vpop.permute.xlu0 %800
  %802 = vrot.lane.b32.xlu0 %v727, 66
  %v803 = vpop.permute.xlu0 %802
  %804 = vrot.lane.b32.xlu0 %v731, 66
  %v805 = vpop.permute.xlu0 %804
  %806 = vrot.lane.b32.xlu0 %v735, 66
  %v807 = vpop.permute.xlu0 %806
  %808 = vrot.lane.b32.xlu0 %v739, 66
  %v809 = vpop.permute.xlu0 %808
  %810 = vrot.lane.b32.xlu0 %v743, 66
  %v811 = vpop.permute.xlu0 %810
  %812 = vrot.lane.b32.xlu0 %v747, 66
  %v813 = vpop.permute.xlu0 %812
  %814 = vrot.lane.b32.xlu0 %v751, 66
  %v815 = vpop.permute.xlu0 %814
  %816 = vrot.lane.b32.xlu0 %v755, 66
  %v817 = vpop.permute.xlu0 %816
  %818 = vrot.lane.b32.xlu0 %v759, 66
  %v819 = vpop.permute.xlu0 %818
  %820 = vrot.lane.b32.xlu0 %v763, 66
  %v821 = vpop.permute.xlu0 %820
  %822 = vrot.lane.b32.xlu0 %v767, 66
  %v823 = vpop.permute.xlu0 %822
  %824 = vrot.lane.b32.xlu0 %v771, 66
  %v825 = vpop.permute.xlu0 %824
  %826 = vrot.lane.b32.xlu0 %v775, 66
  %v827 = vpop.permute.xlu0 %826
  %828 = vrot.lane.b32.xlu0 %v779, 66
  %v829 = vpop.permute.xlu0 %828
  %830 = vrot.lane.b32.xlu0 %v783, 66
  %v831 = vpop.permute.xlu0 %830
  %v832 = vsel %vm119, %v801, %v803
  %v833 = vsel %vm119, %v803, %v805
  %v834 = vsel %vm119, %v805, %v807
  %v835 = vsel %vm119, %v807, %v809
  %v836 = vsel %vm119, %v809, %v811
  %v837 = vsel %vm119, %v811, %v813
  %v838 = vsel %vm119, %v813, %v815
  %v839 = vsel %vm119, %v815, %v817
  %v840 = vsel %vm119, %v817, %v819
  %v841 = vsel %vm119, %v819, %v821
  %v842 = vsel %vm119, %v821, %v823
  %v843 = vsel %vm119, %v823, %v825
  %v844 = vsel %vm119, %v825, %v827
  %v845 = vsel %vm119, %v827, %v829
  %v846 = vsel %vm119, %v829, %v831
  %v864 = vmul.f32 %v152, %v801
  %v865 = vmul.f32 %v120, %v832
  %v866 = vmul.f32 %v121, %v833
  %v867 = vmul.f32 %v122, %v834
  %v868 = vmul.f32 %v123, %v835
  %v869 = vmul.f32 %v124, %v836
  %v870 = vmul.f32 %v125, %v837
  %v871 = vmul.f32 %v126, %v838
  %v872 = vmul.f32 %v127, %v839
  %v873 = vmul.f32 %v128, %v840
  %v874 = vmul.f32 %v129, %v841
  %v875 = vmul.f32 %v130, %v842
  %v876 = vmul.f32 %v131, %v843
  %v877 = vmul.f32 %v132, %v844
  %v878 = vmul.f32 %v133, %v845
  %v879 = vmul.f32 %v134, %v846
  %v880 = vmul.f32 %v153, %v831
  %v881 = vlaneseq
  %v882 = vshrl.u32 %v881, 7
  %v883 = vsub.s32 5, %v882
  %v884 = vrot.slane %v39, %v883
  %v885 = vlaneseq
  %v886 = vshrl.u32 %v885, 7
  %v887 = vsub.s32 5, %v886
  %v888 = vrot.slane %v40, %v887
  %v889 = vlaneseq
  %v890 = vshrl.u32 %v889, 7
  %v891 = vsub.s32 5, %v890
  %v892 = vrot.slane %v41, %v891
  %v893 = vlaneseq
  %v894 = vshrl.u32 %v893, 7
  %v895 = vsub.s32 5, %v894
  %v896 = vrot.slane %v42, %v895
  %v897 = vlaneseq
  %v898 = vshrl.u32 %v897, 7
  %v899 = vsub.s32 5, %v898
  %v900 = vrot.slane %v43, %v899
  %v901 = vlaneseq
  %v902 = vshrl.u32 %v901, 7
  %v903 = vsub.s32 5, %v902
  %v904 = vrot.slane %v44, %v903
  %v905 = vlaneseq
  %v906 = vshrl.u32 %v905, 7
  %v907 = vsub.s32 5, %v906
  %v908 = vrot.slane %v45, %v907
  %v909 = vlaneseq
  %v910 = vshrl.u32 %v909, 7
  %v911 = vsub.s32 5, %v910
  %v912 = vrot.slane %v46, %v911
  %v913 = vlaneseq
  %v914 = vshrl.u32 %v913, 7
  %v915 = vsub.s32 5, %v914
  %v916 = vrot.slane %v47, %v915
  %v917 = vlaneseq
  %v918 = vshrl.u32 %v917, 7
  %v919 = vsub.s32 5, %v918
  %v920 = vrot.slane %v48, %v919
  %v921 = vlaneseq
  %v922 = vshrl.u32 %v921, 7
  %v923 = vsub.s32 5, %v922
  %v924 = vrot.slane %v49, %v923
  %v925 = vlaneseq
  %v926 = vshrl.u32 %v925, 7
  %v927 = vsub.s32 5, %v926
  %v928 = vrot.slane %v50, %v927
  %v929 = vlaneseq
  %v930 = vshrl.u32 %v929, 7
  %v931 = vsub.s32 5, %v930
  %v932 = vrot.slane %v51, %v931
  %v933 = vlaneseq
  %v934 = vshrl.u32 %v933, 7
  %v935 = vsub.s32 5, %v934
  %v936 = vrot.slane %v52, %v935
  %v937 = vlaneseq
  %v938 = vshrl.u32 %v937, 7
  %v939 = vsub.s32 5, %v938
  %v940 = vrot.slane %v53, %v939
  %v941 = vlaneseq
  %v942 = vshrl.u32 %v941, 7
  %v943 = vsub.s32 5, %v942
  %v944 = vrot.slane %v54, %v943
  %961 = vrot.lane.b32.xlu0 %v884, 68
  %v962 = vpop.permute.xlu0 %961
  %963 = vrot.lane.b32.xlu0 %v888, 68
  %v964 = vpop.permute.xlu0 %963
  %965 = vrot.lane.b32.xlu0 %v892, 68
  %v966 = vpop.permute.xlu0 %965
  %967 = vrot.lane.b32.xlu0 %v896, 68
  %v968 = vpop.permute.xlu0 %967
  %969 = vrot.lane.b32.xlu0 %v900, 68
  %v970 = vpop.permute.xlu0 %969
  %971 = vrot.lane.b32.xlu0 %v904, 68
  %v972 = vpop.permute.xlu0 %971
  %973 = vrot.lane.b32.xlu0 %v908, 68
  %v974 = vpop.permute.xlu0 %973
  %975 = vrot.lane.b32.xlu0 %v912, 68
  %v976 = vpop.permute.xlu0 %975
  %977 = vrot.lane.b32.xlu0 %v916, 68
  %v978 = vpop.permute.xlu0 %977
  %979 = vrot.lane.b32.xlu0 %v920, 68
  %v980 = vpop.permute.xlu0 %979
  %981 = vrot.lane.b32.xlu0 %v924, 68
  %v982 = vpop.permute.xlu0 %981
  %983 = vrot.lane.b32.xlu0 %v928, 68
  %v984 = vpop.permute.xlu0 %983
  %985 = vrot.lane.b32.xlu0 %v932, 68
  %v986 = vpop.permute.xlu0 %985
  %987 = vrot.lane.b32.xlu0 %v936, 68
  %v988 = vpop.permute.xlu0 %987
  %989 = vrot.lane.b32.xlu0 %v940, 68
  %v990 = vpop.permute.xlu0 %989
  %991 = vrot.lane.b32.xlu0 %v944, 68
  %v992 = vpop.permute.xlu0 %991
  %vm993 = vcmask 556032
  %v994 = vsel %vm993, %v962, %v964
  %v995 = vsel %vm993, %v964, %v966
  %v996 = vsel %vm993, %v966, %v968
  %v997 = vsel %vm993, %v968, %v970
  %v998 = vsel %vm993, %v970, %v972
  %v999 = vsel %vm993, %v972, %v974
  %v1000 = vsel %vm993, %v974, %v976
  %v1001 = vsel %vm993, %v976, %v978
  %v1002 = vsel %vm993, %v978, %v980
  %v1003 = vsel %vm993, %v980, %v982
  %v1004 = vsel %vm993, %v982, %v984
  %v1005 = vsel %vm993, %v984, %v986
  %v1006 = vsel %vm993, %v986, %v988
  %v1007 = vsel %vm993, %v988, %v990
  %v1008 = vsel %vm993, %v990, %v992
  %v1026 = vmul.f32 %v152, %v962
  %v1027 = vmul.f32 %v120, %v994
  %v1028 = vmul.f32 %v121, %v995
  %v1029 = vmul.f32 %v122, %v996
  %v1030 = vmul.f32 %v123, %v997
  %v1031 = vmul.f32 %v124, %v998
  %v1032 = vmul.f32 %v125, %v999
  %v1033 = vmul.f32 %v126, %v1000
  %v1034 = vmul.f32 %v127, %v1001
  %v1035 = vmul.f32 %v128, %v1002
  %v1036 = vmul.f32 %v129, %v1003
  %v1037 = vmul.f32 %v130, %v1004
  %v1038 = vmul.f32 %v131, %v1005
  %v1039 = vmul.f32 %v132, %v1006
  %v1040 = vmul.f32 %v133, %v1007
  %v1041 = vmul.f32 %v134, %v1008
  %v1042 = vmul.f32 %v153, %v992
  %v1043 = vlaneseq
  %v1044 = vshrl.u32 %v1043, 7
  %v1045 = vsub.s32 6, %v1044
  %v1046 = vrot.slane %v39, %v1045
  %v1047 = vlaneseq
  %v1048 = vshrl.u32 %v1047, 7
  %v1049 = vsub.s32 6, %v1048
  %v1050 = vrot.slane %v40, %v1049
  %v1051 = vlaneseq
  %v1052 = vshrl.u32 %v1051, 7
  %v1053 = vsub.s32 6, %v1052
  %v1054 = vrot.slane %v41, %v1053
  %v1055 = vlaneseq
  %v1056 = vshrl.u32 %v1055, 7
  %v1057 = vsub.s32 6, %v1056
  %v1058 = vrot.slane %v42, %v1057
  %v1059 = vlaneseq
  %v1060 = vshrl.u32 %v1059, 7
  %v1061 = vsub.s32 6, %v1060
  %v1062 = vrot.slane %v43, %v1061
  %v1063 = vlaneseq
  %v1064 = vshrl.u32 %v1063, 7
  %v1065 = vsub.s32 6, %v1064
  %v1066 = vrot.slane %v44, %v1065
  %v1067 = vlaneseq
  %v1068 = vshrl.u32 %v1067, 7
  %v1069 = vsub.s32 6, %v1068
  %v1070 = vrot.slane %v45, %v1069
  %v1071 = vlaneseq
  %v1072 = vshrl.u32 %v1071, 7
  %v1073 = vsub.s32 6, %v1072
  %v1074 = vrot.slane %v46, %v1073
  %v1075 = vlaneseq
  %v1076 = vshrl.u32 %v1075, 7
  %v1077 = vsub.s32 6, %v1076
  %v1078 = vrot.slane %v47, %v1077
  %v1079 = vlaneseq
  %v1080 = vshrl.u32 %v1079, 7
  %v1081 = vsub.s32 6, %v1080
  %v1082 = vrot.slane %v48, %v1081
  %v1083 = vlaneseq
  %v1084 = vshrl.u32 %v1083, 7
  %v1085 = vsub.s32 6, %v1084
  %v1086 = vrot.slane %v49, %v1085
  %v1087 = vlaneseq
  %v1088 = vshrl.u32 %v1087, 7
  %v1089 = vsub.s32 6, %v1088
  %v1090 = vrot.slane %v50, %v1089
  %v1091 = vlaneseq
  %v1092 = vshrl.u32 %v1091, 7
  %v1093 = vsub.s32 6, %v1092
  %v1094 = vrot.slane %v51, %v1093
  %v1095 = vlaneseq
  %v1096 = vshrl.u32 %v1095, 7
  %v1097 = vsub.s32 6, %v1096
  %v1098 = vrot.slane %v52, %v1097
  %v1099 = vlaneseq
  %v1100 = vshrl.u32 %v1099, 7
  %v1101 = vsub.s32 6, %v1100
  %v1102 = vrot.slane %v53, %v1101
  %v1103 = vlaneseq
  %v1104 = vshrl.u32 %v1103, 7
  %v1105 = vsub.s32 6, %v1104
  %v1106 = vrot.slane %v54, %v1105
  %v1107 = vmul.f32 %v120, %v1046
  %v1108 = vmul.f32 %v121, %v1050
  %v1109 = vmul.f32 %v122, %v1054
  %v1110 = vmul.f32 %v123, %v1058
  %v1111 = vmul.f32 %v124, %v1062
  %v1112 = vmul.f32 %v125, %v1066
  %v1113 = vmul.f32 %v126, %v1070
  %v1114 = vmul.f32 %v127, %v1074
  %v1115 = vmul.f32 %v128, %v1078
  %v1116 = vmul.f32 %v129, %v1082
  %v1117 = vmul.f32 %v130, %v1086
  %v1118 = vmul.f32 %v131, %v1090
  %v1119 = vmul.f32 %v132, %v1094
  %v1120 = vmul.f32 %v133, %v1098
  %v1121 = vmul.f32 %v134, %v1102
  %v1122 = vmul.f32 %v153, %v1106
  %v1123 = vlaneseq
  %v1124 = vshrl.u32 %v1123, 7
  %v1125 = vsub.s32 7, %v1124
  %v1126 = vrot.slane %v39, %v1125
  %v1127 = vlaneseq
  %v1128 = vshrl.u32 %v1127, 7
  %v1129 = vsub.s32 7, %v1128
  %v1130 = vrot.slane %v40, %v1129
  %v1131 = vlaneseq
  %v1132 = vshrl.u32 %v1131, 7
  %v1133 = vsub.s32 7, %v1132
  %v1134 = vrot.slane %v41, %v1133
  %v1135 = vlaneseq
  %v1136 = vshrl.u32 %v1135, 7
  %v1137 = vsub.s32 7, %v1136
  %v1138 = vrot.slane %v42, %v1137
  %v1139 = vlaneseq
  %v1140 = vshrl.u32 %v1139, 7
  %v1141 = vsub.s32 7, %v1140
  %v1142 = vrot.slane %v43, %v1141
  %v1143 = vlaneseq
  %v1144 = vshrl.u32 %v1143, 7
  %v1145 = vsub.s32 7, %v1144
  %v1146 = vrot.slane %v44, %v1145
  %v1147 = vlaneseq
  %v1148 = vshrl.u32 %v1147, 7
  %v1149 = vsub.s32 7, %v1148
  %v1150 = vrot.slane %v45, %v1149
  %v1151 = vlaneseq
  %v1152 = vshrl.u32 %v1151, 7
  %v1153 = vsub.s32 7, %v1152
  %v1154 = vrot.slane %v46, %v1153
  %v1155 = vlaneseq
  %v1156 = vshrl.u32 %v1155, 7
  %v1157 = vsub.s32 7, %v1156
  %v1158 = vrot.slane %v47, %v1157
  %v1159 = vlaneseq
  %v1160 = vshrl.u32 %v1159, 7
  %v1161 = vsub.s32 7, %v1160
  %v1162 = vrot.slane %v48, %v1161
  %v1163 = vlaneseq
  %v1164 = vshrl.u32 %v1163, 7
  %v1165 = vsub.s32 7, %v1164
  %v1166 = vrot.slane %v49, %v1165
  %v1167 = vlaneseq
  %v1168 = vshrl.u32 %v1167, 7
  %v1169 = vsub.s32 7, %v1168
  %v1170 = vrot.slane %v50, %v1169
  %v1171 = vlaneseq
  %v1172 = vshrl.u32 %v1171, 7
  %v1173 = vsub.s32 7, %v1172
  %v1174 = vrot.slane %v51, %v1173
  %v1175 = vlaneseq
  %v1176 = vshrl.u32 %v1175, 7
  %v1177 = vsub.s32 7, %v1176
  %v1178 = vrot.slane %v52, %v1177
  %v1179 = vlaneseq
  %v1180 = vshrl.u32 %v1179, 7
  %v1181 = vsub.s32 7, %v1180
  %v1182 = vrot.slane %v53, %v1181
  %v1183 = vlaneseq
  %v1184 = vshrl.u32 %v1183, 7
  %v1185 = vsub.s32 7, %v1184
  %v1186 = vrot.slane %v54, %v1185
  %1203 = vrot.lane.b32.xlu0 %v1126, 2
  %v1204 = vpop.permute.xlu0 %1203
  %1205 = vrot.lane.b32.xlu0 %v1130, 2
  %v1206 = vpop.permute.xlu0 %1205
  %1207 = vrot.lane.b32.xlu0 %v1134, 2
  %v1208 = vpop.permute.xlu0 %1207
  %1209 = vrot.lane.b32.xlu0 %v1138, 2
  %v1210 = vpop.permute.xlu0 %1209
  %1211 = vrot.lane.b32.xlu0 %v1142, 2
  %v1212 = vpop.permute.xlu0 %1211
  %1213 = vrot.lane.b32.xlu0 %v1146, 2
  %v1214 = vpop.permute.xlu0 %1213
  %1215 = vrot.lane.b32.xlu0 %v1150, 2
  %v1216 = vpop.permute.xlu0 %1215
  %1217 = vrot.lane.b32.xlu0 %v1154, 2
  %v1218 = vpop.permute.xlu0 %1217
  %1219 = vrot.lane.b32.xlu0 %v1158, 2
  %v1220 = vpop.permute.xlu0 %1219
  %1221 = vrot.lane.b32.xlu0 %v1162, 2
  %v1222 = vpop.permute.xlu0 %1221
  %1223 = vrot.lane.b32.xlu0 %v1166, 2
  %v1224 = vpop.permute.xlu0 %1223
  %1225 = vrot.lane.b32.xlu0 %v1170, 2
  %v1226 = vpop.permute.xlu0 %1225
  %1227 = vrot.lane.b32.xlu0 %v1174, 2
  %v1228 = vpop.permute.xlu0 %1227
  %1229 = vrot.lane.b32.xlu0 %v1178, 2
  %v1230 = vpop.permute.xlu0 %1229
  %1231 = vrot.lane.b32.xlu0 %v1182, 2
  %v1232 = vpop.permute.xlu0 %1231
  %1233 = vrot.lane.b32.xlu0 %v1186, 2
  %v1234 = vpop.permute.xlu0 %1233
  %v1235 = vsel %vm346, %v1204, %v1206
  %v1236 = vsel %vm346, %v1206, %v1208
  %v1237 = vsel %vm346, %v1208, %v1210
  %v1238 = vsel %vm346, %v1210, %v1212
  %v1239 = vsel %vm346, %v1212, %v1214
  %v1240 = vsel %vm346, %v1214, %v1216
  %v1241 = vsel %vm346, %v1216, %v1218
  %v1242 = vsel %vm346, %v1218, %v1220
  %v1243 = vsel %vm346, %v1220, %v1222
  %v1244 = vsel %vm346, %v1222, %v1224
  %v1245 = vsel %vm346, %v1224, %v1226
  %v1246 = vsel %vm346, %v1226, %v1228
  %v1247 = vsel %vm346, %v1228, %v1230
  %v1248 = vsel %vm346, %v1230, %v1232
  %v1249 = vsel %vm346, %v1232, %v1234
  %v1267 = vmul.f32 %v120, %v1204
  %v1268 = vmul.f32 %v121, %v1235
  %v1269 = vmul.f32 %v122, %v1236
  %v1270 = vmul.f32 %v123, %v1237
  %v1271 = vmul.f32 %v124, %v1238
  %v1272 = vmul.f32 %v125, %v1239
  %v1273 = vmul.f32 %v126, %v1240
  %v1274 = vmul.f32 %v127, %v1241
  %v1275 = vmul.f32 %v128, %v1242
  %v1276 = vmul.f32 %v129, %v1243
  %v1277 = vmul.f32 %v130, %v1244
  %v1278 = vmul.f32 %v131, %v1245
  %v1279 = vmul.f32 %v132, %v1246
  %v1280 = vmul.f32 %v133, %v1247
  %v1281 = vmul.f32 %v134, %v1248
  %v1282 = vmul.f32 %v153, %v1249
  %v1283 = vmul.f32 %v1234, 0.0
  %v1284 = vlaneseq
  %v1285 = vshrl.u32 %v1284, 7
  %v1286 = vsub.s32 0, %v1285
  %v1287 = vrot.slane %v55, %v1286
  %v1288 = vlaneseq
  %v1289 = vshrl.u32 %v1288, 7
  %v1290 = vsub.s32 0, %v1289
  %v1291 = vrot.slane %v56, %v1290
  %v1292 = vlaneseq
  %v1293 = vshrl.u32 %v1292, 7
  %v1294 = vsub.s32 0, %v1293
  %v1295 = vrot.slane %v57, %v1294
  %v1296 = vlaneseq
  %v1297 = vshrl.u32 %v1296, 7
  %v1298 = vsub.s32 0, %v1297
  %v1299 = vrot.slane %v58, %v1298
  %v1300 = vlaneseq
  %v1301 = vshrl.u32 %v1300, 7
  %v1302 = vsub.s32 0, %v1301
  %v1303 = vrot.slane %v59, %v1302
  %v1304 = vlaneseq
  %v1305 = vshrl.u32 %v1304, 7
  %v1306 = vsub.s32 0, %v1305
  %v1307 = vrot.slane %v60, %v1306
  %v1308 = vlaneseq
  %v1309 = vshrl.u32 %v1308, 7
  %v1310 = vsub.s32 0, %v1309
  %v1311 = vrot.slane %v61, %v1310
  %v1312 = vlaneseq
  %v1313 = vshrl.u32 %v1312, 7
  %v1314 = vsub.s32 0, %v1313
  %v1315 = vrot.slane %v62, %v1314
  %v1316 = vlaneseq
  %v1317 = vshrl.u32 %v1316, 7
  %v1318 = vsub.s32 0, %v1317
  %v1319 = vrot.slane %v63, %v1318
  %v1320 = vlaneseq
  %v1321 = vshrl.u32 %v1320, 7
  %v1322 = vsub.s32 0, %v1321
  %v1323 = vrot.slane %v64, %v1322
  %v1324 = vlaneseq
  %v1325 = vshrl.u32 %v1324, 7
  %v1326 = vsub.s32 0, %v1325
  %v1327 = vrot.slane %v65, %v1326
  %v1328 = vlaneseq
  %v1329 = vshrl.u32 %v1328, 7
  %v1330 = vsub.s32 0, %v1329
  %v1331 = vrot.slane %v66, %v1330
  %v1332 = vlaneseq
  %v1333 = vshrl.u32 %v1332, 7
  %v1334 = vsub.s32 0, %v1333
  %v1335 = vrot.slane %v67, %v1334
  %v1336 = vlaneseq
  %v1337 = vshrl.u32 %v1336, 7
  %v1338 = vsub.s32 0, %v1337
  %v1339 = vrot.slane %v68, %v1338
  %v1340 = vlaneseq
  %v1341 = vshrl.u32 %v1340, 7
  %v1342 = vsub.s32 0, %v1341
  %v1343 = vrot.slane %v69, %v1342
  %v1344 = vlaneseq
  %v1345 = vshrl.u32 %v1344, 7
  %v1346 = vsub.s32 0, %v1345
  %v1347 = vrot.slane %v70, %v1346
  %1364 = vrot.lane.b32.xlu0 %v1287, 4
  %v1365 = vpop.permute.xlu0 %1364
  %1366 = vrot.lane.b32.xlu0 %v1291, 4
  %v1367 = vpop.permute.xlu0 %1366
  %1368 = vrot.lane.b32.xlu0 %v1295, 4
  %v1369 = vpop.permute.xlu0 %1368
  %1370 = vrot.lane.b32.xlu0 %v1299, 4
  %v1371 = vpop.permute.xlu0 %1370
  %1372 = vrot.lane.b32.xlu0 %v1303, 4
  %v1373 = vpop.permute.xlu0 %1372
  %1374 = vrot.lane.b32.xlu0 %v1307, 4
  %v1375 = vpop.permute.xlu0 %1374
  %1376 = vrot.lane.b32.xlu0 %v1311, 4
  %v1377 = vpop.permute.xlu0 %1376
  %1378 = vrot.lane.b32.xlu0 %v1315, 4
  %v1379 = vpop.permute.xlu0 %1378
  %1380 = vrot.lane.b32.xlu0 %v1319, 4
  %v1381 = vpop.permute.xlu0 %1380
  %1382 = vrot.lane.b32.xlu0 %v1323, 4
  %v1383 = vpop.permute.xlu0 %1382
  %1384 = vrot.lane.b32.xlu0 %v1327, 4
  %v1385 = vpop.permute.xlu0 %1384
  %1386 = vrot.lane.b32.xlu0 %v1331, 4
  %v1387 = vpop.permute.xlu0 %1386
  %1388 = vrot.lane.b32.xlu0 %v1335, 4
  %v1389 = vpop.permute.xlu0 %1388
  %1390 = vrot.lane.b32.xlu0 %v1339, 4
  %v1391 = vpop.permute.xlu0 %1390
  %1392 = vrot.lane.b32.xlu0 %v1343, 4
  %v1393 = vpop.permute.xlu0 %1392
  %1394 = vrot.lane.b32.xlu0 %v1347, 4
  %v1395 = vpop.permute.xlu0 %1394
  %v1396 = vsel %vm508, %v1365, %v1367
  %v1397 = vsel %vm508, %v1367, %v1369
  %v1398 = vsel %vm508, %v1369, %v1371
  %v1399 = vsel %vm508, %v1371, %v1373
  %v1400 = vsel %vm508, %v1373, %v1375
  %v1401 = vsel %vm508, %v1375, %v1377
  %v1402 = vsel %vm508, %v1377, %v1379
  %v1403 = vsel %vm508, %v1379, %v1381
  %v1404 = vsel %vm508, %v1381, %v1383
  %v1405 = vsel %vm508, %v1383, %v1385
  %v1406 = vsel %vm508, %v1385, %v1387
  %v1407 = vsel %vm508, %v1387, %v1389
  %v1408 = vsel %vm508, %v1389, %v1391
  %v1409 = vsel %vm508, %v1391, %v1393
  %v1410 = vsel %vm508, %v1393, %v1395
  %v1428 = vmul.f32 %v120, %v1365
  %v1429 = vmul.f32 %v121, %v1396
  %v1430 = vmul.f32 %v122, %v1397
  %v1431 = vmul.f32 %v123, %v1398
  %v1432 = vmul.f32 %v124, %v1399
  %v1433 = vmul.f32 %v125, %v1400
  %v1434 = vmul.f32 %v126, %v1401
  %v1435 = vmul.f32 %v127, %v1402
  %v1436 = vmul.f32 %v128, %v1403
  %v1437 = vmul.f32 %v129, %v1404
  %v1438 = vmul.f32 %v130, %v1405
  %v1439 = vmul.f32 %v131, %v1406
  %v1440 = vmul.f32 %v132, %v1407
  %v1441 = vmul.f32 %v133, %v1408
  %v1442 = vmul.f32 %v134, %v1409
  %v1443 = vmul.f32 %v153, %v1410
  %v1444 = vmul.f32 %v1395, 0.0
  %1462 = vrot.lane.b32.xlu0 %v379, 126
  %v1463 = vpop.permute.xlu0 %1462
  %1464 = vrot.lane.b32.xlu0 %v380, 126
  %v1465 = vpop.permute.xlu0 %1464
  %1466 = vrot.lane.b32.xlu0 %v381, 126
  %v1467 = vpop.permute.xlu0 %1466
  %1468 = vrot.lane.b32.xlu0 %v382, 126
  %v1469 = vpop.permute.xlu0 %1468
  %1470 = vrot.lane.b32.xlu0 %v383, 126
  %v1471 = vpop.permute.xlu0 %1470
  %1472 = vrot.lane.b32.xlu0 %v384, 126
  %v1473 = vpop.permute.xlu0 %1472
  %1474 = vrot.lane.b32.xlu0 %v385, 126
  %v1475 = vpop.permute.xlu0 %1474
  %1476 = vrot.lane.b32.xlu0 %v386, 126
  %v1477 = vpop.permute.xlu0 %1476
  %1478 = vrot.lane.b32.xlu0 %v387, 126
  %v1479 = vpop.permute.xlu0 %1478
  %1480 = vrot.lane.b32.xlu0 %v388, 126
  %v1481 = vpop.permute.xlu0 %1480
  %1482 = vrot.lane.b32.xlu0 %v389, 126
  %v1483 = vpop.permute.xlu0 %1482
  %1484 = vrot.lane.b32.xlu0 %v390, 126
  %v1485 = vpop.permute.xlu0 %1484
  %1486 = vrot.lane.b32.xlu0 %v391, 126
  %v1487 = vpop.permute.xlu0 %1486
  %1488 = vrot.lane.b32.xlu0 %v392, 126
  %v1489 = vpop.permute.xlu0 %1488
  %1490 = vrot.lane.b32.xlu0 %v393, 126
  %v1491 = vpop.permute.xlu0 %1490
  %1492 = vrot.lane.b32.xlu0 %v394, 126
  %v1493 = vpop.permute.xlu0 %1492
  %1494 = vrot.lane.b32.xlu0 %v395, 126
  %v1495 = vpop.permute.xlu0 %1494
  %vm1496 = vcmask 1031168
  %v1497 = vsel %vm1496, %v1463, %v1465
  %v1498 = vsel %vm1496, %v1465, %v1467
  %v1499 = vsel %vm1496, %v1467, %v1469
  %v1500 = vsel %vm1496, %v1469, %v1471
  %v1501 = vsel %vm1496, %v1471, %v1473
  %v1502 = vsel %vm1496, %v1473, %v1475
  %v1503 = vsel %vm1496, %v1475, %v1477
  %v1504 = vsel %vm1496, %v1477, %v1479
  %v1505 = vsel %vm1496, %v1479, %v1481
  %v1506 = vsel %vm1496, %v1481, %v1483
  %v1507 = vsel %vm1496, %v1483, %v1485
  %v1508 = vsel %vm1496, %v1485, %v1487
  %v1509 = vsel %vm1496, %v1487, %v1489
  %v1510 = vsel %vm1496, %v1489, %v1491
  %v1511 = vsel %vm1496, %v1491, %v1493
  %v1512 = vsel %vm1496, %v1493, %v1495
  %1546 = vrot.lane.b32.xlu0 %v541, 124
  %v1547 = vpop.permute.xlu0 %1546
  %1548 = vrot.lane.b32.xlu0 %v542, 124
  %v1549 = vpop.permute.xlu0 %1548
  %1550 = vrot.lane.b32.xlu0 %v543, 124
  %v1551 = vpop.permute.xlu0 %1550
  %1552 = vrot.lane.b32.xlu0 %v544, 124
  %v1553 = vpop.permute.xlu0 %1552
  %1554 = vrot.lane.b32.xlu0 %v545, 124
  %v1555 = vpop.permute.xlu0 %1554
  %1556 = vrot.lane.b32.xlu0 %v546, 124
  %v1557 = vpop.permute.xlu0 %1556
  %1558 = vrot.lane.b32.xlu0 %v547, 124
  %v1559 = vpop.permute.xlu0 %1558
  %1560 = vrot.lane.b32.xlu0 %v548, 124
  %v1561 = vpop.permute.xlu0 %1560
  %1562 = vrot.lane.b32.xlu0 %v549, 124
  %v1563 = vpop.permute.xlu0 %1562
  %1564 = vrot.lane.b32.xlu0 %v550, 124
  %v1565 = vpop.permute.xlu0 %1564
  %1566 = vrot.lane.b32.xlu0 %v551, 124
  %v1567 = vpop.permute.xlu0 %1566
  %1568 = vrot.lane.b32.xlu0 %v552, 124
  %v1569 = vpop.permute.xlu0 %1568
  %1570 = vrot.lane.b32.xlu0 %v553, 124
  %v1571 = vpop.permute.xlu0 %1570
  %1572 = vrot.lane.b32.xlu0 %v554, 124
  %v1573 = vpop.permute.xlu0 %1572
  %1574 = vrot.lane.b32.xlu0 %v555, 124
  %v1575 = vpop.permute.xlu0 %1574
  %1576 = vrot.lane.b32.xlu0 %v556, 124
  %v1577 = vpop.permute.xlu0 %1576
  %1578 = vrot.lane.b32.xlu0 %v557, 124
  %v1579 = vpop.permute.xlu0 %1578
  %vm1580 = vcmask 1014784
  %v1581 = vsel %vm1580, %v1547, %v1549
  %v1582 = vsel %vm1580, %v1549, %v1551
  %v1583 = vsel %vm1580, %v1551, %v1553
  %v1584 = vsel %vm1580, %v1553, %v1555
  %v1585 = vsel %vm1580, %v1555, %v1557
  %v1586 = vsel %vm1580, %v1557, %v1559
  %v1587 = vsel %vm1580, %v1559, %v1561
  %v1588 = vsel %vm1580, %v1561, %v1563
  %v1589 = vsel %vm1580, %v1563, %v1565
  %v1590 = vsel %vm1580, %v1565, %v1567
  %v1591 = vsel %vm1580, %v1567, %v1569
  %v1592 = vsel %vm1580, %v1569, %v1571
  %v1593 = vsel %vm1580, %v1571, %v1573
  %v1594 = vsel %vm1580, %v1573, %v1575
  %v1595 = vsel %vm1580, %v1575, %v1577
  %v1596 = vsel %vm1580, %v1577, %v1579
  %1630 = vrot.lane.b32.xlu0 %v703, 64
  %v1631 = vpop.permute.xlu0 %1630
  %1632 = vrot.lane.b32.xlu0 %v704, 64
  %v1633 = vpop.permute.xlu0 %1632
  %1634 = vrot.lane.b32.xlu0 %v705, 64
  %v1635 = vpop.permute.xlu0 %1634
  %1636 = vrot.lane.b32.xlu0 %v706, 64
  %v1637 = vpop.permute.xlu0 %1636
  %1638 = vrot.lane.b32.xlu0 %v707, 64
  %v1639 = vpop.permute.xlu0 %1638
  %1640 = vrot.lane.b32.xlu0 %v708, 64
  %v1641 = vpop.permute.xlu0 %1640
  %1642 = vrot.lane.b32.xlu0 %v709, 64
  %v1643 = vpop.permute.xlu0 %1642
  %1644 = vrot.lane.b32.xlu0 %v710, 64
  %v1645 = vpop.permute.xlu0 %1644
  %1646 = vrot.lane.b32.xlu0 %v711, 64
  %v1647 = vpop.permute.xlu0 %1646
  %1648 = vrot.lane.b32.xlu0 %v712, 64
  %v1649 = vpop.permute.xlu0 %1648
  %1650 = vrot.lane.b32.xlu0 %v713, 64
  %v1651 = vpop.permute.xlu0 %1650
  %1652 = vrot.lane.b32.xlu0 %v714, 64
  %v1653 = vpop.permute.xlu0 %1652
  %1654 = vrot.lane.b32.xlu0 %v715, 64
  %v1655 = vpop.permute.xlu0 %1654
  %1656 = vrot.lane.b32.xlu0 %v716, 64
  %v1657 = vpop.permute.xlu0 %1656
  %1658 = vrot.lane.b32.xlu0 %v717, 64
  %v1659 = vpop.permute.xlu0 %1658
  %1660 = vrot.lane.b32.xlu0 %v718, 64
  %v1661 = vpop.permute.xlu0 %1660
  %1662 = vrot.lane.b32.xlu0 %v719, 64
  %v1663 = vpop.permute.xlu0 %1662
  %v1664 = vsel %vm670, %v1631, %v1633
  %v1665 = vsel %vm670, %v1633, %v1635
  %v1666 = vsel %vm670, %v1635, %v1637
  %v1667 = vsel %vm670, %v1637, %v1639
  %v1668 = vsel %vm670, %v1639, %v1641
  %v1669 = vsel %vm670, %v1641, %v1643
  %v1670 = vsel %vm670, %v1643, %v1645
  %v1671 = vsel %vm670, %v1645, %v1647
  %v1672 = vsel %vm670, %v1647, %v1649
  %v1673 = vsel %vm670, %v1649, %v1651
  %v1674 = vsel %vm670, %v1651, %v1653
  %v1675 = vsel %vm670, %v1653, %v1655
  %v1676 = vsel %vm670, %v1655, %v1657
  %v1677 = vsel %vm670, %v1657, %v1659
  %v1678 = vsel %vm670, %v1659, %v1661
  %v1679 = vsel %vm670, %v1661, %v1663
  %1713 = vrot.lane.b32.xlu0 %v864, 62
  %v1714 = vpop.permute.xlu0 %1713
  %1715 = vrot.lane.b32.xlu0 %v865, 62
  %v1716 = vpop.permute.xlu0 %1715
  %1717 = vrot.lane.b32.xlu0 %v866, 62
  %v1718 = vpop.permute.xlu0 %1717
  %1719 = vrot.lane.b32.xlu0 %v867, 62
  %v1720 = vpop.permute.xlu0 %1719
  %1721 = vrot.lane.b32.xlu0 %v868, 62
  %v1722 = vpop.permute.xlu0 %1721
  %1723 = vrot.lane.b32.xlu0 %v869, 62
  %v1724 = vpop.permute.xlu0 %1723
  %1725 = vrot.lane.b32.xlu0 %v870, 62
  %v1726 = vpop.permute.xlu0 %1725
  %1727 = vrot.lane.b32.xlu0 %v871, 62
  %v1728 = vpop.permute.xlu0 %1727
  %1729 = vrot.lane.b32.xlu0 %v872, 62
  %v1730 = vpop.permute.xlu0 %1729
  %1731 = vrot.lane.b32.xlu0 %v873, 62
  %v1732 = vpop.permute.xlu0 %1731
  %1733 = vrot.lane.b32.xlu0 %v874, 62
  %v1734 = vpop.permute.xlu0 %1733
  %1735 = vrot.lane.b32.xlu0 %v875, 62
  %v1736 = vpop.permute.xlu0 %1735
  %1737 = vrot.lane.b32.xlu0 %v876, 62
  %v1738 = vpop.permute.xlu0 %1737
  %1739 = vrot.lane.b32.xlu0 %v877, 62
  %v1740 = vpop.permute.xlu0 %1739
  %1741 = vrot.lane.b32.xlu0 %v878, 62
  %v1742 = vpop.permute.xlu0 %1741
  %1743 = vrot.lane.b32.xlu0 %v879, 62
  %v1744 = vpop.permute.xlu0 %1743
  %1745 = vrot.lane.b32.xlu0 %v880, 62
  %v1746 = vpop.permute.xlu0 %1745
  %vm1747 = vcmask 506880
  %v1748 = vsel %vm1747, %v1714, %v1716
  %v1749 = vsel %vm1747, %v1716, %v1718
  %v1750 = vsel %vm1747, %v1718, %v1720
  %v1751 = vsel %vm1747, %v1720, %v1722
  %v1752 = vsel %vm1747, %v1722, %v1724
  %v1753 = vsel %vm1747, %v1724, %v1726
  %v1754 = vsel %vm1747, %v1726, %v1728
  %v1755 = vsel %vm1747, %v1728, %v1730
  %v1756 = vsel %vm1747, %v1730, %v1732
  %v1757 = vsel %vm1747, %v1732, %v1734
  %v1758 = vsel %vm1747, %v1734, %v1736
  %v1759 = vsel %vm1747, %v1736, %v1738
  %v1760 = vsel %vm1747, %v1738, %v1740
  %v1761 = vsel %vm1747, %v1740, %v1742
  %v1762 = vsel %vm1747, %v1742, %v1744
  %v1763 = vsel %vm1747, %v1744, %v1746
  %1797 = vrot.lane.b32.xlu0 %v1026, 60
  %v1798 = vpop.permute.xlu0 %1797
  %1799 = vrot.lane.b32.xlu0 %v1027, 60
  %v1800 = vpop.permute.xlu0 %1799
  %1801 = vrot.lane.b32.xlu0 %v1028, 60
  %v1802 = vpop.permute.xlu0 %1801
  %1803 = vrot.lane.b32.xlu0 %v1029, 60
  %v1804 = vpop.permute.xlu0 %1803
  %1805 = vrot.lane.b32.xlu0 %v1030, 60
  %v1806 = vpop.permute.xlu0 %1805
  %1807 = vrot.lane.b32.xlu0 %v1031, 60
  %v1808 = vpop.permute.xlu0 %1807
  %1809 = vrot.lane.b32.xlu0 %v1032, 60
  %v1810 = vpop.permute.xlu0 %1809
  %1811 = vrot.lane.b32.xlu0 %v1033, 60
  %v1812 = vpop.permute.xlu0 %1811
  %1813 = vrot.lane.b32.xlu0 %v1034, 60
  %v1814 = vpop.permute.xlu0 %1813
  %1815 = vrot.lane.b32.xlu0 %v1035, 60
  %v1816 = vpop.permute.xlu0 %1815
  %1817 = vrot.lane.b32.xlu0 %v1036, 60
  %v1818 = vpop.permute.xlu0 %1817
  %1819 = vrot.lane.b32.xlu0 %v1037, 60
  %v1820 = vpop.permute.xlu0 %1819
  %1821 = vrot.lane.b32.xlu0 %v1038, 60
  %v1822 = vpop.permute.xlu0 %1821
  %1823 = vrot.lane.b32.xlu0 %v1039, 60
  %v1824 = vpop.permute.xlu0 %1823
  %1825 = vrot.lane.b32.xlu0 %v1040, 60
  %v1826 = vpop.permute.xlu0 %1825
  %1827 = vrot.lane.b32.xlu0 %v1041, 60
  %v1828 = vpop.permute.xlu0 %1827
  %1829 = vrot.lane.b32.xlu0 %v1042, 60
  %v1830 = vpop.permute.xlu0 %1829
  %vm1831 = vcmask 490496
  %v1832 = vsel %vm1831, %v1798, %v1800
  %v1833 = vsel %vm1831, %v1800, %v1802
  %v1834 = vsel %vm1831, %v1802, %v1804
  %v1835 = vsel %vm1831, %v1804, %v1806
  %v1836 = vsel %vm1831, %v1806, %v1808
  %v1837 = vsel %vm1831, %v1808, %v1810
  %v1838 = vsel %vm1831, %v1810, %v1812
  %v1839 = vsel %vm1831, %v1812, %v1814
  %v1840 = vsel %vm1831, %v1814, %v1816
  %v1841 = vsel %vm1831, %v1816, %v1818
  %v1842 = vsel %vm1831, %v1818, %v1820
  %v1843 = vsel %vm1831, %v1820, %v1822
  %v1844 = vsel %vm1831, %v1822, %v1824
  %v1845 = vsel %vm1831, %v1824, %v1826
  %v1846 = vsel %vm1831, %v1826, %v1828
  %v1847 = vsel %vm1831, %v1828, %v1830
  %1881 = vrot.lane.b32.xlu0 %v1267, 126
  %v1882 = vpop.permute.xlu0 %1881
  %1883 = vrot.lane.b32.xlu0 %v1268, 126
  %v1884 = vpop.permute.xlu0 %1883
  %1885 = vrot.lane.b32.xlu0 %v1269, 126
  %v1886 = vpop.permute.xlu0 %1885
  %1887 = vrot.lane.b32.xlu0 %v1270, 126
  %v1888 = vpop.permute.xlu0 %1887
  %1889 = vrot.lane.b32.xlu0 %v1271, 126
  %v1890 = vpop.permute.xlu0 %1889
  %1891 = vrot.lane.b32.xlu0 %v1272, 126
  %v1892 = vpop.permute.xlu0 %1891
  %1893 = vrot.lane.b32.xlu0 %v1273, 126
  %v1894 = vpop.permute.xlu0 %1893
  %1895 = vrot.lane.b32.xlu0 %v1274, 126
  %v1896 = vpop.permute.xlu0 %1895
  %1897 = vrot.lane.b32.xlu0 %v1275, 126
  %v1898 = vpop.permute.xlu0 %1897
  %1899 = vrot.lane.b32.xlu0 %v1276, 126
  %v1900 = vpop.permute.xlu0 %1899
  %1901 = vrot.lane.b32.xlu0 %v1277, 126
  %v1902 = vpop.permute.xlu0 %1901
  %1903 = vrot.lane.b32.xlu0 %v1278, 126
  %v1904 = vpop.permute.xlu0 %1903
  %1905 = vrot.lane.b32.xlu0 %v1279, 126
  %v1906 = vpop.permute.xlu0 %1905
  %1907 = vrot.lane.b32.xlu0 %v1280, 126
  %v1908 = vpop.permute.xlu0 %1907
  %1909 = vrot.lane.b32.xlu0 %v1281, 126
  %v1910 = vpop.permute.xlu0 %1909
  %1911 = vrot.lane.b32.xlu0 %v1282, 126
  %v1912 = vpop.permute.xlu0 %1911
  %1913 = vrot.lane.b32.xlu0 %v1283, 126
  %v1914 = vpop.permute.xlu0 %1913
  %v1915 = vsel %vm1496, %v1882, %v1884
  %v1916 = vsel %vm1496, %v1884, %v1886
  %v1917 = vsel %vm1496, %v1886, %v1888
  %v1918 = vsel %vm1496, %v1888, %v1890
  %v1919 = vsel %vm1496, %v1890, %v1892
  %v1920 = vsel %vm1496, %v1892, %v1894
  %v1921 = vsel %vm1496, %v1894, %v1896
  %v1922 = vsel %vm1496, %v1896, %v1898
  %v1923 = vsel %vm1496, %v1898, %v1900
  %v1924 = vsel %vm1496, %v1900, %v1902
  %v1925 = vsel %vm1496, %v1902, %v1904
  %v1926 = vsel %vm1496, %v1904, %v1906
  %v1927 = vsel %vm1496, %v1906, %v1908
  %v1928 = vsel %vm1496, %v1908, %v1910
  %v1929 = vsel %vm1496, %v1910, %v1912
  %v1930 = vsel %vm1496, %v1912, %v1914
  %1964 = vrot.lane.b32.xlu0 %v1428, 124
  %v1965 = vpop.permute.xlu0 %1964
  %1966 = vrot.lane.b32.xlu0 %v1429, 124
  %v1967 = vpop.permute.xlu0 %1966
  %1968 = vrot.lane.b32.xlu0 %v1430, 124
  %v1969 = vpop.permute.xlu0 %1968
  %1970 = vrot.lane.b32.xlu0 %v1431, 124
  %v1971 = vpop.permute.xlu0 %1970
  %1972 = vrot.lane.b32.xlu0 %v1432, 124
  %v1973 = vpop.permute.xlu0 %1972
  %1974 = vrot.lane.b32.xlu0 %v1433, 124
  %v1975 = vpop.permute.xlu0 %1974
  %1976 = vrot.lane.b32.xlu0 %v1434, 124
  %v1977 = vpop.permute.xlu0 %1976
  %1978 = vrot.lane.b32.xlu0 %v1435, 124
  %v1979 = vpop.permute.xlu0 %1978
  %1980 = vrot.lane.b32.xlu0 %v1436, 124
  %v1981 = vpop.permute.xlu0 %1980
  %1982 = vrot.lane.b32.xlu0 %v1437, 124
  %v1983 = vpop.permute.xlu0 %1982
  %1984 = vrot.lane.b32.xlu0 %v1438, 124
  %v1985 = vpop.permute.xlu0 %1984
  %1986 = vrot.lane.b32.xlu0 %v1439, 124
  %v1987 = vpop.permute.xlu0 %1986
  %1988 = vrot.lane.b32.xlu0 %v1440, 124
  %v1989 = vpop.permute.xlu0 %1988
  %1990 = vrot.lane.b32.xlu0 %v1441, 124
  %v1991 = vpop.permute.xlu0 %1990
  %1992 = vrot.lane.b32.xlu0 %v1442, 124
  %v1993 = vpop.permute.xlu0 %1992
  %1994 = vrot.lane.b32.xlu0 %v1443, 124
  %v1995 = vpop.permute.xlu0 %1994
  %1996 = vrot.lane.b32.xlu0 %v1444, 124
  %v1997 = vpop.permute.xlu0 %1996
  %v1998 = vsel %vm1580, %v1965, %v1967
  %v1999 = vsel %vm1580, %v1967, %v1969
  %v2000 = vsel %vm1580, %v1969, %v1971
  %v2001 = vsel %vm1580, %v1971, %v1973
  %v2002 = vsel %vm1580, %v1973, %v1975
  %v2003 = vsel %vm1580, %v1975, %v1977
  %v2004 = vsel %vm1580, %v1977, %v1979
  %v2005 = vsel %vm1580, %v1979, %v1981
  %v2006 = vsel %vm1580, %v1981, %v1983
  %v2007 = vsel %vm1580, %v1983, %v1985
  %v2008 = vsel %vm1580, %v1985, %v1987
  %v2009 = vsel %vm1580, %v1987, %v1989
  %v2010 = vsel %vm1580, %v1989, %v1991
  %v2011 = vsel %vm1580, %v1991, %v1993
  %v2012 = vsel %vm1580, %v1993, %v1995
  %v2013 = vsel %vm1580, %v1995, %v1997
  %v2030 = vpack.c.bf16 %v1497, %v218
  %v2031 = vpack.c.bf16 %v1498, %v219
  %v2032 = vpack.c.bf16 %v1499, %v220
  %v2033 = vpack.c.bf16 %v1500, %v221
  %v2034 = vpack.c.bf16 %v1501, %v222
  %v2035 = vpack.c.bf16 %v1502, %v223
  %v2036 = vpack.c.bf16 %v1503, %v224
  %v2037 = vpack.c.bf16 %v1504, %v225
  %v2038 = vpack.c.bf16 %v1505, %v226
  %v2039 = vpack.c.bf16 %v1506, %v227
  %v2040 = vpack.c.bf16 %v1507, %v228
  %v2041 = vpack.c.bf16 %v1508, %v229
  %v2042 = vpack.c.bf16 %v1509, %v230
  %v2043 = vpack.c.bf16 %v1510, %v231
  %v2044 = vpack.c.bf16 %v1511, %v232
  %v2045 = vpack.c.bf16 %v1512, %v233
  %v2046 = vpack.c.bf16 %v1664, %v1581
  %v2047 = vpack.c.bf16 %v1665, %v1582
  %v2048 = vpack.c.bf16 %v1666, %v1583
  %v2049 = vpack.c.bf16 %v1667, %v1584
  %v2050 = vpack.c.bf16 %v1668, %v1585
  %v2051 = vpack.c.bf16 %v1669, %v1586
  %v2052 = vpack.c.bf16 %v1670, %v1587
  %v2053 = vpack.c.bf16 %v1671, %v1588
  %v2054 = vpack.c.bf16 %v1672, %v1589
  %v2055 = vpack.c.bf16 %v1673, %v1590
  %v2056 = vpack.c.bf16 %v1674, %v1591
  %v2057 = vpack.c.bf16 %v1675, %v1592
  %v2058 = vpack.c.bf16 %v1676, %v1593
  %v2059 = vpack.c.bf16 %v1677, %v1594
  %v2060 = vpack.c.bf16 %v1678, %v1595
  %v2061 = vpack.c.bf16 %v1679, %v1596
  %v2062 = vpack.c.bf16 %v1832, %v1748
  %v2063 = vpack.c.bf16 %v1833, %v1749
  %v2064 = vpack.c.bf16 %v1834, %v1750
  %v2065 = vpack.c.bf16 %v1835, %v1751
  %v2066 = vpack.c.bf16 %v1836, %v1752
  %v2067 = vpack.c.bf16 %v1837, %v1753
  %v2068 = vpack.c.bf16 %v1838, %v1754
  %v2069 = vpack.c.bf16 %v1839, %v1755
  %v2070 = vpack.c.bf16 %v1840, %v1756
  %v2071 = vpack.c.bf16 %v1841, %v1757
  %v2072 = vpack.c.bf16 %v1842, %v1758
  %v2073 = vpack.c.bf16 %v1843, %v1759
  %v2074 = vpack.c.bf16 %v1844, %v1760
  %v2075 = vpack.c.bf16 %v1845, %v1761
  %v2076 = vpack.c.bf16 %v1846, %v1762
  %v2077 = vpack.c.bf16 %v1847, %v1763
  %v2078 = vpack.c.bf16 %v1915, %v1107
  %v2079 = vpack.c.bf16 %v1916, %v1108
  %v2080 = vpack.c.bf16 %v1917, %v1109
  %v2081 = vpack.c.bf16 %v1918, %v1110
  %v2082 = vpack.c.bf16 %v1919, %v1111
  %v2083 = vpack.c.bf16 %v1920, %v1112
  %v2084 = vpack.c.bf16 %v1921, %v1113
  %v2085 = vpack.c.bf16 %v1922, %v1114
  %v2086 = vpack.c.bf16 %v1923, %v1115
  %v2087 = vpack.c.bf16 %v1924, %v1116
  %v2088 = vpack.c.bf16 %v1925, %v1117
  %v2089 = vpack.c.bf16 %v1926, %v1118
  %v2090 = vpack.c.bf16 %v1927, %v1119
  %v2091 = vpack.c.bf16 %v1928, %v1120
  %v2092 = vpack.c.bf16 %v1929, %v1121
  %v2093 = vpack.c.bf16 %v1930, %v1122
  %v2094 = vpack.c.bf16 %v1998, %v1998
  %v2095 = vpack.c.bf16 %v1999, %v1999
  %v2096 = vpack.c.bf16 %v2000, %v2000
  %v2097 = vpack.c.bf16 %v2001, %v2001
  %v2098 = vpack.c.bf16 %v2002, %v2002
  %v2099 = vpack.c.bf16 %v2003, %v2003
  %v2100 = vpack.c.bf16 %v2004, %v2004
  %v2101 = vpack.c.bf16 %v2005, %v2005
  %v2102 = vpack.c.bf16 %v2006, %v2006
  %v2103 = vpack.c.bf16 %v2007, %v2007
  %v2104 = vpack.c.bf16 %v2008, %v2008
  %v2105 = vpack.c.bf16 %v2009, %v2009
  %v2106 = vpack.c.bf16 %v2010, %v2010
  %v2107 = vpack.c.bf16 %v2011, %v2011
  %v2108 = vpack.c.bf16 %v2012, %v2012
  %v2109 = vpack.c.bf16 %v2013, %v2013
  %v2110 = vld [vmem:[%s1] sm:$0xf]
  %v2111 = vld [vmem:[%s1 + $0x4] sm:$0x3]
  %v2114 = vunpack.c.l.b16 %v2110
  %v2115 = vunpack.c.l.b16 %v2111
  %v2116 = vpack.c.b16 %v2115, %v2114
  %vm2117 = vcmask 588800
  %v2119 = vsel %vm2117, %v2116, 0
  %vm2121 = vcmask 1043456
  %v2123 = vsel %vm2121, %v2094, 0
  %v2126 = vsel %vm2121, %v2095, 0
  %v2129 = vsel %vm2121, %v2096, 0
  %v2132 = vsel %vm2121, %v2097, 0
  %v2135 = vsel %vm2121, %v2098, 0
  %v2138 = vsel %vm2121, %v2099, 0
  %v2141 = vsel %vm2121, %v2100, 0
  %v2144 = vsel %vm2121, %v2101, 0
  %v2147 = vsel %vm2121, %v2102, 0
  %v2150 = vsel %vm2121, %v2103, 0
  %v2153 = vsel %vm2121, %v2104, 0
  %v2156 = vsel %vm2121, %v2105, 0
  %v2159 = vsel %vm2121, %v2106, 0
  %v2162 = vsel %vm2121, %v2107, 0
  %v2165 = vsel %vm2121, %v2108, 0
  %v2168 = vsel %vm2121, %v2109, 0
  %2170 = vmatprep.subr.bf16.mxu0 %v2031
  %2171 = vmatpush1.bf16.msra.mxu0 %v2030
  %2172 = vmatprep.subr.bf16.mxu0 %v2047
  %2173 = vmatpush1.bf16.msra.mxu0 %v2046
  %2174 = vmatprep.subr.bf16.mxu0 %v2063
  %2175 = vmatpush1.bf16.msra.mxu0 %v2062
  %2176 = vmatprep.subr.bf16.mxu0 %v2079
  %2177 = vmatpush1.bf16.msra.mxu0 %v2078
  %2178 = vmatprep.subr.bf16.mxu0 %v2126
  %2179 = vmatpush1.bf16.msra.mxu0 %v2123
  %2180 = vmatprep.subr.bf16.mxu0 0
  %2181 = vmatpush1.bf16.msra.mxu0 0
  %2182 = vmatprep.subr.bf16.mxu0 0
  %2183 = vmatpush1.bf16.msra.mxu0 0
  %2184 = vmatprep.subr.bf16.mxu0 0
  %2185 = vmatpush1.bf16.msra.mxu0 0
  %2186 = vmatprep.subr.bf16.mxu0 0
  %2187 = vmatpush1.bf16.msra.mxu0 0
  %2188 = vmatprep.subr.bf16.mxu0 0
  %2189 = vmatpush1.bf16.msra.mxu0 0
  %2190 = vmatprep.subr.bf16.mxu0 0
  %2191 = vmatpush1.bf16.msra.mxu0 0
  %2192 = vmatprep.subr.bf16.mxu0 0
  %2193 = vmatpush1.bf16.msra.mxu0 0
  %2194 = vmatprep.subr.bf16.mxu0 0
  %2195 = vmatpush1.bf16.msra.mxu0 0
  %2196 = vmatprep.subr.bf16.mxu0 0
  %2197 = vmatpush1.bf16.msra.mxu0 0
  %2198 = vmatprep.subr.bf16.mxu0 0
  %2199 = vmatpush1.bf16.msra.mxu0 0
  %2200 = vmatprep.subr.bf16.mxu0 0
  %2201 = vmatpush1.bf16.msra.mxu0 0
  %2202 = vmatprep.mubr.bf16.mxu0 0
  %2203 = vmatmul.mubr.bf16.gmra.mrb[0].mxu0 %v2119
  %v2204 = vpop.f32.mrb[0].mxu0
  %v2205 = vadd.f32 0.0, %v2204
  %v2206 = vpop.f32.mrb[0].mxu0
  %v2207 = vadd.f32 0.0, %v2206
  %v2208 = vpop.f32.mrb[0].mxu0
  %v2209 = vadd.f32 0.0, %v2208
  %v2210 = vpop.f32.mrb[0].mxu0
  %v2211 = vadd.f32 0.0, %v2210
  %2212 = vdwg.mxu0
  %2213 = vmatprep.subr.bf16.mxu0 %v2033
  %2214 = vmatpush1.bf16.msra.mxu0 %v2032
  %2215 = vmatprep.subr.bf16.mxu0 %v2049
  %2216 = vmatpush1.bf16.msra.mxu0 %v2048
  %2217 = vmatprep.subr.bf16.mxu0 %v2065
  %2218 = vmatpush1.bf16.msra.mxu0 %v2064
  %2219 = vmatprep.subr.bf16.mxu0 %v2081
  %2220 = vmatpush1.bf16.msra.mxu0 %v2080
  %2221 = vmatprep.subr.bf16.mxu0 %v2132
  %2222 = vmatpush1.bf16.msra.mxu0 %v2129
  %2223 = vmatprep.subr.bf16.mxu0 0
  %2224 = vmatpush1.bf16.msra.mxu0 0
  %2225 = vmatprep.subr.bf16.mxu0 0
  %2226 = vmatpush1.bf16.msra.mxu0 0
  %2227 = vmatprep.subr.bf16.mxu0 0
  %2228 = vmatpush1.bf16.msra.mxu0 0
  %2229 = vmatprep.subr.bf16.mxu0 0
  %2230 = vmatpush1.bf16.msra.mxu0 0
  %2231 = vmatprep.subr.bf16.mxu0 0
  %2232 = vmatpush1.bf16.msra.mxu0 0
  %2233 = vmatprep.subr.bf16.mxu0 0
  %2234 = vmatpush1.bf16.msra.mxu0 0
  %2235 = vmatprep.subr.bf16.mxu0 0
  %2236 = vmatpush1.bf16.msra.mxu0 0
  %2237 = vmatprep.subr.bf16.mxu0 0
  %2238 = vmatpush1.bf16.msra.mxu0 0
  %2239 = vmatprep.subr.bf16.mxu0 0
  %2240 = vmatpush1.bf16.msra.mxu0 0
  %2241 = vmatprep.subr.bf16.mxu0 0
  %2242 = vmatpush1.bf16.msra.mxu0 0
  %2243 = vmatprep.subr.bf16.mxu0 0
  %2244 = vmatpush1.bf16.msra.mxu0 0
  %2245 = vmatprep.mubr.bf16.mxu0 0
  %2246 = vmatmul.mubr.bf16.gmra.mrb[0].mxu0 %v2119
  %v2247 = vpop.f32.mrb[0].mxu0
  %v2248 = vadd.f32 0.0, %v2247
  %v2249 = vpop.f32.mrb[0].mxu0
  %v2250 = vadd.f32 0.0, %v2249
  %v2251 = vpop.f32.mrb[0].mxu0
  %v2252 = vadd.f32 0.0, %v2251
  %v2253 = vpop.f32.mrb[0].mxu0
  %v2254 = vadd.f32 0.0, %v2253
  %2255 = vdwg.mxu0
  %2256 = vmatprep.subr.bf16.mxu0 %v2035
  %2257 = vmatpush1.bf16.msra.mxu0 %v2034
  %2258 = vmatprep.subr.bf16.mxu0 %v2051
  %2259 = vmatpush1.bf16.msra.mxu0 %v2050
  %2260 = vmatprep.subr.bf16.mxu0 %v2067
  %2261 = vmatpush1.bf16.msra.mxu0 %v2066
  %2262 = vmatprep.subr.bf16.mxu0 %v2083
  %2263 = vmatpush1.bf16.msra.mxu0 %v2082
  %2264 = vmatprep.subr.bf16.mxu0 %v2138
  %2265 = vmatpush1.bf16.msra.mxu0 %v2135
  %2266 = vmatprep.subr.bf16.mxu0 0
  %2267 = vmatpush1.bf16.msra.mxu0 0
  %2268 = vmatprep.subr.bf16.mxu0 0
  %2269 = vmatpush1.bf16.msra.mxu0 0
  %2270 = vmatprep.subr.bf16.mxu0 0
  %2271 = vmatpush1.bf16.msra.mxu0 0
  %2272 = vmatprep.subr.bf16.mxu0 0
  %2273 = vmatpush1.bf16.msra.mxu0 0
  %2274 = vmatprep.subr.bf16.mxu0 0
  %2275 = vmatpush1.bf16.msra.mxu0 0
  %2276 = vmatprep.subr.bf16.mxu0 0
  %2277 = vmatpush1.bf16.msra.mxu0 0
  %2278 = vmatprep.subr.bf16.mxu0 0
  %2279 = vmatpush1.bf16.msra.mxu0 0
  %2280 = vmatprep.subr.bf16.mxu0 0
  %2281 = vmatpush1.bf16.msra.mxu0 0
  %2282 = vmatprep.subr.bf16.mxu0 0
  %2283 = vmatpush1.bf16.msra.mxu0 0
  %2284 = vmatprep.subr.bf16.mxu0 0
  %2285 = vmatpush1.bf16.msra.mxu0 0
  %2286 = vmatprep.subr.bf16.mxu0 0
  %2287 = vmatpush1.bf16.msra.mxu0 0
  %2288 = vmatprep.mubr.bf16.mxu0 0
  %2289 = vmatmul.mubr.bf16.gmra.mrb[0].mxu0 %v2119
  %v2290 = vpop.f32.mrb[0].mxu0
  %v2291 = vadd.f32 0.0, %v2290
  %v2292 = vpop.f32.mrb[0].mxu0
  %v2293 = vadd.f32 0.0, %v2292
  %v2294 = vpop.f32.mrb[0].mxu0
  %v2295 = vadd.f32 0.0, %v2294
  %v2296 = vpop.f32.mrb[0].mxu0
  %v2297 = vadd.f32 0.0, %v2296
  %2298 = vdwg.mxu0
  %2299 = vmatprep.subr.bf16.mxu0 %v2037
  %2300 = vmatpush1.bf16.msra.mxu0 %v2036
  %2301 = vmatprep.subr.bf16.mxu0 %v2053
  %2302 = vmatpush1.bf16.msra.mxu0 %v2052
  %2303 = vmatprep.subr.bf16.mxu0 %v2069
  %2304 = vmatpush1.bf16.msra.mxu0 %v2068
  %2305 = vmatprep.subr.bf16.mxu0 %v2085
  %2306 = vmatpush1.bf16.msra.mxu0 %v2084
  %2307 = vmatprep.subr.bf16.mxu0 %v2144
  %2308 = vmatpush1.bf16.msra.mxu0 %v2141
  %2309 = vmatprep.subr.bf16.mxu0 0
  %2310 = vmatpush1.bf16.msra.mxu0 0
  %2311 = vmatprep.subr.bf16.mxu0 0
  %2312 = vmatpush1.bf16.msra.mxu0 0
  %2313 = vmatprep.subr.bf16.mxu0 0
  %2314 = vmatpush1.bf16.msra.mxu0 0
  %2315 = vmatprep.subr.bf16.mxu0 0
  %2316 = vmatpush1.bf16.msra.mxu0 0
  %2317 = vmatprep.subr.bf16.mxu0 0
  %2318 = vmatpush1.bf16.msra.mxu0 0
  %2319 = vmatprep.subr.bf16.mxu0 0
  %2320 = vmatpush1.bf16.msra.mxu0 0
  %2321 = vmatprep.subr.bf16.mxu0 0
  %2322 = vmatpush1.bf16.msra.mxu0 0
  %2323 = vmatprep.subr.bf16.mxu0 0
  %2324 = vmatpush1.bf16.msra.mxu0 0
  %2325 = vmatprep.subr.bf16.mxu0 0
  %2326 = vmatpush1.bf16.msra.mxu0 0
  %2327 = vmatprep.subr.bf16.mxu0 0
  %2328 = vmatpush1.bf16.msra.mxu0 0
  %2329 = vmatprep.subr.bf16.mxu0 0
  %2330 = vmatpush1.bf16.msra.mxu0 0
  %2331 = vmatprep.mubr.bf16.mxu0 0
  %2332 = vmatmul.mubr.bf16.gmra.mrb[0].mxu0 %v2119
  %v2333 = vpop.f32.mrb[0].mxu0
  %v2334 = vadd.f32 0.0, %v2333
  %v2335 = vpop.f32.mrb[0].mxu0
  %v2336 = vadd.f32 0.0, %v2335
  %v2337 = vpop.f32.mrb[0].mxu0
  %v2338 = vadd.f32 0.0, %v2337
  %v2339 = vpop.f32.mrb[0].mxu0
  %v2340 = vadd.f32 0.0, %v2339
  %2341 = vdwg.mxu0
  %2342 = vmatprep.subr.bf16.mxu0 %v2039
  %2343 = vmatpush1.bf16.msra.mxu0 %v2038
  %2344 = vmatprep.subr.bf16.mxu0 %v2055
  %2345 = vmatpush1.bf16.msra.mxu0 %v2054
  %2346 = vmatprep.subr.bf16.mxu0 %v2071
  %2347 = vmatpush1.bf16.msra.mxu0 %v2070
  %2348 = vmatprep.subr.bf16.mxu0 %v2087
  %2349 = vmatpush1.bf16.msra.mxu0 %v2086
  %2350 = vmatprep.subr.bf16.mxu0 %v2150
  %2351 = vmatpush1.bf16.msra.mxu0 %v2147
  %2352 = vmatprep.subr.bf16.mxu0 0
  %2353 = vmatpush1.bf16.msra.mxu0 0
  %2354 = vmatprep.subr.bf16.mxu0 0
  %2355 = vmatpush1.bf16.msra.mxu0 0
  %2356 = vmatprep.subr.bf16.mxu0 0
  %2357 = vmatpush1.bf16.msra.mxu0 0
  %2358 = vmatprep.subr.bf16.mxu0 0
  %2359 = vmatpush1.bf16.msra.mxu0 0
  %2360 = vmatprep.subr.bf16.mxu0 0
  %2361 = vmatpush1.bf16.msra.mxu0 0
  %2362 = vmatprep.subr.bf16.mxu0 0
  %2363 = vmatpush1.bf16.msra.mxu0 0
  %2364 = vmatprep.subr.bf16.mxu0 0
  %2365 = vmatpush1.bf16.msra.mxu0 0
  %2366 = vmatprep.subr.bf16.mxu0 0
  %2367 = vmatpush1.bf16.msra.mxu0 0
  %2368 = vmatprep.subr.bf16.mxu0 0
  %2369 = vmatpush1.bf16.msra.mxu0 0
  %2370 = vmatprep.subr.bf16.mxu0 0
  %2371 = vmatpush1.bf16.msra.mxu0 0
  %2372 = vmatprep.subr.bf16.mxu0 0
  %2373 = vmatpush1.bf16.msra.mxu0 0
  %2374 = vmatprep.mubr.bf16.mxu0 0
  %2375 = vmatmul.mubr.bf16.gmra.mrb[0].mxu0 %v2119
  %v2376 = vpop.f32.mrb[0].mxu0
  %v2377 = vadd.f32 0.0, %v2376
  %v2378 = vpop.f32.mrb[0].mxu0
  %v2379 = vadd.f32 0.0, %v2378
  %v2380 = vpop.f32.mrb[0].mxu0
  %v2381 = vadd.f32 0.0, %v2380
  %v2382 = vpop.f32.mrb[0].mxu0
  %v2383 = vadd.f32 0.0, %v2382
  %2384 = vdwg.mxu0
  %2385 = vmatprep.subr.bf16.mxu0 %v2041
  %2386 = vmatpush1.bf16.msra.mxu0 %v2040
  %2387 = vmatprep.subr.bf16.mxu0 %v2057
  %2388 = vmatpush1.bf16.msra.mxu0 %v2056
  %2389 = vmatprep.subr.bf16.mxu0 %v2073
  %2390 = vmatpush1.bf16.msra.mxu0 %v2072
  %2391 = vmatprep.subr.bf16.mxu0 %v2089
  %2392 = vmatpush1.bf16.msra.mxu0 %v2088
  %2393 = vmatprep.subr.bf16.mxu0 %v2156
  %2394 = vmatpush1.bf16.msra.mxu0 %v2153
  %2395 = vmatprep.subr.bf16.mxu0 0
  %2396 = vmatpush1.bf16.msra.mxu0 0
  %2397 = vmatprep.subr.bf16.mxu0 0
  %2398 = vmatpush1.bf16.msra.mxu0 0
  %2399 = vmatprep.subr.bf16.mxu0 0
  %2400 = vmatpush1.bf16.msra.mxu0 0
  %2401 = vmatprep.subr.bf16.mxu0 0
  %2402 = vmatpush1.bf16.msra.mxu0 0
  %2403 = vmatprep.subr.bf16.mxu0 0
  %2404 = vmatpush1.bf16.msra.mxu0 0
  %2405 = vmatprep.subr.bf16.mxu0 0
  %2406 = vmatpush1.bf16.msra.mxu0 0
  %2407 = vmatprep.subr.bf16.mxu0 0
  %2408 = vmatpush1.bf16.msra.mxu0 0
  %2409 = vmatprep.subr.bf16.mxu0 0
  %2410 = vmatpush1.bf16.msra.mxu0 0
  %2411 = vmatprep.subr.bf16.mxu0 0
  %2412 = vmatpush1.bf16.msra.mxu0 0
  %2413 = vmatprep.subr.bf16.mxu0 0
  %2414 = vmatpush1.bf16.msra.mxu0 0
  %2415 = vmatprep.subr.bf16.mxu0 0
  %2416 = vmatpush1.bf16.msra.mxu0 0
  %2417 = vmatprep.mubr.bf16.mxu0 0
  %2418 = vmatmul.mubr.bf16.gmra.mrb[0].mxu0 %v2119
  %v2419 = vpop.f32.mrb[0].mxu0
  %v2420 = vadd.f32 0.0, %v2419
  %v2421 = vpop.f32.mrb[0].mxu0
  %v2422 = vadd.f32 0.0, %v2421
  %v2423 = vpop.f32.mrb[0].mxu0
  %v2424 = vadd.f32 0.0, %v2423
  %v2425 = vpop.f32.mrb[0].mxu0
  %v2426 = vadd.f32 0.0, %v2425
  %2427 = vdwg.mxu0
  %2428 = vmatprep.subr.bf16.mxu0 %v2043
  %2429 = vmatpush1.bf16.msra.mxu0 %v2042
  %2430 = vmatprep.subr.bf16.mxu0 %v2059
  %2431 = vmatpush1.bf16.msra.mxu0 %v2058
  %2432 = vmatprep.subr.bf16.mxu0 %v2075
  %2433 = vmatpush1.bf16.msra.mxu0 %v2074
  %2434 = vmatprep.subr.bf16.mxu0 %v2091
  %2435 = vmatpush1.bf16.msra.mxu0 %v2090
  %2436 = vmatprep.subr.bf16.mxu0 %v2162
  %2437 = vmatpush1.bf16.msra.mxu0 %v2159
  %2438 = vmatprep.subr.bf16.mxu0 0
  %2439 = vmatpush1.bf16.msra.mxu0 0
  %2440 = vmatprep.subr.bf16.mxu0 0
  %2441 = vmatpush1.bf16.msra.mxu0 0
  %2442 = vmatprep.subr.bf16.mxu0 0
  %2443 = vmatpush1.bf16.msra.mxu0 0
  %2444 = vmatprep.subr.bf16.mxu0 0
  %2445 = vmatpush1.bf16.msra.mxu0 0
  %2446 = vmatprep.subr.bf16.mxu0 0
  %2447 = vmatpush1.bf16.msra.mxu0 0
  %2448 = vmatprep.subr.bf16.mxu0 0
  %2449 = vmatpush1.bf16.msra.mxu0 0
  %2450 = vmatprep.subr.bf16.mxu0 0
  %2451 = vmatpush1.bf16.msra.mxu0 0
  %2452 = vmatprep.subr.bf16.mxu0 0
  %2453 = vmatpush1.bf16.msra.mxu0 0
  %2454 = vmatprep.subr.bf16.mxu0 0
  %2455 = vmatpush1.bf16.msra.mxu0 0
  %2456 = vmatprep.subr.bf16.mxu0 0
  %2457 = vmatpush1.bf16.msra.mxu0 0
  %2458 = vmatprep.subr.bf16.mxu0 0
  %2459 = vmatpush1.bf16.msra.mxu0 0
  %2460 = vmatprep.mubr.bf16.mxu0 0
  %2461 = vmatmul.mubr.bf16.gmra.mrb[0].mxu0 %v2119
  %v2462 = vpop.f32.mrb[0].mxu0
  %v2463 = vadd.f32 0.0, %v2462
  %v2464 = vpop.f32.mrb[0].mxu0
  %v2465 = vadd.f32 0.0, %v2464
  %v2466 = vpop.f32.mrb[0].mxu0
  %v2467 = vadd.f32 0.0, %v2466
  %v2468 = vpop.f32.mrb[0].mxu0
  %v2469 = vadd.f32 0.0, %v2468
  %2470 = vdwg.mxu0
  %2471 = vmatprep.subr.bf16.mxu0 %v2045
  %2472 = vmatpush1.bf16.msra.mxu0 %v2044
  %2473 = vmatprep.subr.bf16.mxu0 %v2061
  %2474 = vmatpush1.bf16.msra.mxu0 %v2060
  %2475 = vmatprep.subr.bf16.mxu0 %v2077
  %2476 = vmatpush1.bf16.msra.mxu0 %v2076
  %2477 = vmatprep.subr.bf16.mxu0 %v2093
  %2478 = vmatpush1.bf16.msra.mxu0 %v2092
  %2479 = vmatprep.subr.bf16.mxu0 %v2168
  %2480 = vmatpush1.bf16.msra.mxu0 %v2165
  %2481 = vmatprep.subr.bf16.mxu0 0
  %2482 = vmatpush1.bf16.msra.mxu0 0
  %2483 = vmatprep.subr.bf16.mxu0 0
  %2484 = vmatpush1.bf16.msra.mxu0 0
  %2485 = vmatprep.subr.bf16.mxu0 0
  %2486 = vmatpush1.bf16.msra.mxu0 0
  %2487 = vmatprep.subr.bf16.mxu0 0
  %2488 = vmatpush1.bf16.msra.mxu0 0
  %2489 = vmatprep.subr.bf16.mxu0 0
  %2490 = vmatpush1.bf16.msra.mxu0 0
  %2491 = vmatprep.subr.bf16.mxu0 0
  %2492 = vmatpush1.bf16.msra.mxu0 0
  %2493 = vmatprep.subr.bf16.mxu0 0
  %2494 = vmatpush1.bf16.msra.mxu0 0
  %2495 = vmatprep.subr.bf16.mxu0 0
  %2496 = vmatpush1.bf16.msra.mxu0 0
  %2497 = vmatprep.subr.bf16.mxu0 0
  %2498 = vmatpush1.bf16.msra.mxu0 0
  %2499 = vmatprep.subr.bf16.mxu0 0
  %2500 = vmatpush1.bf16.msra.mxu0 0
  %2501 = vmatprep.subr.bf16.mxu0 0
  %2502 = vmatpush1.bf16.msra.mxu0 0
  %2503 = vmatprep.mubr.bf16.mxu0 0
  %2504 = vmatmul.mubr.bf16.gmra.mrb[0].mxu0 %v2119
  %v2505 = vpop.f32.mrb[0].mxu0
  %v2506 = vadd.f32 0.0, %v2505
  %v2507 = vpop.f32.mrb[0].mxu0
  %v2508 = vadd.f32 0.0, %v2507
  %v2509 = vpop.f32.mrb[0].mxu0
  %v2510 = vadd.f32 0.0, %v2509
  %v2511 = vpop.f32.mrb[0].mxu0
  %v2512 = vadd.f32 0.0, %v2511
  %2513 = vdwg.mxu0
  %v2514 = vtanh.pop %v2205
  %v2515 = vtanh.pop %v2207
  %v2516 = vtanh.pop %v2248
  %v2517 = vtanh.pop %v2250
  %v2518 = vtanh.pop %v2291
  %v2519 = vtanh.pop %v2293
  %v2520 = vtanh.pop %v2334
  %v2521 = vtanh.pop %v2336
  %v2522 = vtanh.pop %v2377
  %v2523 = vtanh.pop %v2379
  %v2524 = vtanh.pop %v2420
  %v2525 = vtanh.pop %v2422
  %v2526 = vtanh.pop %v2463
  %v2527 = vtanh.pop %v2465
  %v2528 = vtanh.pop %v2506
  %v2529 = vtanh.pop %v2508
  %v2530 = vtanh.pop %v2209
  %v2531 = vtanh.pop %v2211
  %v2532 = vtanh.pop %v2252
  %v2533 = vtanh.pop %v2254
  %v2534 = vtanh.pop %v2295
  %v2535 = vtanh.pop %v2297
  %v2536 = vtanh.pop %v2338
  %v2537 = vtanh.pop %v2340
  %v2538 = vtanh.pop %v2381
  %v2539 = vtanh.pop %v2383
  %v2540 = vtanh.pop %v2424
  %v2541 = vtanh.pop %v2426
  %v2542 = vtanh.pop %v2467
  %v2543 = vtanh.pop %v2469
  %v2544 = vtanh.pop %v2510
  %v2545 = vtanh.pop %v2512
  %v2562 = vrot.slane %v2514, 3
  %v2563 = vrot.slane %v2515, 3
  %v2564 = vrot.slane %v2516, 3
  %v2565 = vrot.slane %v2517, 3
  %v2566 = vrot.slane %v2518, 3
  %v2567 = vrot.slane %v2519, 3
  %v2568 = vrot.slane %v2520, 3
  %v2569 = vrot.slane %v2521, 3
  %v2570 = vrot.slane %v2522, 3
  %v2571 = vrot.slane %v2523, 3
  %v2572 = vrot.slane %v2524, 3
  %v2573 = vrot.slane %v2525, 3
  %v2574 = vrot.slane %v2526, 3
  %v2575 = vrot.slane %v2527, 3
  %v2576 = vrot.slane %v2528, 3
  %v2577 = vrot.slane %v2529, 3
  %v2594 = vadd.f32 %v2514, %v2562
  %v2595 = vadd.f32 %v2515, %v2563
  %v2596 = vadd.f32 %v2516, %v2564
  %v2597 = vadd.f32 %v2517, %v2565
  %v2598 = vadd.f32 %v2518, %v2566
  %v2599 = vadd.f32 %v2519, %v2567
  %v2600 = vadd.f32 %v2520, %v2568
  %v2601 = vadd.f32 %v2521, %v2569
  %v2602 = vadd.f32 %v2522, %v2570
  %v2603 = vadd.f32 %v2523, %v2571
  %v2604 = vadd.f32 %v2524, %v2572
  %v2605 = vadd.f32 %v2525, %v2573
  %v2606 = vadd.f32 %v2526, %v2574
  %v2607 = vadd.f32 %v2527, %v2575
  %v2608 = vadd.f32 %v2528, %v2576
  %v2609 = vadd.f32 %v2529, %v2577
  %vm2626 = vcmask 1041408
  %v2627 = vrot.slane %v2514, 6
  %v2628 = vrot.slane %v2530, 6
  %v2629 = vsel %vm2626, %v2627, %v2628
  %v2630 = vrot.slane %v2515, 6
  %v2631 = vrot.slane %v2531, 6
  %v2632 = vsel %vm2626, %v2630, %v2631
  %v2633 = vrot.slane %v2516, 6
  %v2634 = vrot.slane %v2532, 6
  %v2635 = vsel %vm2626, %v2633, %v2634
  %v2636 = vrot.slane %v2517, 6
  %v2637 = vrot.slane %v2533, 6
  %v2638 = vsel %vm2626, %v2636, %v2637
  %v2639 = vrot.slane %v2518, 6
  %v2640 = vrot.slane %v2534, 6
  %v2641 = vsel %vm2626, %v2639, %v2640
  %v2642 = vrot.slane %v2519, 6
  %v2643 = vrot.slane %v2535, 6
  %v2644 = vsel %vm2626, %v2642, %v2643
  %v2645 = vrot.slane %v2520, 6
  %v2646 = vrot.slane %v2536, 6
  %v2647 = vsel %vm2626, %v2645, %v2646
  %v2648 = vrot.slane %v2521, 6
  %v2649 = vrot.slane %v2537, 6
  %v2650 = vsel %vm2626, %v2648, %v2649
  %v2651 = vrot.slane %v2522, 6
  %v2652 = vrot.slane %v2538, 6
  %v2653 = vsel %vm2626, %v2651, %v2652
  %v2654 = vrot.slane %v2523, 6
  %v2655 = vrot.slane %v2539, 6
  %v2656 = vsel %vm2626, %v2654, %v2655
  %v2657 = vrot.slane %v2524, 6
  %v2658 = vrot.slane %v2540, 6
  %v2659 = vsel %vm2626, %v2657, %v2658
  %v2660 = vrot.slane %v2525, 6
  %v2661 = vrot.slane %v2541, 6
  %v2662 = vsel %vm2626, %v2660, %v2661
  %v2663 = vrot.slane %v2526, 6
  %v2664 = vrot.slane %v2542, 6
  %v2665 = vsel %vm2626, %v2663, %v2664
  %v2666 = vrot.slane %v2527, 6
  %v2667 = vrot.slane %v2543, 6
  %v2668 = vsel %vm2626, %v2666, %v2667
  %v2669 = vrot.slane %v2528, 6
  %v2670 = vrot.slane %v2544, 6
  %v2671 = vsel %vm2626, %v2669, %v2670
  %v2672 = vrot.slane %v2529, 6
  %v2673 = vrot.slane %v2545, 6
  %v2674 = vsel %vm2626, %v2672, %v2673
  %v2691 = vadd.f32 %v2594, %v2629
  %v2692 = vadd.f32 %v2595, %v2632
  %v2693 = vadd.f32 %v2596, %v2635
  %v2694 = vadd.f32 %v2597, %v2638
  %v2695 = vadd.f32 %v2598, %v2641
  %v2696 = vadd.f32 %v2599, %v2644
  %v2697 = vadd.f32 %v2600, %v2647
  %v2698 = vadd.f32 %v2601, %v2650
  %v2699 = vadd.f32 %v2602, %v2653
  %v2700 = vadd.f32 %v2603, %v2656
  %v2701 = vadd.f32 %v2604, %v2659
  %v2702 = vadd.f32 %v2605, %v2662
  %v2703 = vadd.f32 %v2606, %v2665
  %v2704 = vadd.f32 %v2607, %v2668
  %v2705 = vadd.f32 %v2608, %v2671
  %v2706 = vadd.f32 %v2609, %v2674
  %v2707 = vrot.slane %v2530, 1
  %v2708 = vrot.slane %v2531, 1
  %v2709 = vrot.slane %v2532, 1
  %v2710 = vrot.slane %v2533, 1
  %v2711 = vrot.slane %v2534, 1
  %v2712 = vrot.slane %v2535, 1
  %v2713 = vrot.slane %v2536, 1
  %v2714 = vrot.slane %v2537, 1
  %v2715 = vrot.slane %v2538, 1
  %v2716 = vrot.slane %v2539, 1
  %v2717 = vrot.slane %v2540, 1
  %v2718 = vrot.slane %v2541, 1
  %v2719 = vrot.slane %v2542, 1
  %v2720 = vrot.slane %v2543, 1
  %v2721 = vrot.slane %v2544, 1
  %v2722 = vrot.slane %v2545, 1
  %v2739 = vadd.f32 %v2691, %v2707
  %v2740 = vadd.f32 %v2692, %v2708
  %v2741 = vadd.f32 %v2693, %v2709
  %v2742 = vadd.f32 %v2694, %v2710
  %v2743 = vadd.f32 %v2695, %v2711
  %v2744 = vadd.f32 %v2696, %v2712
  %v2745 = vadd.f32 %v2697, %v2713
  %v2746 = vadd.f32 %v2698, %v2714
  %v2747 = vadd.f32 %v2699, %v2715
  %v2748 = vadd.f32 %v2700, %v2716
  %v2749 = vadd.f32 %v2701, %v2717
  %v2750 = vadd.f32 %v2702, %v2718
  %v2751 = vadd.f32 %v2703, %v2719
  %v2752 = vadd.f32 %v2704, %v2720
  %v2753 = vadd.f32 %v2705, %v2721
  %v2754 = vadd.f32 %v2706, %v2722
  %v2755 = vmul.f32 %v2739, 0.25
  %v2756 = vmul.f32 %v2740, 0.25
  %v2757 = vmul.f32 %v2741, 0.25
  %v2758 = vmul.f32 %v2742, 0.25
  %v2759 = vmul.f32 %v2743, 0.25
  %v2760 = vmul.f32 %v2744, 0.25
  %v2761 = vmul.f32 %v2745, 0.25
  %v2762 = vmul.f32 %v2746, 0.25
  %v2763 = vmul.f32 %v2747, 0.25
  %v2764 = vmul.f32 %v2748, 0.25
  %v2765 = vmul.f32 %v2749, 0.25
  %v2766 = vmul.f32 %v2750, 0.25
  %v2767 = vmul.f32 %v2751, 0.25
  %v2768 = vmul.f32 %v2752, 0.25
  %v2769 = vmul.f32 %v2753, 0.25
  %v2770 = vmul.f32 %v2754, 0.25
  %v2787 = vcombine.low %v2755, %v2756
  %v2788 = vcombine.low %v2757, %v2758
  %v2789 = vcombine.low %v2759, %v2760
  %v2790 = vcombine.low %v2761, %v2762
  %v2791 = vcombine.low %v2763, %v2764
  %v2792 = vcombine.low %v2765, %v2766
  %v2793 = vcombine.low %v2767, %v2768
  %v2794 = vcombine.low %v2769, %v2770
  %2803 = vst [vmem:[%s3] sm:$0x77] %v2787
  %2804 = vst [vmem:[%s3 + $0x8] sm:$0x77] %v2788
  %2805 = vst [vmem:[%s3 + $0x10] sm:$0x77] %v2789
  %2806 = vst [vmem:[%s3 + $0x18] sm:$0x77] %v2790
  %2807 = vst [vmem:[%s3 + $0x20] sm:$0x77] %v2791
  %2808 = vst [vmem:[%s3 + $0x28] sm:$0x77] %v2792
  %2809 = vst [vmem:[%s3 + $0x30] sm:$0x77] %v2793
  %2810 = vst [vmem:[%s3 + $0x38] sm:$0x77] %v2794
  // Predicated region
  $region14: #{generator_forward.7} parent=0 // pred_check
    _
  $region15: #{generator_forward.7} parent=0 // pred_check_branch
    %2812 = sbr.rel (0) target = $region17
  $region16: #{generator_forward.7} parent=0 // pred_region
    _
  $region17: #{generator_forward.7} parent=0 // pred_fallthru
    _
  // Predicated region
  $region18: #{generator_forward.7} parent=0 // pred_check
    _
  $region19: #{generator_forward.7} parent=0 // pred_check_branch
    %2814 = sbr.rel (0) target = $region21
  $region20: #{generator_forward.7} parent=0 // pred_region
    _
  $region21: #{generator_forward.7} parent=0 // pred_fallthru
    _

</llo_original>
